<compile_context>
chip_gen: v6e
topology: v6e:2x2x1
jax: 0.10.0
libtpu: 0.0.40
codegen_flags: <defaults>
</compile_context>

<pallas_src>
import functools

import jax
import jax.numpy as jnp
import numpy as np
from jax import lax
from jax.experimental import pallas as pl
from jax.experimental.pallas import tpu as pltpu


_INV_SQRT2 = np.float32(0.7071067811865476)


def _gelu_exact(y):
    """Exact erf-based GELU (torch.nn.GELU() default, approximate='none')."""
    return 0.5 * y * (1.0 + lax.erf(y * _INV_SQRT2))


# ------------------------------ fused kernel ---------------------------------
def _encoder_block_kernel(x_ref, w1_ref, w2t_ref, p1_ref, p2_ref, agg_ref,
                          o_ref,
                          xpad1, patch1, xpad2, patch2,
                          *, Hh, Wh, cin, cout, groups, eps, pool):
    """One batch sample per grid step; all intermediates stay in VMEM.

    x_ref   : (1, Hh, 2, Wh, 2*cin)  pool-friendly view of the NHWC input (pool)
              (1, Hh, Wh, cin)       plain NHWC input (no pooling)
    w1_ref  : (9*cin, cout)    im2col weights of conv1
    w2t_ref : (cout, 9*cout)   transposed im2col weights of conv2
    p1_ref  : (3, cout)    rows    = [bias1, gamma1, beta1]   (f32)
    p2_ref  : (cout, 3)    columns = [bias2, gamma2, beta2]   (f32)
    agg_ref : (cout, groups)  one-hot channel -> group matrix (f32)
    o_ref   : (1, cout, Hh*Wh)  channel-major output (free reshape to NCHW)
    """
    HW = Hh * Wh
    cg = cout // groups
    f32 = jnp.float32
    count = f32(HW * cg)

    # ---------------- 1. MaxPool2d(2, 2), fused into the block ---------------
    if pool:
        xr = x_ref[0].astype(f32)                          # (Hh, 2, Wh, 2*cin)
        wmax = jnp.maximum(xr[..., :cin], xr[..., cin:])   # max over W-pairs
        pooled = jnp.maximum(wmax[:, 0], wmax[:, 1])       # max over H-pairs
    else:
        pooled = x_ref[0].astype(f32)                      # (Hh, Wh, cin)

    # ------------- 2. in-kernel reflect padding (1-pixel halo) ---------------
    def reflect_pad(dst, src):
        # src: (Hh, Wh, C) value ; dst: (Hh+2, Wh+2, C) VMEM scratch ref.
        dst[1:Hh + 1, 1:Wh + 1, :] = src
        dst[1:Hh + 1, 0:1, :] = src[:, 1:2, :]
        dst[1:Hh + 1, Wh + 1:Wh + 2, :] = src[:, Wh - 2:Wh - 1, :]
        dst[0:1, :, :] = dst[2:3, :, :]                    # top row (+ corners)
        dst[Hh + 1:Hh + 2, :, :] = dst[Hh - 1:Hh, :, :]    # bottom row (+ corners)

    # ------------- 3. im2col patch matrix (HW, 9*C) in matmul dtype ----------
    def im2col(dst, src_ref, c):
        src = src_ref[...]                                 # (Hh+2, Wh+2, c)
        k = 0
        for dy in range(3):
            for dx in range(3):
                tap = src[dy:dy + Hh, dx:dx + Wh, :].reshape(HW, c)
                dst[:, k * c:(k + 1) * c] = tap.astype(dst.dtype)
                k += 1

    # =================== conv1 -> GroupNorm -> GELU ==========================
    reflect_pad(xpad1, pooled)
    im2col(patch1, xpad1, cin)

    # Single MXU matmul, K = 9*cin, f32 accumulation.
    acc1 = jnp.dot(patch1[...], w1_ref[...],
                   preferred_element_type=f32)             # (HW, cout)
    acc1 = acc1 + p1_ref[0:1, :]

    # GroupNorm stats via one-hot channel->group matmuls (shifted two-pass var).
    agg = agg_ref[...]                                     # (cout, groups)
    csum = jnp.sum(acc1, axis=0, keepdims=True)            # (1, cout)
    gmean = jnp.dot(csum, agg, preferred_element_type=f32) / count       # (1, G)
    cmean = lax.dot_general(gmean, agg, (((1,), (1,)), ((), ())),
                            preferred_element_type=f32)                  # (1, cout)
    d1 = acc1 - cmean
    csq = jnp.sum(d1 * d1, axis=0, keepdims=True)          # (1, cout)
    gvar = jnp.dot(csq, agg, preferred_element_type=f32) / count         # (1, G)
    cvar = lax.dot_general(gvar, agg, (((1,), (1,)), ((), ())),
                           preferred_element_type=f32)                   # (1, cout)
    y1 = d1 * lax.rsqrt(cvar + f32(eps)) * p1_ref[1:2, :] + p1_ref[2:3, :]
    y1 = _gelu_exact(y1)                                   # (HW, cout) f32

    # =================== conv2 -> GroupNorm -> GELU ==========================
    reflect_pad(xpad2, y1.reshape(Hh, Wh, cout))
    im2col(patch2, xpad2, cout)

    # conv2 as W2 @ patches^T: result is channel-major (cout, HW), so the store
    # is lane-dense along HW and already NCHW-ordered.
    acc2 = lax.dot_general(w2t_ref[...], patch2[...], (((1,), (1,)), ((), ())),
                           preferred_element_type=f32)     # (cout, HW)
    acc2 = acc2 + p2_ref[:, 0:1]

    # GroupNorm: channel groups are contiguous row bands -> leading-dim reshape.
    a3 = acc2.reshape(groups, cg, HW)
    gmean2 = jnp.sum(jnp.sum(a3, axis=2, keepdims=True), axis=1,
                     keepdims=True) / count                # (G, 1, 1)
    d2 = a3 - gmean2
    gvar2 = jnp.sum(jnp.sum(d2 * d2, axis=2, keepdims=True), axis=1,
                    keepdims=True) / count                 # (G, 1, 1)
    yn = (d2 * lax.rsqrt(gvar2 + f32(eps))).reshape(cout, HW)
    y2 = yn * p2_ref[:, 1:2] + p2_ref[:, 2:3]
    o_ref[0] = _gelu_exact(y2).astype(o_ref.dtype)


# ------------------------------- wrapper --------------------------------------
def encoder_block_forward(x_nchw, params, *, polling=True, groups=32, eps=1e-5,
                          matmul_dtype=jnp.bfloat16):
    """Forward of _EncoderBlock(in_ch, out_ch, dropout=False, polling, bn=False).

    x_nchw: (N, Cin, H, W). Conv weights are HWIO (3, 3, Cin, Cout).
    matmul_dtype: MXU operand dtype (bf16 default; accumulation and all
    GroupNorm/GELU math are f32). Use jnp.float32 for bit-faithful matmuls.
    """
    N, cin, H, W = x_nchw.shape
    cout = params["w1"].shape[-1]
    assert cout % groups == 0, "GroupNorm(32, C) requires C % 32 == 0"
    assert params["w1"].shape == (3, 3, cin, cout)
    assert params["w2"].shape == (3, 3, cout, cout)

    x = jnp.transpose(x_nchw, (0, 2, 3, 1))                # NCHW -> NHWC
    if polling:
        assert H % 2 == 0 and W % 2 == 0, "MaxPool2d(2,2) path expects even H, W"
        Hh, Wh = H // 2, W // 2
        # Free contiguous reshape: folds each 2x2 pooling window into a
        # (row-pair, lane-pair) position so the kernel pools with static slices.
        x_in = x.reshape(N, Hh, 2, Wh, 2 * cin)
        x_spec = pl.BlockSpec((1, Hh, 2, Wh, 2 * cin), lambda n: (n, 0, 0, 0, 0))
    else:
        Hh, Wh = H, W
        x_in = x
        x_spec = pl.BlockSpec((1, Hh, Wh, cin), lambda n: (n, 0, 0, 0))
    assert Hh >= 2 and Wh >= 2, "reflect padding needs >= 2 pixels per side"
    HW = Hh * Wh
    cg = cout // groups

    # im2col weight layouts (free host/XLA-side reshapes & transpose).
    w1_mat = params["w1"].reshape(9 * cin, cout).astype(matmul_dtype)
    w2t_mat = jnp.transpose(params["w2"].reshape(9 * cout, cout),
                            (1, 0)).astype(matmul_dtype)   # (cout, 9*cout)

    p1 = jnp.stack([params["b1"], params["g1"],
                    params["bt1"]]).astype(jnp.float32)                   # (3, cout)
    p2 = jnp.stack([params["b2"], params["g2"], params["bt2"]],
                   axis=1).astype(jnp.float32)                            # (cout, 3)
    agg = (jnp.arange(cout)[:, None] // cg ==
           jnp.arange(groups)[None, :]).astype(jnp.float32)               # (cout, G)

    kernel = functools.partial(_encoder_block_kernel, Hh=Hh, Wh=Wh, cin=cin,
                               cout=cout, groups=groups, eps=eps, pool=polling)

    out = pl.pallas_call(
        kernel,
        out_shape=jax.ShapeDtypeStruct((N, cout, HW), x_nchw.dtype),
        grid=(N,),
        in_specs=[
            x_spec,
            pl.BlockSpec((9 * cin, cout), lambda n: (0, 0)),
            pl.BlockSpec((cout, 9 * cout), lambda n: (0, 0)),
            pl.BlockSpec((3, cout), lambda n: (0, 0)),
            pl.BlockSpec((cout, 3), lambda n: (0, 0)),
            pl.BlockSpec((cout, groups), lambda n: (0, 0)),
        ],
        out_specs=pl.BlockSpec((1, cout, HW), lambda n: (n, 0, 0)),
        scratch_shapes=[
            pltpu.VMEM((Hh + 2, Wh + 2, cin), jnp.float32),   # padded pooled input
            pltpu.VMEM((HW, 9 * cin), matmul_dtype),          # im2col patches (conv1)
            pltpu.VMEM((Hh + 2, Wh + 2, cout), jnp.float32),  # padded conv1 activation
            pltpu.VMEM((HW, 9 * cout), matmul_dtype),         # im2col patches (conv2)
        ],
        compiler_params=pltpu.CompilerParams(
            dimension_semantics=("parallel",),
            vmem_limit_bytes=64 * 1024 * 1024,
        ),
    )(x_in, w1_mat, w2t_mat, p1, p2, agg)

    # TODO(synk): nn.Dropout branch not emitted (module default dropout=False).
    # TODO(synk): for very large images on v7x (64 MiB VMEM/TC) tile H into row
    #             bands with a two-pass GroupNorm, and add a second 'parallel'
    #             grid axis so both TensorCores are used when N == 1.
    # (N, cout, HW) is already channel-major: a free reshape yields NCHW.
    return out.reshape(N, cout, Hh, Wh)


# --------------------------- pure-JAX reference --------------------------------
def _ref_conv3x3_reflect(x, w, b, conv_dtype):
    xp = jnp.pad(x, ((0, 0), (1, 1), (1, 1), (0, 0)), mode="reflect")
    out = lax.conv_general_dilated(
        xp.astype(conv_dtype), w.astype(conv_dtype), (1, 1), "VALID",
        dimension_numbers=("NHWC", "HWIO", "NHWC"),
        preferred_element_type=jnp.float32)
    return out + b.reshape(1, 1, 1, -1).astype(jnp.float32)


def _ref_groupnorm_gelu(y, gamma, beta, groups, eps=1e-5):
    N, H, W, C = y.shape
    cg = C // groups
    yr = y.reshape(N, H, W, groups, cg)
    mean = yr.mean(axis=(1, 2, 4), keepdims=True)
    var = ((yr - mean) ** 2).mean(axis=(1, 2, 4), keepdims=True)
    yn = ((yr - mean) / jnp.sqrt(var + eps)).reshape(N, H, W, C)
    yn = yn * gamma.reshape(1, 1, 1, C) + beta.reshape(1, 1, 1, C)
    return _gelu_exact(yn)


def ref_forward(x_nchw, params, *, polling=True, groups=32,
                conv_dtype=jnp.float32):
    x = jnp.transpose(x_nchw, (0, 2, 3, 1)).astype(jnp.float32)
    if polling:
        N, H, W, C = x.shape
        x = x.reshape(N, H // 2, 2, W // 2, 2, C).max(axis=(2, 4))
    y = _ref_conv3x3_reflect(x, params["w1"], params["b1"], conv_dtype)
    y = _ref_groupnorm_gelu(y, params["g1"], params["bt1"], groups)
    y = _ref_conv3x3_reflect(y, params["w2"], params["b2"], conv_dtype)
    y = _ref_groupnorm_gelu(y, params["g2"], params["bt2"], groups)
    return jnp.transpose(y, (0, 3, 1, 2))


if __name__ == "__main__":
    key = jax.random.PRNGKey(0)
    ks = jax.random.split(key, 9)
    N, Cin, H, W = 2, 4, 16, 16
    Cout, G = 32, 32            # GroupNorm(32, Cout) requires Cout % 32 == 0

    x = jax.random.normal(ks[0], (N, Cin, H, W), jnp.float32)
    params = {
        "w1": 0.1 * jax.random.normal(ks[1], (3, 3, Cin, Cout), jnp.float32),
        "b1": 0.1 * jax.random.normal(ks[2], (Cout,), jnp.float32),
        "g1": 1.0 + 0.1 * jax.random.normal(ks[3], (Cout,), jnp.float32),
        "bt1": 0.1 * jax.random.normal(ks[4], (Cout,), jnp.float32),
        "w2": 0.1 * jax.random.normal(ks[5], (3, 3, Cout, Cout), jnp.float32),
        "b2": 0.1 * jax.random.normal(ks[6], (Cout,), jnp.float32),
        "g2": 1.0 + 0.1 * jax.random.normal(ks[7], (Cout,), jnp.float32),
        "bt2": 0.1 * jax.random.normal(ks[8], (Cout,), jnp.float32),
    }

    # 1) Full-precision kernel path vs. exact f32 reference (tight tolerance).
    out_f32 = jax.block_until_ready(
        encoder_block_forward(x, params, polling=True, groups=G,
                              matmul_dtype=jnp.float32))
    ref_f32 = jax.block_until_ready(
        ref_forward(x, params, polling=True, groups=G, conv_dtype=jnp.float32))
    assert out_f32.shape == (N, Cout, H // 2, W // 2), out_f32.shape
    np.testing.assert_allclose(np.asarray(out_f32), np.asarray(ref_f32),
                               atol=2e-4, rtol=2e-4)

    # 2) Default bf16-operand fast path vs. a reference using the same
    #    bf16-operand / f32-accumulation policy (bf16-class tolerance).
    out_bf16 = jax.block_until_ready(
        encoder_block_forward(x, params, polling=True, groups=G))
    ref_bf16 = jax.block_until_ready(
        ref_forward(x, params, polling=True, groups=G, conv_dtype=jnp.bfloat16))
    np.testing.assert_allclose(np.asarray(out_bf16), np.asarray(ref_bf16),
                               atol=5e-3, rtol=5e-3)

    print("KERNEL_OK")
</pallas_src>

<mosaic_0001>
module attributes {stable_mosaic.version = 11 : i64} {
  func.func @_encoder_block_kernel(%arg0: i32, %arg1: memref<1x8x2x8x8xf32, #tpu.memory_space<vmem>>, %arg2: memref<36x32xf32, #tpu.memory_space<vmem>>, %arg3: memref<32x288xf32, #tpu.memory_space<vmem>>, %arg4: memref<3x32xf32, #tpu.memory_space<vmem>>, %arg5: memref<32x3xf32, #tpu.memory_space<vmem>>, %arg6: memref<32x32xf32, #tpu.memory_space<vmem>>, %arg7: memref<1x32x64xf32, #tpu.memory_space<vmem>>, %arg8: memref<10x10x4xf32, #tpu.memory_space<vmem>>, %arg9: memref<64x36xf32, #tpu.memory_space<vmem>>, %arg10: memref<10x10x32xf32, #tpu.memory_space<vmem>>, %arg11: memref<64x288xf32, #tpu.memory_space<vmem>>) attributes {dimension_semantics = [#tpu.dimension_semantics<parallel>], iteration_bounds = array<i64: 2>, scalar_prefetch = 0 : i64, scratch_operands = 4 : i64, tpu.core_type = #tpu.core_type<tc>, window_params = [{transform_indices = @transform_0, window_bounds = array<i64: 1, 8, 2, 8, 8>}, {pipeline_mode = #tpu.pipeline_mode<synchronous>, transform_indices = @transform_1, window_bounds = array<i64: 36, 32>}, {pipeline_mode = #tpu.pipeline_mode<synchronous>, transform_indices = @transform_2, window_bounds = array<i64: 32, 288>}, {pipeline_mode = #tpu.pipeline_mode<synchronous>, transform_indices = @transform_3, window_bounds = array<i64: 3, 32>}, {pipeline_mode = #tpu.pipeline_mode<synchronous>, transform_indices = @transform_4, window_bounds = array<i64: 32, 3>}, {pipeline_mode = #tpu.pipeline_mode<synchronous>, transform_indices = @transform_5, window_bounds = array<i64: 32, 32>}, {transform_indices = @transform_6, window_bounds = array<i64: 1, 32, 64>}]} {
    %c0 = arith.constant 0 : index
    %c0_0 = arith.constant 0 : index
    %c0_1 = arith.constant 0 : index
    %c0_2 = arith.constant 0 : index
    %c0_3 = arith.constant 0 : index
    %0 = vector.load %arg1[%c0, %c0_0, %c0_1, %c0_2, %c0_3] : memref<1x8x2x8x8xf32, #tpu.memory_space<vmem>>, vector<1x8x2x8x8xf32>
    %1 = vector.shape_cast %0 : vector<1x8x2x8x8xf32> to vector<8x2x8x8xf32>
    %2 = vector.extract_strided_slice %1 {offsets = [0, 0, 0, 0], sizes = [8, 2, 8, 4], strides = [1, 1, 1, 1]} : vector<8x2x8x8xf32> to vector<8x2x8x4xf32>
    %3 = vector.extract_strided_slice %1 {offsets = [0, 0, 0, 4], sizes = [8, 2, 8, 4], strides = [1, 1, 1, 1]} : vector<8x2x8x8xf32> to vector<8x2x8x4xf32>
    %4 = arith.maximumf %2, %3 : vector<8x2x8x4xf32>
    %5 = vector.extract_strided_slice %4 {offsets = [0, 0, 0, 0], sizes = [8, 1, 8, 4], strides = [1, 1, 1, 1]} : vector<8x2x8x4xf32> to vector<8x1x8x4xf32>
    %6 = vector.shape_cast %5 : vector<8x1x8x4xf32> to vector<8x8x4xf32>
    %7 = vector.extract_strided_slice %4 {offsets = [0, 1, 0, 0], sizes = [8, 1, 8, 4], strides = [1, 1, 1, 1]} : vector<8x2x8x4xf32> to vector<8x1x8x4xf32>
    %8 = vector.shape_cast %7 : vector<8x1x8x4xf32> to vector<8x8x4xf32>
    %9 = arith.maximumf %6, %8 : vector<8x8x4xf32>
    %c1 = arith.constant 1 : index
    %c1_4 = arith.constant 1 : index
    %c0_5 = arith.constant 0 : index
    %10 = vector.load %arg8[%c1, %c1_4, %c0_5] : memref<10x10x4xf32, #tpu.memory_space<vmem>>, vector<8x8x4xf32>
    tpu.vector_store %arg8[%c1, %c1_4, %c0_5], %9 {strides = array<i32>} : memref<10x10x4xf32, #tpu.memory_space<vmem>>, vector<8x8x4xf32>,
    %11 = vector.extract_strided_slice %9 {offsets = [0, 1, 0], sizes = [8, 1, 4], strides = [1, 1, 1]} : vector<8x8x4xf32> to vector<8x1x4xf32>
    %c1_6 = arith.constant 1 : index
    %c0_7 = arith.constant 0 : index
    %c0_8 = arith.constant 0 : index
    %12 = vector.load %arg8[%c1_6, %c0_7, %c0_8] : memref<10x10x4xf32, #tpu.memory_space<vmem>>, vector<8x1x4xf32>
    tpu.vector_store %arg8[%c1_6, %c0_7, %c0_8], %11 {strides = array<i32>} : memref<10x10x4xf32, #tpu.memory_space<vmem>>, vector<8x1x4xf32>,
    %13 = vector.extract_strided_slice %9 {offsets = [0, 6, 0], sizes = [8, 1, 4], strides = [1, 1, 1]} : vector<8x8x4xf32> to vector<8x1x4xf32>
    %c1_9 = arith.constant 1 : index
    %c9 = arith.constant 9 : index
    %c0_10 = arith.constant 0 : index
    %14 = vector.load %arg8[%c1_9, %c9, %c0_10] : memref<10x10x4xf32, #tpu.memory_space<vmem>>, vector<8x1x4xf32>
    tpu.vector_store %arg8[%c1_9, %c9, %c0_10], %13 {strides = array<i32>} : memref<10x10x4xf32, #tpu.memory_space<vmem>>, vector<8x1x4xf32>,
    %c2 = arith.constant 2 : index
    %c0_11 = arith.constant 0 : index
    %c0_12 = arith.constant 0 : index
    %15 = vector.load %arg8[%c2, %c0_11, %c0_12] : memref<10x10x4xf32, #tpu.memory_space<vmem>>, vector<1x10x4xf32>
    %c0_13 = arith.constant 0 : index
    %c0_14 = arith.constant 0 : index
    %c0_15 = arith.constant 0 : index
    %16 = vector.load %arg8[%c0_13, %c0_14, %c0_15] : memref<10x10x4xf32, #tpu.memory_space<vmem>>, vector<1x10x4xf32>
    tpu.vector_store %arg8[%c0_13, %c0_14, %c0_15], %15 {strides = array<i32>} : memref<10x10x4xf32, #tpu.memory_space<vmem>>, vector<1x10x4xf32>,
    %c7 = arith.constant 7 : index
    %c0_16 = arith.constant 0 : index
    %c0_17 = arith.constant 0 : index
    %17 = vector.load %arg8[%c7, %c0_16, %c0_17] : memref<10x10x4xf32, #tpu.memory_space<vmem>>, vector<1x10x4xf32>
    %c9_18 = arith.constant 9 : index
    %c0_19 = arith.constant 0 : index
    %c0_20 = arith.constant 0 : index
    %18 = vector.load %arg8[%c9_18, %c0_19, %c0_20] : memref<10x10x4xf32, #tpu.memory_space<vmem>>, vector<1x10x4xf32>
    tpu.vector_store %arg8[%c9_18, %c0_19, %c0_20], %17 {strides = array<i32>} : memref<10x10x4xf32, #tpu.memory_space<vmem>>, vector<1x10x4xf32>,
    %c0_21 = arith.constant 0 : index
    %c0_22 = arith.constant 0 : index
    %c0_23 = arith.constant 0 : index
    %19 = vector.load %arg8[%c0_21, %c0_22, %c0_23] : memref<10x10x4xf32, #tpu.memory_space<vmem>>, vector<10x10x4xf32>
    %20 = vector.extract_strided_slice %19 {offsets = [0, 0, 0], sizes = [8, 8, 4], strides = [1, 1, 1]} : vector<10x10x4xf32> to vector<8x8x4xf32>
    %21 = vector.shape_cast %20 : vector<8x8x4xf32> to vector<64x4xf32>
    %c0_24 = arith.constant 0 : index
    %c0_25 = arith.constant 0 : index
    %22 = vector.load %arg9[%c0_24, %c0_25] : memref<64x36xf32, #tpu.memory_space<vmem>>, vector<64x4xf32>
    tpu.vector_store %arg9[%c0_24, %c0_25], %21 {strides = array<i32>} : memref<64x36xf32, #tpu.memory_space<vmem>>, vector<64x4xf32>,
    %23 = vector.extract_strided_slice %19 {offsets = [0, 1, 0], sizes = [8, 8, 4], strides = [1, 1, 1]} : vector<10x10x4xf32> to vector<8x8x4xf32>
    %24 = vector.shape_cast %23 : vector<8x8x4xf32> to vector<64x4xf32>
    %c0_26 = arith.constant 0 : index
    %c4 = arith.constant 4 : index
    %25 = vector.load %arg9[%c0_26, %c4] : memref<64x36xf32, #tpu.memory_space<vmem>>, vector<64x4xf32>
    tpu.vector_store %arg9[%c0_26, %c4], %24 {strides = array<i32>} : memref<64x36xf32, #tpu.memory_space<vmem>>, vector<64x4xf32>,
    %26 = vector.extract_strided_slice %19 {offsets = [0, 2, 0], sizes = [8, 8, 4], strides = [1, 1, 1]} : vector<10x10x4xf32> to vector<8x8x4xf32>
    %27 = vector.shape_cast %26 : vector<8x8x4xf32> to vector<64x4xf32>
    %c0_27 = arith.constant 0 : index
    %c8 = arith.constant 8 : index
    %28 = vector.load %arg9[%c0_27, %c8] : memref<64x36xf32, #tpu.memory_space<vmem>>, vector<64x4xf32>
    tpu.vector_store %arg9[%c0_27, %c8], %27 {strides = array<i32>} : memref<64x36xf32, #tpu.memory_space<vmem>>, vector<64x4xf32>,
    %29 = vector.extract_strided_slice %19 {offsets = [1, 0, 0], sizes = [8, 8, 4], strides = [1, 1, 1]} : vector<10x10x4xf32> to vector<8x8x4xf32>
    %30 = vector.shape_cast %29 : vector<8x8x4xf32> to vector<64x4xf32>
    %c0_28 = arith.constant 0 : index
    %c12 = arith.constant 12 : index
    %31 = vector.load %arg9[%c0_28, %c12] : memref<64x36xf32, #tpu.memory_space<vmem>>, vector<64x4xf32>
    tpu.vector_store %arg9[%c0_28, %c12], %30 {strides = array<i32>} : memref<64x36xf32, #tpu.memory_space<vmem>>, vector<64x4xf32>,
    %32 = vector.extract_strided_slice %19 {offsets = [1, 1, 0], sizes = [8, 8, 4], strides = [1, 1, 1]} : vector<10x10x4xf32> to vector<8x8x4xf32>
    %33 = vector.shape_cast %32 : vector<8x8x4xf32> to vector<64x4xf32>
    %c0_29 = arith.constant 0 : index
    %c16 = arith.constant 16 : index
    %34 = vector.load %arg9[%c0_29, %c16] : memref<64x36xf32, #tpu.memory_space<vmem>>, vector<64x4xf32>
    tpu.vector_store %arg9[%c0_29, %c16], %33 {strides = array<i32>} : memref<64x36xf32, #tpu.memory_space<vmem>>, vector<64x4xf32>,
    %35 = vector.extract_strided_slice %19 {offsets = [1, 2, 0], sizes = [8, 8, 4], strides = [1, 1, 1]} : vector<10x10x4xf32> to vector<8x8x4xf32>
    %36 = vector.shape_cast %35 : vector<8x8x4xf32> to vector<64x4xf32>
    %c0_30 = arith.constant 0 : index
    %c20 = arith.constant 20 : index
    %37 = vector.load %arg9[%c0_30, %c20] : memref<64x36xf32, #tpu.memory_space<vmem>>, vector<64x4xf32>
    tpu.vector_store %arg9[%c0_30, %c20], %36 {strides = array<i32>} : memref<64x36xf32, #tpu.memory_space<vmem>>, vector<64x4xf32>,
    %38 = vector.extract_strided_slice %19 {offsets = [2, 0, 0], sizes = [8, 8, 4], strides = [1, 1, 1]} : vector<10x10x4xf32> to vector<8x8x4xf32>
    %39 = vector.shape_cast %38 : vector<8x8x4xf32> to vector<64x4xf32>
    %c0_31 = arith.constant 0 : index
    %c24 = arith.constant 24 : index
    %40 = vector.load %arg9[%c0_31, %c24] : memref<64x36xf32, #tpu.memory_space<vmem>>, vector<64x4xf32>
    tpu.vector_store %arg9[%c0_31, %c24], %39 {strides = array<i32>} : memref<64x36xf32, #tpu.memory_space<vmem>>, vector<64x4xf32>,
    %41 = vector.extract_strided_slice %19 {offsets = [2, 1, 0], sizes = [8, 8, 4], strides = [1, 1, 1]} : vector<10x10x4xf32> to vector<8x8x4xf32>
    %42 = vector.shape_cast %41 : vector<8x8x4xf32> to vector<64x4xf32>
    %c0_32 = arith.constant 0 : index
    %c28 = arith.constant 28 : index
    %43 = vector.load %arg9[%c0_32, %c28] : memref<64x36xf32, #tpu.memory_space<vmem>>, vector<64x4xf32>
    tpu.vector_store %arg9[%c0_32, %c28], %42 {strides = array<i32>} : memref<64x36xf32, #tpu.memory_space<vmem>>, vector<64x4xf32>,
    %44 = vector.extract_strided_slice %19 {offsets = [2, 2, 0], sizes = [8, 8, 4], strides = [1, 1, 1]} : vector<10x10x4xf32> to vector<8x8x4xf32>
    %45 = vector.shape_cast %44 : vector<8x8x4xf32> to vector<64x4xf32>
    %c0_33 = arith.constant 0 : index
    %c32 = arith.constant 32 : index
    %46 = vector.load %arg9[%c0_33, %c32] : memref<64x36xf32, #tpu.memory_space<vmem>>, vector<64x4xf32>
    tpu.vector_store %arg9[%c0_33, %c32], %45 {strides = array<i32>} : memref<64x36xf32, #tpu.memory_space<vmem>>, vector<64x4xf32>,
    %c0_34 = arith.constant 0 : index
    %c0_35 = arith.constant 0 : index
    %47 = vector.load %arg9[%c0_34, %c0_35] : memref<64x36xf32, #tpu.memory_space<vmem>>, vector<64x36xf32>
    %c0_36 = arith.constant 0 : index
    %c0_37 = arith.constant 0 : index
    %48 = vector.load %arg2[%c0_36, %c0_37] : memref<36x32xf32, #tpu.memory_space<vmem>>, vector<36x32xf32>
    %cst = arith.constant dense<0.000000e+00> : vector<64x32xf32>
    %49 = tpu.matmul %47, %48, %cst {dimension_numbers = #tpu.dot_dimension_numbers<[1], [0], [0], [1], [0, 0, 1, 1], [], []>} : vector<64x36xf32>, vector<36x32xf32>, vector<64x32xf32> -> vector<64x32xf32>
    %c0_38 = arith.constant 0 : index
    %c0_39 = arith.constant 0 : index
    %50 = vector.load %arg4[%c0_38, %c0_39] : memref<3x32xf32, #tpu.memory_space<vmem>>, vector<1x32xf32>
    %51 = vector.broadcast %50 : vector<1x32xf32> to vector<64x32xf32>
    %52 = arith.addf %49, %51 : vector<64x32xf32>
    %c0_40 = arith.constant 0 : index
    %c0_41 = arith.constant 0 : index
    %53 = vector.load %arg6[%c0_40, %c0_41] : memref<32x32xf32, #tpu.memory_space<vmem>>, vector<32x32xf32>
    %cst_42 = arith.constant dense<0.000000e+00> : vector<32xf32>
    %54 = vector.multi_reduction <add>, %52, %cst_42 [0] : vector<64x32xf32> to vector<32xf32>
    %55 = vector.shape_cast %54 : vector<32xf32> to vector<1x32xf32>
    %cst_43 = arith.constant dense<0.000000e+00> : vector<1x32xf32>
    %56 = tpu.matmul %55, %53, %cst_43 {dimension_numbers = #tpu.dot_dimension_numbers<[1], [0], [0], [1], [0, 0, 1, 1], [], []>} : vector<1x32xf32>, vector<32x32xf32>, vector<1x32xf32> -> vector<1x32xf32>
    %cst_44 = arith.constant 6.400000e+01 : f32
    %57 = vector.broadcast %cst_44 : f32 to vector<1x32xf32>
    %58 = arith.divf %56, %57 : vector<1x32xf32>
    %cst_45 = arith.constant dense<0.000000e+00> : vector<1x32xf32>
    %59 = tpu.matmul %58, %53, %cst_45 {dimension_numbers = #tpu.dot_dimension_numbers<[1], [1], [0], [0], [0, 0, 1, 0], [], []>} : vector<1x32xf32>, vector<32x32xf32>, vector<1x32xf32> -> vector<1x32xf32>
    %60 = vector.broadcast %59 : vector<1x32xf32> to vector<64x32xf32>
    %61 = arith.subf %52, %60 : vector<64x32xf32>
    %62 = arith.mulf %61, %61 : vector<64x32xf32>
    %cst_46 = arith.constant dense<0.000000e+00> : vector<32xf32>
    %63 = vector.multi_reduction <add>, %62, %cst_46 [0] : vector<64x32xf32> to vector<32xf32>
    %64 = vector.shape_cast %63 : vector<32xf32> to vector<1x32xf32>
    %cst_47 = arith.constant dense<0.000000e+00> : vector<1x32xf32>
    %65 = tpu.matmul %64, %53, %cst_47 {dimension_numbers = #tpu.dot_dimension_numbers<[1], [0], [0], [1], [0, 0, 1, 1], [], []>} : vector<1x32xf32>, vector<32x32xf32>, vector<1x32xf32> -> vector<1x32xf32>
    %cst_48 = arith.constant 6.400000e+01 : f32
    %66 = vector.broadcast %cst_48 : f32 to vector<1x32xf32>
    %67 = arith.divf %65, %66 : vector<1x32xf32>
    %cst_49 = arith.constant dense<0.000000e+00> : vector<1x32xf32>
    %68 = tpu.matmul %67, %53, %cst_49 {dimension_numbers = #tpu.dot_dimension_numbers<[1], [1], [0], [0], [0, 0, 1, 0], [], []>} : vector<1x32xf32>, vector<32x32xf32>, vector<1x32xf32> -> vector<1x32xf32>
    %cst_50 = arith.constant 9.99999974E-6 : f32
    %69 = vector.broadcast %cst_50 : f32 to vector<1x32xf32>
    %70 = arith.addf %68, %69 : vector<1x32xf32>
    %71 = math.rsqrt %70 : vector<1x32xf32>
    %72 = vector.broadcast %71 : vector<1x32xf32> to vector<64x32xf32>
    %73 = arith.mulf %61, %72 : vector<64x32xf32>
    %c1_51 = arith.constant 1 : index
    %c0_52 = arith.constant 0 : index
    %74 = vector.load %arg4[%c1_51, %c0_52] : memref<3x32xf32, #tpu.memory_space<vmem>>, vector<1x32xf32>
    %75 = vector.broadcast %74 : vector<1x32xf32> to vector<64x32xf32>
    %76 = arith.mulf %73, %75 : vector<64x32xf32>
    %c2_53 = arith.constant 2 : index
    %c0_54 = arith.constant 0 : index
    %77 = vector.load %arg4[%c2_53, %c0_54] : memref<3x32xf32, #tpu.memory_space<vmem>>, vector<1x32xf32>
    %78 = vector.broadcast %77 : vector<1x32xf32> to vector<64x32xf32>
    %79 = arith.addf %76, %78 : vector<64x32xf32>
    %cst_55 = arith.constant 5.000000e-01 : f32
    %80 = vector.broadcast %cst_55 : f32 to vector<64x32xf32>
    %81 = arith.mulf %80, %79 : vector<64x32xf32>
    %cst_56 = arith.constant 0.707106769 : f32
    %82 = vector.broadcast %cst_56 : f32 to vector<64x32xf32>
    %83 = arith.mulf %79, %82 : vector<64x32xf32>
    %84 = math.erf %83 : vector<64x32xf32>
    %cst_57 = arith.constant 1.000000e+00 : f32
    %85 = vector.broadcast %cst_57 : f32 to vector<64x32xf32>
    %86 = arith.addf %85, %84 : vector<64x32xf32>
    %87 = arith.mulf %81, %86 : vector<64x32xf32>
    %88 = vector.shape_cast %87 : vector<64x32xf32> to vector<8x8x32xf32>
    %c1_58 = arith.constant 1 : index
    %c1_59 = arith.constant 1 : index
    %c0_60 = arith.constant 0 : index
    %89 = vector.load %arg10[%c1_58, %c1_59, %c0_60] : memref<10x10x32xf32, #tpu.memory_space<vmem>>, vector<8x8x32xf32>
    tpu.vector_store %arg10[%c1_58, %c1_59, %c0_60], %88 {strides = array<i32>} : memref<10x10x32xf32, #tpu.memory_space<vmem>>, vector<8x8x32xf32>,
    %90 = vector.extract_strided_slice %88 {offsets = [0, 1, 0], sizes = [8, 1, 32], strides = [1, 1, 1]} : vector<8x8x32xf32> to vector<8x1x32xf32>
    %c1_61 = arith.constant 1 : index
    %c0_62 = arith.constant 0 : index
    %c0_63 = arith.constant 0 : index
    %91 = vector.load %arg10[%c1_61, %c0_62, %c0_63] : memref<10x10x32xf32, #tpu.memory_space<vmem>>, vector<8x1x32xf32>
    tpu.vector_store %arg10[%c1_61, %c0_62, %c0_63], %90 {strides = array<i32>} : memref<10x10x32xf32, #tpu.memory_space<vmem>>, vector<8x1x32xf32>,
    %92 = vector.extract_strided_slice %88 {offsets = [0, 6, 0], sizes = [8, 1, 32], strides = [1, 1, 1]} : vector<8x8x32xf32> to vector<8x1x32xf32>
    %c1_64 = arith.constant 1 : index
    %c9_65 = arith.constant 9 : index
    %c0_66 = arith.constant 0 : index
    %93 = vector.load %arg10[%c1_64, %c9_65, %c0_66] : memref<10x10x32xf32, #tpu.memory_space<vmem>>, vector<8x1x32xf32>
    tpu.vector_store %arg10[%c1_64, %c9_65, %c0_66], %92 {strides = array<i32>} : memref<10x10x32xf32, #tpu.memory_space<vmem>>, vector<8x1x32xf32>,
    %c2_67 = arith.constant 2 : index
    %c0_68 = arith.constant 0 : index
    %c0_69 = arith.constant 0 : index
    %94 = vector.load %arg10[%c2_67, %c0_68, %c0_69] : memref<10x10x32xf32, #tpu.memory_space<vmem>>, vector<1x10x32xf32>
    %c0_70 = arith.constant 0 : index
    %c0_71 = arith.constant 0 : index
    %c0_72 = arith.constant 0 : index
    %95 = vector.load %arg10[%c0_70, %c0_71, %c0_72] : memref<10x10x32xf32, #tpu.memory_space<vmem>>, vector<1x10x32xf32>
    tpu.vector_store %arg10[%c0_70, %c0_71, %c0_72], %94 {strides = array<i32>} : memref<10x10x32xf32, #tpu.memory_space<vmem>>, vector<1x10x32xf32>,
    %c7_73 = arith.constant 7 : index
    %c0_74 = arith.constant 0 : index
    %c0_75 = arith.constant 0 : index
    %96 = vector.load %arg10[%c7_73, %c0_74, %c0_75] : memref<10x10x32xf32, #tpu.memory_space<vmem>>, vector<1x10x32xf32>
    %c9_76 = arith.constant 9 : index
    %c0_77 = arith.constant 0 : index
    %c0_78 = arith.constant 0 : index
    %97 = vector.load %arg10[%c9_76, %c0_77, %c0_78] : memref<10x10x32xf32, #tpu.memory_space<vmem>>, vector<1x10x32xf32>
    tpu.vector_store %arg10[%c9_76, %c0_77, %c0_78], %96 {strides = array<i32>} : memref<10x10x32xf32, #tpu.memory_space<vmem>>, vector<1x10x32xf32>,
    %c0_79 = arith.constant 0 : index
    %c0_80 = arith.constant 0 : index
    %c0_81 = arith.constant 0 : index
    %98 = vector.load %arg10[%c0_79, %c0_80, %c0_81] : memref<10x10x32xf32, #tpu.memory_space<vmem>>, vector<10x10x32xf32>
    %99 = vector.extract_strided_slice %98 {offsets = [0, 0, 0], sizes = [8, 8, 32], strides = [1, 1, 1]} : vector<10x10x32xf32> to vector<8x8x32xf32>
    %100 = vector.shape_cast %99 : vector<8x8x32xf32> to vector<64x32xf32>
    %c0_82 = arith.constant 0 : index
    %c0_83 = arith.constant 0 : index
    %101 = vector.load %arg11[%c0_82, %c0_83] : memref<64x288xf32, #tpu.memory_space<vmem>>, vector<64x32xf32>
    tpu.vector_store %arg11[%c0_82, %c0_83], %100 {strides = array<i32>} : memref<64x288xf32, #tpu.memory_space<vmem>>, vector<64x32xf32>,
    %102 = vector.extract_strided_slice %98 {offsets = [0, 1, 0], sizes = [8, 8, 32], strides = [1, 1, 1]} : vector<10x10x32xf32> to vector<8x8x32xf32>
    %103 = vector.shape_cast %102 : vector<8x8x32xf32> to vector<64x32xf32>
    %c0_84 = arith.constant 0 : index
    %c32_85 = arith.constant 32 : index
    %104 = vector.load %arg11[%c0_84, %c32_85] : memref<64x288xf32, #tpu.memory_space<vmem>>, vector<64x32xf32>
    tpu.vector_store %arg11[%c0_84, %c32_85], %103 {strides = array<i32>} : memref<64x288xf32, #tpu.memory_space<vmem>>, vector<64x32xf32>,
    %105 = vector.extract_strided_slice %98 {offsets = [0, 2, 0], sizes = [8, 8, 32], strides = [1, 1, 1]} : vector<10x10x32xf32> to vector<8x8x32xf32>
    %106 = vector.shape_cast %105 : vector<8x8x32xf32> to vector<64x32xf32>
    %c0_86 = arith.constant 0 : index
    %c64 = arith.constant 64 : index
    %107 = vector.load %arg11[%c0_86, %c64] : memref<64x288xf32, #tpu.memory_space<vmem>>, vector<64x32xf32>
    tpu.vector_store %arg11[%c0_86, %c64], %106 {strides = array<i32>} : memref<64x288xf32, #tpu.memory_space<vmem>>, vector<64x32xf32>,
    %108 = vector.extract_strided_slice %98 {offsets = [1, 0, 0], sizes = [8, 8, 32], strides = [1, 1, 1]} : vector<10x10x32xf32> to vector<8x8x32xf32>
    %109 = vector.shape_cast %108 : vector<8x8x32xf32> to vector<64x32xf32>
    %c0_87 = arith.constant 0 : index
    %c96 = arith.constant 96 : index
    %110 = vector.load %arg11[%c0_87, %c96] : memref<64x288xf32, #tpu.memory_space<vmem>>, vector<64x32xf32>
    tpu.vector_store %arg11[%c0_87, %c96], %109 {strides = array<i32>} : memref<64x288xf32, #tpu.memory_space<vmem>>, vector<64x32xf32>,
    %111 = vector.extract_strided_slice %98 {offsets = [1, 1, 0], sizes = [8, 8, 32], strides = [1, 1, 1]} : vector<10x10x32xf32> to vector<8x8x32xf32>
    %112 = vector.shape_cast %111 : vector<8x8x32xf32> to vector<64x32xf32>
    %c0_88 = arith.constant 0 : index
    %c128 = arith.constant 128 : index
    %113 = vector.load %arg11[%c0_88, %c128] : memref<64x288xf32, #tpu.memory_space<vmem>>, vector<64x32xf32>
    tpu.vector_store %arg11[%c0_88, %c128], %112 {strides = array<i32>} : memref<64x288xf32, #tpu.memory_space<vmem>>, vector<64x32xf32>,
    %114 = vector.extract_strided_slice %98 {offsets = [1, 2, 0], sizes = [8, 8, 32], strides = [1, 1, 1]} : vector<10x10x32xf32> to vector<8x8x32xf32>
    %115 = vector.shape_cast %114 : vector<8x8x32xf32> to vector<64x32xf32>
    %c0_89 = arith.constant 0 : index
    %c160 = arith.constant 160 : index
    %116 = vector.load %arg11[%c0_89, %c160] : memref<64x288xf32, #tpu.memory_space<vmem>>, vector<64x32xf32>
    tpu.vector_store %arg11[%c0_89, %c160], %115 {strides = array<i32>} : memref<64x288xf32, #tpu.memory_space<vmem>>, vector<64x32xf32>,
    %117 = vector.extract_strided_slice %98 {offsets = [2, 0, 0], sizes = [8, 8, 32], strides = [1, 1, 1]} : vector<10x10x32xf32> to vector<8x8x32xf32>
    %118 = vector.shape_cast %117 : vector<8x8x32xf32> to vector<64x32xf32>
    %c0_90 = arith.constant 0 : index
    %c192 = arith.constant 192 : index
    %119 = vector.load %arg11[%c0_90, %c192] : memref<64x288xf32, #tpu.memory_space<vmem>>, vector<64x32xf32>
    tpu.vector_store %arg11[%c0_90, %c192], %118 {strides = array<i32>} : memref<64x288xf32, #tpu.memory_space<vmem>>, vector<64x32xf32>,
    %120 = vector.extract_strided_slice %98 {offsets = [2, 1, 0], sizes = [8, 8, 32], strides = [1, 1, 1]} : vector<10x10x32xf32> to vector<8x8x32xf32>
    %121 = vector.shape_cast %120 : vector<8x8x32xf32> to vector<64x32xf32>
    %c0_91 = arith.constant 0 : index
    %c224 = arith.constant 224 : index
    %122 = vector.load %arg11[%c0_91, %c224] : memref<64x288xf32, #tpu.memory_space<vmem>>, vector<64x32xf32>
    tpu.vector_store %arg11[%c0_91, %c224], %121 {strides = array<i32>} : memref<64x288xf32, #tpu.memory_space<vmem>>, vector<64x32xf32>,
    %123 = vector.extract_strided_slice %98 {offsets = [2, 2, 0], sizes = [8, 8, 32], strides = [1, 1, 1]} : vector<10x10x32xf32> to vector<8x8x32xf32>
    %124 = vector.shape_cast %123 : vector<8x8x32xf32> to vector<64x32xf32>
    %c0_92 = arith.constant 0 : index
    %c256 = arith.constant 256 : index
    %125 = vector.load %arg11[%c0_92, %c256] : memref<64x288xf32, #tpu.memory_space<vmem>>, vector<64x32xf32>
    tpu.vector_store %arg11[%c0_92, %c256], %124 {strides = array<i32>} : memref<64x288xf32, #tpu.memory_space<vmem>>, vector<64x32xf32>,
    %c0_93 = arith.constant 0 : index
    %c0_94 = arith.constant 0 : index
    %126 = vector.load %arg3[%c0_93, %c0_94] : memref<32x288xf32, #tpu.memory_space<vmem>>, vector<32x288xf32>
    %c0_95 = arith.constant 0 : index
    %c0_96 = arith.constant 0 : index
    %127 = vector.load %arg11[%c0_95, %c0_96] : memref<64x288xf32, #tpu.memory_space<vmem>>, vector<64x288xf32>
    %cst_97 = arith.constant dense<0.000000e+00> : vector<32x64xf32>
    %128 = tpu.matmul %126, %127, %cst_97 {dimension_numbers = #tpu.dot_dimension_numbers<[1], [1], [0], [0], [0, 0, 1, 0], [], []>} : vector<32x288xf32>, vector<64x288xf32>, vector<32x64xf32> -> vector<32x64xf32>
    %c0_98 = arith.constant 0 : index
    %c0_99 = arith.constant 0 : index
    %129 = vector.load %arg5[%c0_98, %c0_99] : memref<32x3xf32, #tpu.memory_space<vmem>>, vector<32x1xf32>
    %130 = vector.broadcast %129 : vector<32x1xf32> to vector<32x64xf32>
    %131 = arith.addf %128, %130 : vector<32x64xf32>
    %132 = vector.shape_cast %131 : vector<32x64xf32> to vector<32x1x64xf32>
    %cst_100 = arith.constant dense<0.000000e+00> : vector<32x1xf32>
    %133 = vector.multi_reduction <add>, %132, %cst_100 [2] : vector<32x1x64xf32> to vector<32x1xf32>
    %134 = vector.shape_cast %133 : vector<32x1xf32> to vector<32x1x1xf32>
    %cst_101 = arith.constant dense<0.000000e+00> : vector<32x1xf32>
    %135 = vector.multi_reduction <add>, %134, %cst_101 [1] : vector<32x1x1xf32> to vector<32x1xf32>
    %136 = vector.shape_cast %135 : vector<32x1xf32> to vector<32x1x1xf32>
    %cst_102 = arith.constant 6.400000e+01 : f32
    %137 = vector.broadcast %cst_102 : f32 to vector<32x1x1xf32>
    %138 = arith.divf %136, %137 : vector<32x1x1xf32>
    %139 = vector.broadcast %138 : vector<32x1x1xf32> to vector<32x1x64xf32>
    %140 = arith.subf %132, %139 : vector<32x1x64xf32>
    %141 = arith.mulf %140, %140 : vector<32x1x64xf32>
    %cst_103 = arith.constant dense<0.000000e+00> : vector<32x1xf32>
    %142 = vector.multi_reduction <add>, %141, %cst_103 [2] : vector<32x1x64xf32> to vector<32x1xf32>
    %143 = vector.shape_cast %142 : vector<32x1xf32> to vector<32x1x1xf32>
    %cst_104 = arith.constant dense<0.000000e+00> : vector<32x1xf32>
    %144 = vector.multi_reduction <add>, %143, %cst_104 [1] : vector<32x1x1xf32> to vector<32x1xf32>
    %145 = vector.shape_cast %144 : vector<32x1xf32> to vector<32x1x1xf32>
    %cst_105 = arith.constant 6.400000e+01 : f32
    %146 = vector.broadcast %cst_105 : f32 to vector<32x1x1xf32>
    %147 = arith.divf %145, %146 : vector<32x1x1xf32>
    %cst_106 = arith.constant 9.99999974E-6 : f32
    %148 = vector.broadcast %cst_106 : f32 to vector<32x1x1xf32>
    %149 = arith.addf %147, %148 : vector<32x1x1xf32>
    %150 = math.rsqrt %149 : vector<32x1x1xf32>
    %151 = vector.broadcast %150 : vector<32x1x1xf32> to vector<32x1x64xf32>
    %152 = arith.mulf %140, %151 : vector<32x1x64xf32>
    %153 = vector.shape_cast %152 : vector<32x1x64xf32> to vector<32x64xf32>
    %c0_107 = arith.constant 0 : index
    %c1_108 = arith.constant 1 : index
    %154 = vector.load %arg5[%c0_107, %c1_108] : memref<32x3xf32, #tpu.memory_space<vmem>>, vector<32x1xf32>
    %155 = vector.broadcast %154 : vector<32x1xf32> to vector<32x64xf32>
    %156 = arith.mulf %153, %155 : vector<32x64xf32>
    %c0_109 = arith.constant 0 : index
    %c2_110 = arith.constant 2 : index
    %157 = vector.load %arg5[%c0_109, %c2_110] : memref<32x3xf32, #tpu.memory_space<vmem>>, vector<32x1xf32>
    %158 = vector.broadcast %157 : vector<32x1xf32> to vector<32x64xf32>
    %159 = arith.addf %156, %158 : vector<32x64xf32>
    %cst_111 = arith.constant 5.000000e-01 : f32
    %160 = vector.broadcast %cst_111 : f32 to vector<32x64xf32>
    %161 = arith.mulf %160, %159 : vector<32x64xf32>
    %cst_112 = arith.constant 0.707106769 : f32
    %162 = vector.broadcast %cst_112 : f32 to vector<32x64xf32>
    %163 = arith.mulf %159, %162 : vector<32x64xf32>
    %164 = math.erf %163 : vector<32x64xf32>
    %cst_113 = arith.constant 1.000000e+00 : f32
    %165 = vector.broadcast %cst_113 : f32 to vector<32x64xf32>
    %166 = arith.addf %165, %164 : vector<32x64xf32>
    %167 = arith.mulf %161, %166 : vector<32x64xf32>
    %c0_114 = arith.constant 0 : index
    %c0_115 = arith.constant 0 : index
    %c0_116 = arith.constant 0 : index
    %168 = vector.load %arg7[%c0_114, %c0_115, %c0_116] : memref<1x32x64xf32, #tpu.memory_space<vmem>>, vector<1x32x64xf32>
    %169 = vector.shape_cast %168 : vector<1x32x64xf32> to vector<32x64xf32>
    %170 = vector.shape_cast %167 : vector<32x64xf32> to vector<1x32x64xf32>
    tpu.vector_store %arg7[%c0_114, %c0_115, %c0_116], %170 {strides = array<i32>} : memref<1x32x64xf32, #tpu.memory_space<vmem>>, vector<1x32x64xf32>,
    return
  }
  func.func @transform_0(%arg0: i32) -> (i32, i32, i32, i32, i32) {
    %c0_i32 = arith.constant 0 : i32
    %c0_i32_0 = arith.constant 0 : i32
    %c0_i32_1 = arith.constant 0 : i32
    %c0_i32_2 = arith.constant 0 : i32
    %c0_i32_3 = arith.constant 0 : i32
    return %arg0, %c0_i32, %c0_i32_0, %c0_i32_1, %c0_i32_2 : i32, i32, i32, i32, i32
  }
  func.func @transform_1(%arg0: i32) -> (i32, i32) {
    %c0_i32 = arith.constant 0 : i32
    %c0_i32_0 = arith.constant 0 : i32
    %c0_i32_1 = arith.constant 0 : i32
    return %c0_i32, %c0_i32_0 : i32, i32
  }
  func.func @transform_2(%arg0: i32) -> (i32, i32) {
    %c0_i32 = arith.constant 0 : i32
    %c0_i32_0 = arith.constant 0 : i32
    %c0_i32_1 = arith.constant 0 : i32
    return %c0_i32, %c0_i32_0 : i32, i32
  }
  func.func @transform_3(%arg0: i32) -> (i32, i32) {
    %c0_i32 = arith.constant 0 : i32
    %c0_i32_0 = arith.constant 0 : i32
    %c0_i32_1 = arith.constant 0 : i32
    return %c0_i32, %c0_i32_0 : i32, i32
  }
  func.func @transform_4(%arg0: i32) -> (i32, i32) {
    %c0_i32 = arith.constant 0 : i32
    %c0_i32_0 = arith.constant 0 : i32
    %c0_i32_1 = arith.constant 0 : i32
    return %c0_i32, %c0_i32_0 : i32, i32
  }
  func.func @transform_5(%arg0: i32) -> (i32, i32) {
    %c0_i32 = arith.constant 0 : i32
    %c0_i32_0 = arith.constant 0 : i32
    %c0_i32_1 = arith.constant 0 : i32
    return %c0_i32, %c0_i32_0 : i32, i32
  }
  func.func @transform_6(%arg0: i32) -> (i32, i32, i32) {
    %c0_i32 = arith.constant 0 : i32
    %c0_i32_0 = arith.constant 0 : i32
    %c0_i32_1 = arith.constant 0 : i32
    return %arg0, %c0_i32, %c0_i32_0 : i32, i32, i32
  }
}

</mosaic_0001>

<llo_original>
// kernel: tpu_custom_call.1
$region0: #{tpu_custom_call.1}
  #allocation0 [shape = 'u32[]', space=smem, size = 0x4, offset = 0x4, fixed_abs, tag = 'smem constant byte address 0x4 - core index']
  #allocation1 [shape = 'u32[144,128]{1,0:T(1,128)}', space=vmem, size = 0x12000, scoped, tag = 'internal scratch']
  #allocation2 [shape = 'f32[10,10,4]{2,1,0:T(8,128)}', space=vmem, size = 0x14000, scoped, tag = 'scratch operand']
  #allocation3 [shape = 'f32[64,36]{1,0:T(8,128)}', space=vmem, size = 0x8000, scoped, tag = 'scratch operand']
  #allocation4 [shape = 'f32[10,10,32]{2,1,0:T(8,128)}', space=vmem, size = 0x14000, scoped, tag = 'scratch operand']
  #allocation5 [shape = 'f32[64,288]{1,0:T(8,128)}', space=vmem, size = 0x18000, scoped, tag = 'scratch operand']
  %s0 = inlined_call_operand.hbm [shape: f32[2,8,2,8,8], index: 0, kind: input, shape index: {}]
  %s1 = inlined_call_operand.vmem [shape: f32[36,32], index: 1, kind: input, shape index: {}]
  %s2 = inlined_call_operand.vmem [shape: f32[32,288], index: 2, kind: input, shape index: {}]
  %s3 = inlined_call_operand.vmem [shape: f32[3,32], index: 3, kind: input, shape index: {}]
  %s4 = inlined_call_operand.vmem [shape: f32[32,3], index: 4, kind: input, shape index: {}]
  %s5 = inlined_call_operand.hbm [shape: f32[32,32], index: 5, kind: input, shape index: {}]
  %s6 = inlined_call_operand.hbm [shape: f32[2,32,64], index: 6, kind: output, shape index: {}]
  %s7 = sld [smem:[#allocation0]]
  $region65: #{tpu_custom_call.1} parent=0
    _
  %s9 = ssub.s32 1, %s7
  %s10 = scalar_select 0, %s9, %s7
  $region1: #{tpu_custom_call.1} parent=0
    #allocation6 [shape = 'u8[131072]{0}', space=vmem, size = 0x20000, scoped, tag = 'input window, operand 0']
    #allocation7 [shape = 's32[2]{0}', space=sflag, size = 0x8, scoped, tag = 'scoped memory for tpu_custom_call.1']
    #allocation8 [shape = 's32[2]{0}', space=sflag, size = 0x8, scoped, tag = 'scoped memory for tpu_custom_call.1']
    #allocation9 [shape = 'u8[16384]{0}', space=vmem, size = 0x4000, scoped, tag = 'input window, operand 5, single buffered']
    #allocation10 [shape = 's32[1]{0}', space=sflag, size = 0x4, scoped, tag = 'scoped memory for tpu_custom_call.1']
    #allocation11 [shape = 'u8[32768]{0}', space=vmem, size = 0x8000, scoped, tag = 'output window, operand 0']
    %11 = vsyncpa [#allocation7], 0
    %s12 = scalar_lea.sflag [#allocation7], 1
    %13 = vsyncpa %s12, 0
    %14 = vsyncpa [#allocation10], 0
    %15 = vsyncpa [#allocation8], 0
    %s16 = scalar_lea.sflag [#allocation8], 1
    %17 = vsyncpa %s16, 0
    loop: start=0, step=1, limit=4
    $region2: #{tpu_custom_call.1} parent=1 // loop_pre_header
      _
    $region3: #{tpu_custom_call.1} parent=1 // loop_header
      %s19 = sphi 0, %s23
      %p20 = scmp.ge.s32.totalorder %s19, 4
      %s29 = sphi 0, %s31
      %s32 = sphi 0, %s29
      %s33 = sphi 0, %s32
      %s49 = sphi 0, %s33
      %s53 = sphi 0, %s53
      %s55 = sphi 0, %s53
      %s56 = sphi 0, %s55
      %s70 = sphi 0, %s56
      %s74 = sphi 0, %s74
      %s76 = sphi 0, %s74
      %s77 = sphi 0, %s76
      %s91 = sphi 0, %s77
      %s95 = sphi 0, %s95
      %s97 = sphi 0, %s95
      %s98 = sphi 0, %s97
      %s112 = sphi 0, %s98
      %s116 = sphi 0, %s116
      %s118 = sphi 0, %s116
      %s119 = sphi 0, %s118
      %s133 = sphi 0, %s119
      %s137 = sphi 0, %s137
      %s139 = sphi 0, %s137
      %s140 = sphi 0, %s139
      %s154 = sphi 0, %s140
      %s160 = sphi 0, %s162
      %s163 = sphi 0, %s160
      %s164 = sphi 0, %s163
      %s180 = sphi 0, %s164
    $region4: #{tpu_custom_call.1} parent=1 // loop_header_branch
      %22 = sbr.rel (%p20) target = $region8
    $region5: #{tpu_custom_call.1} parent=1 // loop_body
      %s24 = ssub.s32 %s19, 1
      %s25 = ssub.s32 %s19, 2
      %s26 = sadd.s32 %s19, 1
      %s27 = ssub.s32 %s19, %s26
      %p28 = scmp.eq.s32.totalorder %s27, 0
      %s30 = sadd.s32 %s29, 1
      %s31 = scalar_select %p28, %s29, %s30
      %p34 = pneg %p28
      %p35 = scmp.eq.s32.totalorder %s19, 1
      %p36 = por %p34, %p35
      %p37 = scmp.ne.s32.totalorder %s29, %s32
      %p38 = scmp.eq.s32.totalorder %s19, 0
      %p39 = por %p37, %p38
      %p40 = scmp.ne.s32.totalorder %s29, %s32
      %p41 = scmp.eq.s32.totalorder %s24, 1
      %p42 = por %p40, %p41
      %p43 = scmp.ne.s32.totalorder %s32, %s33
      %p44 = scmp.eq.s32.totalorder %s24, 0
      %p45 = por %p43, %p44
      %p46 = scmp.ne.s32.totalorder %s32, %s33
      %p47 = scmp.eq.s32.totalorder %s25, 1
      %p48 = por %p46, %p47
      %p50 = scmp.ne.s32.totalorder %s33, %s49
      %p51 = scmp.eq.s32.totalorder %s25, 0
      %p52 = por %p50, %p51
      %s54 = sadd.s32 %s53, 1
      %p57 = scmp.eq.s32.totalorder %s19, 1
      %p58 = scmp.ne.s32.totalorder %s53, %s55
      %p59 = scmp.eq.s32.totalorder %s19, 0
      %p60 = por %p58, %p59
      %p61 = scmp.ne.s32.totalorder %s53, %s55
      %p62 = scmp.eq.s32.totalorder %s24, 1
      %p63 = por %p61, %p62
      %p64 = scmp.ne.s32.totalorder %s55, %s56
      %p65 = scmp.eq.s32.totalorder %s24, 0
      %p66 = por %p64, %p65
      %p67 = scmp.ne.s32.totalorder %s55, %s56
      %p68 = scmp.eq.s32.totalorder %s25, 1
      %p69 = por %p67, %p68
      %p71 = scmp.ne.s32.totalorder %s56, %s70
      %p72 = scmp.eq.s32.totalorder %s25, 0
      %p73 = por %p71, %p72
      %s75 = sadd.s32 %s74, 1
      %p78 = scmp.eq.s32.totalorder %s19, 1
      %p79 = scmp.ne.s32.totalorder %s74, %s76
      %p80 = scmp.eq.s32.totalorder %s19, 0
      %p81 = por %p79, %p80
      %p82 = scmp.ne.s32.totalorder %s74, %s76
      %p83 = scmp.eq.s32.totalorder %s24, 1
      %p84 = por %p82, %p83
      %p85 = scmp.ne.s32.totalorder %s76, %s77
      %p86 = scmp.eq.s32.totalorder %s24, 0
      %p87 = por %p85, %p86
      %p88 = scmp.ne.s32.totalorder %s76, %s77
      %p89 = scmp.eq.s32.totalorder %s25, 1
      %p90 = por %p88, %p89
      %p92 = scmp.ne.s32.totalorder %s77, %s91
      %p93 = scmp.eq.s32.totalorder %s25, 0
      %p94 = por %p92, %p93
      %s96 = sadd.s32 %s95, 1
      %p99 = scmp.eq.s32.totalorder %s19, 1
      %p100 = scmp.ne.s32.totalorder %s95, %s97
      %p101 = scmp.eq.s32.totalorder %s19, 0
      %p102 = por %p100, %p101
      %p103 = scmp.ne.s32.totalorder %s95, %s97
      %p104 = scmp.eq.s32.totalorder %s24, 1
      %p105 = por %p103, %p104
      %p106 = scmp.ne.s32.totalorder %s97, %s98
      %p107 = scmp.eq.s32.totalorder %s24, 0
      %p108 = por %p106, %p107
      %p109 = scmp.ne.s32.totalorder %s97, %s98
      %p110 = scmp.eq.s32.totalorder %s25, 1
      %p111 = por %p109, %p110
      %p113 = scmp.ne.s32.totalorder %s98, %s112
      %p114 = scmp.eq.s32.totalorder %s25, 0
      %p115 = por %p113, %p114
      %s117 = sadd.s32 %s116, 1
      %p120 = scmp.eq.s32.totalorder %s19, 1
      %p121 = scmp.ne.s32.totalorder %s116, %s118
      %p122 = scmp.eq.s32.totalorder %s19, 0
      %p123 = por %p121, %p122
      %p124 = scmp.ne.s32.totalorder %s116, %s118
      %p125 = scmp.eq.s32.totalorder %s24, 1
      %p126 = por %p124, %p125
      %p127 = scmp.ne.s32.totalorder %s118, %s119
      %p128 = scmp.eq.s32.totalorder %s24, 0
      %p129 = por %p127, %p128
      %p130 = scmp.ne.s32.totalorder %s118, %s119
      %p131 = scmp.eq.s32.totalorder %s25, 1
      %p132 = por %p130, %p131
      %p134 = scmp.ne.s32.totalorder %s119, %s133
      %p135 = scmp.eq.s32.totalorder %s25, 0
      %p136 = por %p134, %p135
      %s138 = sadd.s32 %s137, 1
      %p141 = scmp.eq.s32.totalorder %s19, 1
      %p142 = scmp.ne.s32.totalorder %s137, %s139
      %p143 = scmp.eq.s32.totalorder %s19, 0
      %p144 = por %p142, %p143
      %p145 = scmp.ne.s32.totalorder %s137, %s139
      %p146 = scmp.eq.s32.totalorder %s24, 1
      %p147 = por %p145, %p146
      %p148 = scmp.ne.s32.totalorder %s139, %s140
      %p149 = scmp.eq.s32.totalorder %s24, 0
      %p150 = por %p148, %p149
      %p151 = scmp.ne.s32.totalorder %s139, %s140
      %p152 = scmp.eq.s32.totalorder %s25, 1
      %p153 = por %p151, %p152
      %p155 = scmp.ne.s32.totalorder %s140, %s154
      %p156 = scmp.eq.s32.totalorder %s25, 0
      %p157 = por %p155, %p156
      %s158 = ssub.s32 %s19, %s26
      %p159 = scmp.eq.s32.totalorder %s158, 0
      %s161 = sadd.s32 %s160, 1
      %s162 = scalar_select %p159, %s160, %s161
      %p165 = pneg %p159
      %p166 = scmp.eq.s32.totalorder %s19, 1
      %p167 = por %p165, %p166
      %p168 = scmp.ne.s32.totalorder %s160, %s163
      %p169 = scmp.eq.s32.totalorder %s19, 0
      %p170 = por %p168, %p169
      %p171 = scmp.ne.s32.totalorder %s160, %s163
      %p172 = scmp.eq.s32.totalorder %s24, 1
      %p173 = por %p171, %p172
      %p174 = scmp.ne.s32.totalorder %s163, %s164
      %p175 = scmp.eq.s32.totalorder %s24, 0
      %p176 = por %p174, %p175
      %p177 = scmp.ne.s32.totalorder %s163, %s164
      %p178 = scmp.eq.s32.totalorder %s25, 1
      %p179 = por %p177, %p178
      %p181 = scmp.ne.s32.totalorder %s164, %s180
      %p182 = scmp.eq.s32.totalorder %s25, 0
      %p183 = por %p181, %p182
      %p184 = scmp.le.s32.totalorder 1, %s19
      %p185 = scmp.lt.s32.totalorder %s19, 3
      %p186 = pnand %p184, %p185
      %p187 = pneg %p186
      // Predicated region
      $region9: #{tpu_custom_call.1} parent=5 // pred_check
        _
      $region10: #{tpu_custom_call.1} parent=5 // pred_check_branch
        %189 = sbr.rel (%p186) target = $region12
      $region11: #{tpu_custom_call.1} parent=5 // pred_region
        %s190 = ssub.s32 %s19, 1
        // Predicated region
        $region13: #{tpu_custom_call.1} parent=11 // pred_check
          %p191 = pneg %p66
        $region14: #{tpu_custom_call.1} parent=11 // pred_check_branch
          %193 = sbr.rel (%p191) target = $region16
        $region15: #{tpu_custom_call.1} parent=11 // pred_region
          _
        $region16: #{tpu_custom_call.1} parent=11 // pred_fallthru
          _
        // Predicated region
        $region17: #{tpu_custom_call.1} parent=11 // pred_check
          %p194 = pneg %p87
        $region18: #{tpu_custom_call.1} parent=11 // pred_check_branch
          %196 = sbr.rel (%p194) target = $region20
        $region19: #{tpu_custom_call.1} parent=11 // pred_region
          _
        $region20: #{tpu_custom_call.1} parent=11 // pred_fallthru
          _
        // Predicated region
        $region21: #{tpu_custom_call.1} parent=11 // pred_check
          %p197 = pneg %p108
        $region22: #{tpu_custom_call.1} parent=11 // pred_check_branch
          %199 = sbr.rel (%p197) target = $region24
        $region23: #{tpu_custom_call.1} parent=11 // pred_region
          _
        $region24: #{tpu_custom_call.1} parent=11 // pred_fallthru
          _
        // Predicated region
        $region25: #{tpu_custom_call.1} parent=11 // pred_check
          %p200 = pneg %p129
        $region26: #{tpu_custom_call.1} parent=11 // pred_check_branch
          %202 = sbr.rel (%p200) target = $region28
        $region27: #{tpu_custom_call.1} parent=11 // pred_region
          _
        $region28: #{tpu_custom_call.1} parent=11 // pred_fallthru
          _
        // Predicated region
        $region29: #{tpu_custom_call.1} parent=11 // pred_check
          %p203 = pneg %p150
        $region30: #{tpu_custom_call.1} parent=11 // pred_check_branch
          %205 = sbr.rel (%p203) target = $region32
        $region31: #{tpu_custom_call.1} parent=11 // pred_region
          %s207 = ssub.s32 512, 512
          %208 = vsyncadd [#allocation10], %s207
          %s209 = sshll.u32 [#allocation9], 4
          %s210 = int_to_ptr.vmem [resolvable:$true] %s209
          %215 = dma.hbm_to_vmem [thread:$0]  %s5, 512, %s210, [#allocation10], 128, 128, 8
        $region32: #{tpu_custom_call.1} parent=11 // pred_fallthru
          _
      $region12: #{tpu_custom_call.1} parent=5 // pred_fallthru
        _
      %p216 = scmp.lt.s32.totalorder %s19, 2
      // Predicated region
      $region33: #{tpu_custom_call.1} parent=5 // pred_check
        %p217 = pneg %p216
      $region34: #{tpu_custom_call.1} parent=5 // pred_check_branch
        %219 = sbr.rel (%p217) target = $region36
      $region35: #{tpu_custom_call.1} parent=5 // pred_region
        // Predicated region
        $region37: #{tpu_custom_call.1} parent=35 // pred_check
          %p220 = pneg %p39
        $region38: #{tpu_custom_call.1} parent=35 // pred_check_branch
          %222 = sbr.rel (%p220) target = $region40
        $region39: #{tpu_custom_call.1} parent=35 // pred_region
          %s223 = sand.u32 %s29, 1
          %s224 = scalar_lea.sflag [#allocation7], %s223
          %s225 = sand.u32 %s29, 1
          %s226 = smul.addr %s225, 128
          %s227 = scalar_lea.vmem [#allocation6], %s226
          %s229 = ssub.s32 2048, 2048
          %230 = vsyncadd %s224, %s229
          %s231 = smul.addr %s19, 16
          %s232 = smul.addr %s231, 128
          %s233 = scalar_lea.hbm %s0, %s232
          %s234 = sshll.u32 %s227, 4
          %s235 = int_to_ptr.vmem [resolvable:$true] %s234
          %240 = dma.hbm_to_vmem [thread:$0]  %s233, 2048, %s235, %s224, 128, 128, 8
        $region40: #{tpu_custom_call.1} parent=35 // pred_fallthru
          _
      $region36: #{tpu_custom_call.1} parent=5 // pred_fallthru
        _
      %p241 = scmp.le.s32.totalorder 1, %s19
      %p242 = scmp.lt.s32.totalorder %s19, 3
      %p243 = pnand %p241, %p242
      %p244 = pneg %p243
      // Predicated region
      $region41: #{tpu_custom_call.1} parent=5 // pred_check
        _
      $region42: #{tpu_custom_call.1} parent=5 // pred_check_branch
        %246 = sbr.rel (%p243) target = $region44
      $region43: #{tpu_custom_call.1} parent=5 // pred_region
        %s247 = ssub.s32 %s19, 1
        %s248 = sand.u32 %s32, 1
        %s249 = scalar_lea.sflag [#allocation7], %s248
        %s250 = sand.u32 %s32, 1
        %s251 = smul.addr %s250, 128
        %s252 = scalar_lea.vmem [#allocation6], %s251
        // Predicated region
        $region45: #{tpu_custom_call.1} parent=43 // pred_check
          %p253 = pneg %p45
        $region46: #{tpu_custom_call.1} parent=43 // pred_check_branch
          %255 = sbr.rel (%p253) target = $region48
        $region47: #{tpu_custom_call.1} parent=43 // pred_region
          %256 = dma.done %s249, 2048
        $region48: #{tpu_custom_call.1} parent=43 // pred_fallthru
          _
        // Predicated region
        $region49: #{tpu_custom_call.1} parent=43 // pred_check
          %p257 = pneg %p150
        $region50: #{tpu_custom_call.1} parent=43 // pred_check_branch
          %259 = sbr.rel (%p257) target = $region52
        $region51: #{tpu_custom_call.1} parent=43 // pred_region
          %260 = dma.done [#allocation10], 512
        $region52: #{tpu_custom_call.1} parent=43 // pred_fallthru
          _
        %s261 = sand.u32 %s32, 1
        %s262 = scalar_lea.sflag [#allocation7], %s261
        %s263 = sand.u32 %s32, 1
        %s264 = smul.addr %s263, 128
        %s265 = scalar_lea.vmem [#allocation6], %s264
        %p266 = pneg %p45
        %p267 = pneg %p42
        %p268 = pneg %p66
        %p269 = pneg %p63
        %p270 = pneg %p87
        %p271 = pneg %p84
        %p272 = pneg %p108
        %p273 = pneg %p105
        %p274 = pneg %p129
        %p275 = pneg %p126
        %p276 = pneg %p150
        %p277 = pneg %p147
        %p278 = pneg %p176
        %p279 = pneg %p173
        %s280 = sand.u32 %s163, 1
        %s281 = scalar_lea.sflag [#allocation8], %s280
        %s282 = sand.u32 %s163, 1
        %s283 = smul.addr %s282, 32
        %s284 = scalar_lea.vmem [#allocation11], %s283
        %v285 = vld [vmem:[%s252] sm:$0xff]
        %v286 = vld [vmem:[%s252 + $0x8] sm:$0xff]
        %v287 = vld [vmem:[%s252 + $0x10] sm:$0xff]
        %v288 = vld [vmem:[%s252 + $0x18] sm:$0xff]
        %v289 = vld [vmem:[%s252 + $0x20] sm:$0xff]
        %v290 = vld [vmem:[%s252 + $0x28] sm:$0xff]
        %v291 = vld [vmem:[%s252 + $0x30] sm:$0xff]
        %v292 = vld [vmem:[%s252 + $0x38] sm:$0xff]
        %v293 = vld [vmem:[%s252 + $0x40] sm:$0xff]
        %v294 = vld [vmem:[%s252 + $0x48] sm:$0xff]
        %v295 = vld [vmem:[%s252 + $0x50] sm:$0xff]
        %v296 = vld [vmem:[%s252 + $0x58] sm:$0xff]
        %v297 = vld [vmem:[%s252 + $0x60] sm:$0xff]
        %v298 = vld [vmem:[%s252 + $0x68] sm:$0xff]
        %v299 = vld [vmem:[%s252 + $0x70] sm:$0xff]
        %v300 = vld [vmem:[%s252 + $0x78] sm:$0xff]
        %317 = vrot.lane.b32.xlu0 %v285, 124
        %v318 = vpop.permute.xlu0 %317
        %319 = vrot.lane.b32.xlu0 %v286, 124
        %v320 = vpop.permute.xlu0 %319
        %321 = vrot.lane.b32.xlu0 %v287, 124
        %v322 = vpop.permute.xlu0 %321
        %323 = vrot.lane.b32.xlu0 %v288, 124
        %v324 = vpop.permute.xlu0 %323
        %325 = vrot.lane.b32.xlu0 %v289, 124
        %v326 = vpop.permute.xlu0 %325
        %327 = vrot.lane.b32.xlu0 %v290, 124
        %v328 = vpop.permute.xlu0 %327
        %329 = vrot.lane.b32.xlu0 %v291, 124
        %v330 = vpop.permute.xlu0 %329
        %331 = vrot.lane.b32.xlu0 %v292, 124
        %v332 = vpop.permute.xlu0 %331
        %333 = vrot.lane.b32.xlu0 %v293, 124
        %v334 = vpop.permute.xlu0 %333
        %335 = vrot.lane.b32.xlu0 %v294, 124
        %v336 = vpop.permute.xlu0 %335
        %337 = vrot.lane.b32.xlu0 %v295, 124
        %v338 = vpop.permute.xlu0 %337
        %339 = vrot.lane.b32.xlu0 %v296, 124
        %v340 = vpop.permute.xlu0 %339
        %341 = vrot.lane.b32.xlu0 %v297, 124
        %v342 = vpop.permute.xlu0 %341
        %343 = vrot.lane.b32.xlu0 %v298, 124
        %v344 = vpop.permute.xlu0 %343
        %345 = vrot.lane.b32.xlu0 %v299, 124
        %v346 = vpop.permute.xlu0 %345
        %347 = vrot.lane.b32.xlu0 %v300, 124
        %v348 = vpop.permute.xlu0 %347
        %v365 = vmax.f32 %v285, %v318
        %v366 = vmax.f32 %v286, %v320
        %v367 = vmax.f32 %v287, %v322
        %v368 = vmax.f32 %v288, %v324
        %v369 = vmax.f32 %v289, %v326
        %v370 = vmax.f32 %v290, %v328
        %v371 = vmax.f32 %v291, %v330
        %v372 = vmax.f32 %v292, %v332
        %v373 = vmax.f32 %v293, %v334
        %v374 = vmax.f32 %v294, %v336
        %v375 = vmax.f32 %v295, %v338
        %v376 = vmax.f32 %v296, %v340
        %v377 = vmax.f32 %v297, %v342
        %v378 = vmax.f32 %v298, %v344
        %v379 = vmax.f32 %v299, %v346
        %v380 = vmax.f32 %v300, %v348
        %v381 = vmax.f32 %v365, %v366
        %v382 = vmax.f32 %v367, %v368
        %v383 = vmax.f32 %v369, %v370
        %v384 = vmax.f32 %v371, %v372
        %v385 = vmax.f32 %v373, %v374
        %v386 = vmax.f32 %v375, %v376
        %v387 = vmax.f32 %v377, %v378
        %v388 = vmax.f32 %v379, %v380
        %s389 = scalar_lea.vmem [#allocation2], 16
        %vm390 = vcmask 31744
        %391 = vst.msk [vmem:[%s389 + $0x1] sm:$0xff] %vm390, %v381
        %392 = vst.msk [vmem:[%s389 + $0x11] sm:$0xff] %vm390, %v382
        %393 = vst.msk [vmem:[%s389 + $0x21] sm:$0xff] %vm390, %v383
        %394 = vst.msk [vmem:[%s389 + $0x31] sm:$0xff] %vm390, %v384
        %395 = vst.msk [vmem:[%s389 + $0x41] sm:$0xff] %vm390, %v385
        %396 = vst.msk [vmem:[%s389 + $0x51] sm:$0xff] %vm390, %v386
        %397 = vst.msk [vmem:[%s389 + $0x61] sm:$0xff] %vm390, %v387
        %398 = vst.msk [vmem:[%s389 + $0x71] sm:$0xff] %vm390, %v388
        %vm399 = vcmask 25601
        %400 = vst.msk [vmem:[%s389 - $0x1] sm:$0x2] %vm399, %v381
        %401 = vst.msk [vmem:[%s389 + $0xf] sm:$0x2] %vm399, %v382
        %402 = vst.msk [vmem:[%s389 + $0x1f] sm:$0x2] %vm399, %v383
        %403 = vst.msk [vmem:[%s389 + $0x2f] sm:$0x2] %vm399, %v384
        %404 = vst.msk [vmem:[%s389 + $0x3f] sm:$0x2] %vm399, %v385
        %405 = vst.msk [vmem:[%s389 + $0x4f] sm:$0x2] %vm399, %v386
        %406 = vst.msk [vmem:[%s389 + $0x5f] sm:$0x2] %vm399, %v387
        %407 = vst.msk [vmem:[%s389 + $0x6f] sm:$0x2] %vm399, %v388
        %vm408 = vcmask 30726
        %409 = vst.msk [vmem:[%s389 + $0x3] sm:$0x40] %vm408, %v381
        %410 = vst.msk [vmem:[%s389 + $0x13] sm:$0x40] %vm408, %v382
        %411 = vst.msk [vmem:[%s389 + $0x23] sm:$0x40] %vm408, %v383
        %412 = vst.msk [vmem:[%s389 + $0x33] sm:$0x40] %vm408, %v384
        %413 = vst.msk [vmem:[%s389 + $0x43] sm:$0x40] %vm408, %v385
        %414 = vst.msk [vmem:[%s389 + $0x53] sm:$0x40] %vm408, %v386
        %415 = vst.msk [vmem:[%s389 + $0x63] sm:$0x40] %vm408, %v387
        %416 = vst.msk [vmem:[%s389 + $0x73] sm:$0x40] %vm408, %v388
        %s417 = scalar_lea.vmem [#allocation2], 32
        %v418 = vld [vmem:[%s417] sm:$0xff]
        %v419 = vld [vmem:[%s417 + $0x8] sm:$0x3]
        %420 = vst.msk [vmem:[#allocation2] sm:$0xff] %vm390, %v418
        %vm421 = vcmask 25600
        %422 = vst.msk [vmem:[#allocation2 + $0x8] sm:$0x3] %vm421, %v419
        %s423 = scalar_lea.vmem [#allocation2], 112
        %v424 = vld [vmem:[%s423] sm:$0xff]
        %v425 = vld [vmem:[%s423 + $0x8] sm:$0x3]
        %s426 = scalar_lea.vmem [#allocation2], 144
        %427 = vst.msk [vmem:[%s426] sm:$0xff] %vm390, %v424
        %428 = vst.msk [vmem:[%s426 + $0x8] sm:$0x3] %vm421, %v425
        %v429 = vld [vmem:[#allocation2] sm:$0xff]
        %v430 = vld [vmem:[#allocation2 + $0x8] sm:$0x3]
        %v431 = vld [vmem:[#allocation2 + $0x10] sm:$0xff]
        %v432 = vld [vmem:[#allocation2 + $0x18] sm:$0x3]
        %v433 = vld [vmem:[#allocation2 + $0x20] sm:$0xff]
        %v434 = vld [vmem:[#allocation2 + $0x28] sm:$0x3]
        %v435 = vld [vmem:[#allocation2 + $0x30] sm:$0xff]
        %v436 = vld [vmem:[#allocation2 + $0x38] sm:$0x3]
        %v437 = vld [vmem:[#allocation2 + $0x40] sm:$0xff]
        %v438 = vld [vmem:[#allocation2 + $0x48] sm:$0x3]
        %v439 = vld [vmem:[#allocation2 + $0x50] sm:$0xff]
        %v440 = vld [vmem:[#allocation2 + $0x58] sm:$0x3]
        %v441 = vld [vmem:[#allocation2 + $0x60] sm:$0xff]
        %v442 = vld [vmem:[#allocation2 + $0x68] sm:$0x3]
        %v443 = vld [vmem:[#allocation2 + $0x70] sm:$0xff]
        %v444 = vld [vmem:[#allocation2 + $0x78] sm:$0x3]
        %v445 = vld [vmem:[#allocation2 + $0x80] sm:$0xff]
        %v446 = vld [vmem:[#allocation2 + $0x88] sm:$0x3]
        %v447 = vld [vmem:[#allocation2 + $0x90] sm:$0xff]
        %v448 = vld [vmem:[#allocation2 + $0x98] sm:$0x3]
        %449 = vst.msk [vmem:[#allocation3] sm:$0xff] %vm390, %v429
        %450 = vst.msk [vmem:[#allocation3 + $0x8] sm:$0xff] %vm390, %v431
        %451 = vst.msk [vmem:[#allocation3 + $0x10] sm:$0xff] %vm390, %v433
        %452 = vst.msk [vmem:[#allocation3 + $0x18] sm:$0xff] %vm390, %v435
        %453 = vst.msk [vmem:[#allocation3 + $0x20] sm:$0xff] %vm390, %v437
        %454 = vst.msk [vmem:[#allocation3 + $0x28] sm:$0xff] %vm390, %v439
        %455 = vst.msk [vmem:[#allocation3 + $0x30] sm:$0xff] %vm390, %v441
        %456 = vst.msk [vmem:[#allocation3 + $0x38] sm:$0xff] %vm390, %v443
        %vm473 = vcmask 1046528
        %v474 = vrot.slane %v429, 1
        %v475 = vrot.slane %v430, 1
        %v476 = vsel %vm473, %v474, %v475
        %v477 = vrot.slane %v431, 1
        %v478 = vrot.slane %v432, 1
        %v479 = vsel %vm473, %v477, %v478
        %v480 = vrot.slane %v433, 1
        %v481 = vrot.slane %v434, 1
        %v482 = vsel %vm473, %v480, %v481
        %v483 = vrot.slane %v435, 1
        %v484 = vrot.slane %v436, 1
        %v485 = vsel %vm473, %v483, %v484
        %v486 = vrot.slane %v437, 1
        %v487 = vrot.slane %v438, 1
        %v488 = vsel %vm473, %v486, %v487
        %v489 = vrot.slane %v439, 1
        %v490 = vrot.slane %v440, 1
        %v491 = vsel %vm473, %v489, %v490
        %v492 = vrot.slane %v441, 1
        %v493 = vrot.slane %v442, 1
        %v494 = vsel %vm473, %v492, %v493
        %v495 = vrot.slane %v443, 1
        %v496 = vrot.slane %v444, 1
        %v497 = vsel %vm473, %v495, %v496
        %498 = vrot.lane.b32.xlu0 %v476, 4
        %v499 = vpop.permute.xlu0 %498
        %500 = vrot.lane.b32.xlu0 %v479, 4
        %v501 = vpop.permute.xlu0 %500
        %502 = vrot.lane.b32.xlu0 %v482, 4
        %v503 = vpop.permute.xlu0 %502
        %504 = vrot.lane.b32.xlu0 %v485, 4
        %v505 = vpop.permute.xlu0 %504
        %506 = vrot.lane.b32.xlu0 %v488, 4
        %v507 = vpop.permute.xlu0 %506
        %508 = vrot.lane.b32.xlu0 %v491, 4
        %v509 = vpop.permute.xlu0 %508
        %510 = vrot.lane.b32.xlu0 %v494, 4
        %v511 = vpop.permute.xlu0 %510
        %512 = vrot.lane.b32.xlu0 %v497, 4
        %v513 = vpop.permute.xlu0 %512
        %vm522 = vcmask 64544
        %523 = vst.msk [vmem:[#allocation3] sm:$0xff] %vm522, %v499
        %524 = vst.msk [vmem:[#allocation3 + $0x8] sm:$0xff] %vm522, %v501
        %525 = vst.msk [vmem:[#allocation3 + $0x10] sm:$0xff] %vm522, %v503
        %526 = vst.msk [vmem:[#allocation3 + $0x18] sm:$0xff] %vm522, %v505
        %527 = vst.msk [vmem:[#allocation3 + $0x20] sm:$0xff] %vm522, %v507
        %528 = vst.msk [vmem:[#allocation3 + $0x28] sm:$0xff] %vm522, %v509
        %529 = vst.msk [vmem:[#allocation3 + $0x30] sm:$0xff] %vm522, %v511
        %530 = vst.msk [vmem:[#allocation3 + $0x38] sm:$0xff] %vm522, %v513
        %vm531 = vcmask 1045504
        %v532 = vrot.slane %v429, 2
        %v533 = vrot.slane %v430, 2
        %v534 = vsel %vm531, %v532, %v533
        %v535 = vrot.slane %v431, 2
        %v536 = vrot.slane %v432, 2
        %v537 = vsel %vm531, %v535, %v536
        %v538 = vrot.slane %v433, 2
        %v539 = vrot.slane %v434, 2
        %v540 = vsel %vm531, %v538, %v539
        %v541 = vrot.slane %v435, 2
        %v542 = vrot.slane %v436, 2
        %v543 = vsel %vm531, %v541, %v542
        %v544 = vrot.slane %v437, 2
        %v545 = vrot.slane %v438, 2
        %v546 = vsel %vm531, %v544, %v545
        %v547 = vrot.slane %v439, 2
        %v548 = vrot.slane %v440, 2
        %v549 = vsel %vm531, %v547, %v548
        %v550 = vrot.slane %v441, 2
        %v551 = vrot.slane %v442, 2
        %v552 = vsel %vm531, %v550, %v551
        %v553 = vrot.slane %v443, 2
        %v554 = vrot.slane %v444, 2
        %v555 = vsel %vm531, %v553, %v554
        %556 = vrot.lane.b32.xlu0 %v534, 8
        %v557 = vpop.permute.xlu0 %556
        %558 = vrot.lane.b32.xlu0 %v537, 8
        %v559 = vpop.permute.xlu0 %558
        %560 = vrot.lane.b32.xlu0 %v540, 8
        %v561 = vpop.permute.xlu0 %560
        %562 = vrot.lane.b32.xlu0 %v543, 8
        %v563 = vpop.permute.xlu0 %562
        %564 = vrot.lane.b32.xlu0 %v546, 8
        %v565 = vpop.permute.xlu0 %564
        %566 = vrot.lane.b32.xlu0 %v549, 8
        %v567 = vpop.permute.xlu0 %566
        %568 = vrot.lane.b32.xlu0 %v552, 8
        %v569 = vpop.permute.xlu0 %568
        %570 = vrot.lane.b32.xlu0 %v555, 8
        %v571 = vpop.permute.xlu0 %570
        %vm580 = vcmask 97344
        %581 = vst.msk [vmem:[#allocation3] sm:$0xff] %vm580, %v557
        %582 = vst.msk [vmem:[#allocation3 + $0x8] sm:$0xff] %vm580, %v559
        %583 = vst.msk [vmem:[#allocation3 + $0x10] sm:$0xff] %vm580, %v561
        %584 = vst.msk [vmem:[#allocation3 + $0x18] sm:$0xff] %vm580, %v563
        %585 = vst.msk [vmem:[#allocation3 + $0x20] sm:$0xff] %vm580, %v565
        %586 = vst.msk [vmem:[#allocation3 + $0x28] sm:$0xff] %vm580, %v567
        %587 = vst.msk [vmem:[#allocation3 + $0x30] sm:$0xff] %vm580, %v569
        %588 = vst.msk [vmem:[#allocation3 + $0x38] sm:$0xff] %vm580, %v571
        %590 = vrot.lane.b32.xlu0 %v431, 12
        %v591 = vpop.permute.xlu0 %590
        %592 = vrot.lane.b32.xlu0 %v433, 12
        %v593 = vpop.permute.xlu0 %592
        %594 = vrot.lane.b32.xlu0 %v435, 12
        %v595 = vpop.permute.xlu0 %594
        %596 = vrot.lane.b32.xlu0 %v437, 12
        %v597 = vpop.permute.xlu0 %596
        %598 = vrot.lane.b32.xlu0 %v439, 12
        %v599 = vpop.permute.xlu0 %598
        %600 = vrot.lane.b32.xlu0 %v441, 12
        %v601 = vpop.permute.xlu0 %600
        %602 = vrot.lane.b32.xlu0 %v443, 12
        %v603 = vpop.permute.xlu0 %602
        %604 = vrot.lane.b32.xlu0 %v445, 12
        %v605 = vpop.permute.xlu0 %604
        %vm614 = vcmask 130144
        %615 = vst.msk [vmem:[#allocation3] sm:$0xff] %vm614, %v591
        %616 = vst.msk [vmem:[#allocation3 + $0x8] sm:$0xff] %vm614, %v593
        %617 = vst.msk [vmem:[#allocation3 + $0x10] sm:$0xff] %vm614, %v595
        %618 = vst.msk [vmem:[#allocation3 + $0x18] sm:$0xff] %vm614, %v597
        %619 = vst.msk [vmem:[#allocation3 + $0x20] sm:$0xff] %vm614, %v599
        %620 = vst.msk [vmem:[#allocation3 + $0x28] sm:$0xff] %vm614, %v601
        %621 = vst.msk [vmem:[#allocation3 + $0x30] sm:$0xff] %vm614, %v603
        %622 = vst.msk [vmem:[#allocation3 + $0x38] sm:$0xff] %vm614, %v605
        %v624 = vrot.slane %v445, 1
        %v625 = vrot.slane %v446, 1
        %v626 = vsel %vm473, %v624, %v625
        %627 = vrot.lane.b32.xlu0 %v479, 16
        %v628 = vpop.permute.xlu0 %627
        %629 = vrot.lane.b32.xlu0 %v482, 16
        %v630 = vpop.permute.xlu0 %629
        %631 = vrot.lane.b32.xlu0 %v485, 16
        %v632 = vpop.permute.xlu0 %631
        %633 = vrot.lane.b32.xlu0 %v488, 16
        %v634 = vpop.permute.xlu0 %633
        %635 = vrot.lane.b32.xlu0 %v491, 16
        %v636 = vpop.permute.xlu0 %635
        %637 = vrot.lane.b32.xlu0 %v494, 16
        %v638 = vpop.permute.xlu0 %637
        %639 = vrot.lane.b32.xlu0 %v497, 16
        %v640 = vpop.permute.xlu0 %639
        %641 = vrot.lane.b32.xlu0 %v626, 16
        %v642 = vpop.permute.xlu0 %641
        %vm651 = vcmask 162944
        %652 = vst.msk [vmem:[#allocation3] sm:$0xff] %vm651, %v628
        %653 = vst.msk [vmem:[#allocation3 + $0x8] sm:$0xff] %vm651, %v630
        %654 = vst.msk [vmem:[#allocation3 + $0x10] sm:$0xff] %vm651, %v632
        %655 = vst.msk [vmem:[#allocation3 + $0x18] sm:$0xff] %vm651, %v634
        %656 = vst.msk [vmem:[#allocation3 + $0x20] sm:$0xff] %vm651, %v636
        %657 = vst.msk [vmem:[#allocation3 + $0x28] sm:$0xff] %vm651, %v638
        %658 = vst.msk [vmem:[#allocation3 + $0x30] sm:$0xff] %vm651, %v640
        %659 = vst.msk [vmem:[#allocation3 + $0x38] sm:$0xff] %vm651, %v642
        %v660 = vrot.slane %v445, 2
        %v661 = vrot.slane %v446, 2
        %v662 = vsel %vm531, %v660, %v661
        %663 = vrot.lane.b32.xlu0 %v537, 20
        %v664 = vpop.permute.xlu0 %663
        %665 = vrot.lane.b32.xlu0 %v540, 20
        %v666 = vpop.permute.xlu0 %665
        %667 = vrot.lane.b32.xlu0 %v543, 20
        %v668 = vpop.permute.xlu0 %667
        %669 = vrot.lane.b32.xlu0 %v546, 20
        %v670 = vpop.permute.xlu0 %669
        %671 = vrot.lane.b32.xlu0 %v549, 20
        %v672 = vpop.permute.xlu0 %671
        %673 = vrot.lane.b32.xlu0 %v552, 20
        %v674 = vpop.permute.xlu0 %673
        %675 = vrot.lane.b32.xlu0 %v555, 20
        %v676 = vpop.permute.xlu0 %675
        %677 = vrot.lane.b32.xlu0 %v662, 20
        %v678 = vpop.permute.xlu0 %677
        %vm687 = vcmask 195744
        %688 = vst.msk [vmem:[#allocation3] sm:$0xff] %vm687, %v664
        %689 = vst.msk [vmem:[#allocation3 + $0x8] sm:$0xff] %vm687, %v666
        %690 = vst.msk [vmem:[#allocation3 + $0x10] sm:$0xff] %vm687, %v668
        %691 = vst.msk [vmem:[#allocation3 + $0x18] sm:$0xff] %vm687, %v670
        %692 = vst.msk [vmem:[#allocation3 + $0x20] sm:$0xff] %vm687, %v672
        %693 = vst.msk [vmem:[#allocation3 + $0x28] sm:$0xff] %vm687, %v674
        %694 = vst.msk [vmem:[#allocation3 + $0x30] sm:$0xff] %vm687, %v676
        %695 = vst.msk [vmem:[#allocation3 + $0x38] sm:$0xff] %vm687, %v678
        %697 = vrot.lane.b32.xlu0 %v433, 24
        %v698 = vpop.permute.xlu0 %697
        %699 = vrot.lane.b32.xlu0 %v435, 24
        %v700 = vpop.permute.xlu0 %699
        %701 = vrot.lane.b32.xlu0 %v437, 24
        %v702 = vpop.permute.xlu0 %701
        %703 = vrot.lane.b32.xlu0 %v439, 24
        %v704 = vpop.permute.xlu0 %703
        %705 = vrot.lane.b32.xlu0 %v441, 24
        %v706 = vpop.permute.xlu0 %705
        %707 = vrot.lane.b32.xlu0 %v443, 24
        %v708 = vpop.permute.xlu0 %707
        %709 = vrot.lane.b32.xlu0 %v445, 24
        %v710 = vpop.permute.xlu0 %709
        %711 = vrot.lane.b32.xlu0 %v447, 24
        %v712 = vpop.permute.xlu0 %711
        %vm721 = vcmask 228544
        %722 = vst.msk [vmem:[#allocation3] sm:$0xff] %vm721, %v698
        %723 = vst.msk [vmem:[#allocation3 + $0x8] sm:$0xff] %vm721, %v700
        %724 = vst.msk [vmem:[#allocation3 + $0x10] sm:$0xff] %vm721, %v702
        %725 = vst.msk [vmem:[#allocation3 + $0x18] sm:$0xff] %vm721, %v704
        %726 = vst.msk [vmem:[#allocation3 + $0x20] sm:$0xff] %vm721, %v706
        %727 = vst.msk [vmem:[#allocation3 + $0x28] sm:$0xff] %vm721, %v708
        %728 = vst.msk [vmem:[#allocation3 + $0x30] sm:$0xff] %vm721, %v710
        %729 = vst.msk [vmem:[#allocation3 + $0x38] sm:$0xff] %vm721, %v712
        %v731 = vrot.slane %v447, 1
        %v732 = vrot.slane %v448, 1
        %v733 = vsel %vm473, %v731, %v732
        %734 = vrot.lane.b32.xlu0 %v482, 28
        %v735 = vpop.permute.xlu0 %734
        %736 = vrot.lane.b32.xlu0 %v485, 28
        %v737 = vpop.permute.xlu0 %736
        %738 = vrot.lane.b32.xlu0 %v488, 28
        %v739 = vpop.permute.xlu0 %738
        %740 = vrot.lane.b32.xlu0 %v491, 28
        %v741 = vpop.permute.xlu0 %740
        %742 = vrot.lane.b32.xlu0 %v494, 28
        %v743 = vpop.permute.xlu0 %742
        %744 = vrot.lane.b32.xlu0 %v497, 28
        %v745 = vpop.permute.xlu0 %744
        %746 = vrot.lane.b32.xlu0 %v626, 28
        %v747 = vpop.permute.xlu0 %746
        %748 = vrot.lane.b32.xlu0 %v733, 28
        %v749 = vpop.permute.xlu0 %748
        %vm758 = vcmask 261344
        %759 = vst.msk [vmem:[#allocation3] sm:$0xff] %vm758, %v735
        %760 = vst.msk [vmem:[#allocation3 + $0x8] sm:$0xff] %vm758, %v737
        %761 = vst.msk [vmem:[#allocation3 + $0x10] sm:$0xff] %vm758, %v739
        %762 = vst.msk [vmem:[#allocation3 + $0x18] sm:$0xff] %vm758, %v741
        %763 = vst.msk [vmem:[#allocation3 + $0x20] sm:$0xff] %vm758, %v743
        %764 = vst.msk [vmem:[#allocation3 + $0x28] sm:$0xff] %vm758, %v745
        %765 = vst.msk [vmem:[#allocation3 + $0x30] sm:$0xff] %vm758, %v747
        %766 = vst.msk [vmem:[#allocation3 + $0x38] sm:$0xff] %vm758, %v749
        %v767 = vrot.slane %v447, 2
        %v768 = vrot.slane %v448, 2
        %v769 = vsel %vm531, %v767, %v768
        %770 = vrot.lane.b32.xlu0 %v540, 32
        %v771 = vpop.permute.xlu0 %770
        %772 = vrot.lane.b32.xlu0 %v543, 32
        %v773 = vpop.permute.xlu0 %772
        %774 = vrot.lane.b32.xlu0 %v546, 32
        %v775 = vpop.permute.xlu0 %774
        %776 = vrot.lane.b32.xlu0 %v549, 32
        %v777 = vpop.permute.xlu0 %776
        %778 = vrot.lane.b32.xlu0 %v552, 32
        %v779 = vpop.permute.xlu0 %778
        %780 = vrot.lane.b32.xlu0 %v555, 32
        %v781 = vpop.permute.xlu0 %780
        %782 = vrot.lane.b32.xlu0 %v662, 32
        %v783 = vpop.permute.xlu0 %782
        %784 = vrot.lane.b32.xlu0 %v769, 32
        %v785 = vpop.permute.xlu0 %784
        %vm794 = vcmask 294144
        %795 = vst.msk [vmem:[#allocation3] sm:$0xff] %vm794, %v771
        %796 = vst.msk [vmem:[#allocation3 + $0x8] sm:$0xff] %vm794, %v773
        %797 = vst.msk [vmem:[#allocation3 + $0x10] sm:$0xff] %vm794, %v775
        %798 = vst.msk [vmem:[#allocation3 + $0x18] sm:$0xff] %vm794, %v777
        %799 = vst.msk [vmem:[#allocation3 + $0x20] sm:$0xff] %vm794, %v779
        %800 = vst.msk [vmem:[#allocation3 + $0x28] sm:$0xff] %vm794, %v781
        %801 = vst.msk [vmem:[#allocation3 + $0x30] sm:$0xff] %vm794, %v783
        %802 = vst.msk [vmem:[#allocation3 + $0x38] sm:$0xff] %vm794, %v785
        %v803 = vld [vmem:[#allocation3] sm:$0xff]
        %v804 = vld [vmem:[#allocation3 + $0x8] sm:$0xff]
        %v805 = vld [vmem:[#allocation3 + $0x10] sm:$0xff]
        %v806 = vld [vmem:[#allocation3 + $0x18] sm:$0xff]
        %v807 = vld [vmem:[#allocation3 + $0x20] sm:$0xff]
        %v808 = vld [vmem:[#allocation3 + $0x28] sm:$0xff]
        %v809 = vld [vmem:[#allocation3 + $0x30] sm:$0xff]
        %v810 = vld [vmem:[#allocation3 + $0x38] sm:$0xff]
        %v811 = vld [vmem:[%s1] sm:$0xff]
        %v812 = vld [vmem:[%s1 + $0x8] sm:$0xff]
        %v813 = vld [vmem:[%s1 + $0x10] sm:$0xff]
        %v814 = vld [vmem:[%s1 + $0x18] sm:$0xff]
        %v815 = vld [vmem:[%s1 + $0x20] sm:$0xf]
        %v816 = vld [vmem:[%s3] sm:$0x1]
        %v817 = vlaneseq
        %v818 = vshrl.u32 %v817, 7
        %v819 = vsub.s32 0, %v818
        %v820 = vrot.slane %v816, %v819
        %vm821 = vcmask 293888
        %v823 = vsel %vm821, %v803, 0
        %v826 = vsel %vm821, %v804, 0
        %v829 = vsel %vm821, %v805, 0
        %v832 = vsel %vm821, %v806, 0
        %v835 = vsel %vm821, %v807, 0
        %v838 = vsel %vm821, %v808, 0
        %v841 = vsel %vm821, %v809, 0
        %v844 = vsel %vm821, %v810, 0
        %vm846 = vcmask 1043456
        %v848 = vsel %vm846, %v815, 0
        %850 = vmatprep.subr.mxu0 0.0
        %851 = vmatpush1.msra.mxu0 0.0
        %852 = vmatprep.subr.mxu0 0.0
        %853 = vmatpush1.msra.mxu0 0.0
        %854 = vmatprep.subr.mxu0 0.0
        %855 = vmatpush1.msra.mxu0 0.0
        %856 = vmatprep.subr.mxu0 0.0
        %857 = vmatpush1.msra.mxu0 0.0
        %858 = vmatprep.subr.mxu0 0.0
        %859 = vmatpush1.msra.mxu0 0.0
        %860 = vmatprep.subr.mxu0 0.0
        %861 = vmatpush1.msra.mxu0 0.0
        %862 = vmatprep.subr.mxu0 0.0
        %863 = vmatpush1.msra.mxu0 0.0
        %864 = vmatprep.subr.mxu0 0.0
        %865 = vmatpush1.msra.mxu0 0.0
        %866 = vmatprep.subr.mxu0 0.0
        %867 = vmatpush1.msra.mxu0 0.0
        %868 = vmatprep.subr.mxu0 0.0
        %869 = vmatpush1.msra.mxu0 0.0
        %870 = vmatprep.subr.mxu0 0.0
        %871 = vmatpush1.msra.mxu0 0.0
        %872 = vmatprep.subr.mxu0 0.0
        %873 = vmatpush1.msra.mxu0 %v848
        %874 = vmatprep.subr.mxu0 0.0
        %875 = vmatpush1.msra.mxu0 %v814
        %876 = vmatprep.subr.mxu0 0.0
        %877 = vmatpush1.msra.mxu0 %v813
        %878 = vmatprep.subr.mxu0 0.0
        %879 = vmatpush1.msra.mxu0 %v812
        %880 = vmatprep.subr.mxu0 0.0
        %881 = vmatpush1.msra.mxu0 %v811
        %882 = vmatprep.subr.mxu0 0.0
        %883 = vmatpush2.msra.mxu0 0.0
        %884 = vmatprep.subr.mxu0 0.0
        %885 = vmatpush2.msra.mxu0 0.0
        %886 = vmatprep.subr.mxu0 0.0
        %887 = vmatpush2.msra.mxu0 0.0
        %888 = vmatprep.subr.mxu0 0.0
        %889 = vmatpush2.msra.mxu0 0.0
        %890 = vmatprep.subr.mxu0 0.0
        %891 = vmatpush2.msra.mxu0 0.0
        %892 = vmatprep.subr.mxu0 0.0
        %893 = vmatpush2.msra.mxu0 0.0
        %894 = vmatprep.subr.mxu0 0.0
        %895 = vmatpush2.msra.mxu0 0.0
        %896 = vmatprep.subr.mxu0 0.0
        %897 = vmatpush2.msra.mxu0 0.0
        %898 = vmatprep.subr.mxu0 0.0
        %899 = vmatpush2.msra.mxu0 0.0
        %900 = vmatprep.subr.mxu0 0.0
        %901 = vmatpush2.msra.mxu0 0.0
        %902 = vmatprep.subr.mxu0 0.0
        %903 = vmatpush2.msra.mxu0 0.0
        %904 = vmatprep.subr.mxu0 0.0
        %905 = vmatpush2.msra.mxu0 0.0
        %906 = vmatprep.subr.mxu0 0.0
        %907 = vmatpush2.msra.mxu0 0.0
        %908 = vmatprep.subr.mxu0 0.0
        %909 = vmatpush2.msra.mxu0 0.0
        %910 = vmatprep.subr.mxu0 0.0
        %911 = vmatpush2.msra.mxu0 0.0
        %912 = vmatprep.subr.mxu0 0.0
        %913 = vmatpush2.msra.mxu0 0.0
        %914 = vmatprep.mubr.f32.mxu0 0.0
        %915 = vmatmul.mubr.f32.gmra.mxu0 %v823
        %v916 = vpop.f32.mrf.mxu0
        %v917 = vadd.f32 %v820, %v916
        %v918 = vpop.f32.mrf.mxu0
        %919 = vmatprep.mubr.f32.mxu0 0.0
        %920 = vmatmul.mubr.f32.gmra.mxu0 %v826
        %v921 = vpop.f32.mrf.mxu0
        %v922 = vadd.f32 %v820, %v921
        %v923 = vpop.f32.mrf.mxu0
        %924 = vmatprep.mubr.f32.mxu0 0.0
        %925 = vmatmul.mubr.f32.gmra.mxu0 %v829
        %v926 = vpop.f32.mrf.mxu0
        %v927 = vadd.f32 %v820, %v926
        %v928 = vpop.f32.mrf.mxu0
        %929 = vmatprep.mubr.f32.mxu0 0.0
        %930 = vmatmul.mubr.f32.gmra.mxu0 %v832
        %v931 = vpop.f32.mrf.mxu0
        %v932 = vadd.f32 %v820, %v931
        %v933 = vpop.f32.mrf.mxu0
        %934 = vmatprep.mubr.f32.mxu0 0.0
        %935 = vmatmul.mubr.f32.gmra.mxu0 %v835
        %v936 = vpop.f32.mrf.mxu0
        %v937 = vadd.f32 %v820, %v936
        %v938 = vpop.f32.mrf.mxu0
        %939 = vmatprep.mubr.f32.mxu0 0.0
        %940 = vmatmul.mubr.f32.gmra.mxu0 %v838
        %v941 = vpop.f32.mrf.mxu0
        %v942 = vadd.f32 %v820, %v941
        %v943 = vpop.f32.mrf.mxu0
        %944 = vmatprep.mubr.f32.mxu0 0.0
        %945 = vmatmul.mubr.f32.gmra.mxu0 %v841
        %v946 = vpop.f32.mrf.mxu0
        %v947 = vadd.f32 %v820, %v946
        %v948 = vpop.f32.mrf.mxu0
        %949 = vmatprep.mubr.f32.mxu0 0.0
        %950 = vmatmul.mubr.f32.gmra.mxu0 %v844
        %v951 = vpop.f32.mrf.mxu0
        %v952 = vadd.f32 %v820, %v951
        %v953 = vpop.f32.mrf.mxu0
        %954 = vdwg.mxu0
        %v955 = vld [vmem:[#allocation9] sm:$0xff]
        %v956 = vld [vmem:[#allocation9 + $0x8] sm:$0xff]
        %v957 = vld [vmem:[#allocation9 + $0x10] sm:$0xff]
        %v958 = vld [vmem:[#allocation9 + $0x18] sm:$0xff]
        %vm959 = vcmask 261120
        %v960 = vsel %vm959, %v917, 0.0
        %v961 = vsel %vm959, %v922, 0.0
        %v962 = vadd.f32 %v960, %v961
        %v963 = vsel %vm959, %v927, 0.0
        %v964 = vadd.f32 %v962, %v963
        %v965 = vsel %vm959, %v932, 0.0
        %v966 = vadd.f32 %v964, %v965
        %v967 = vsel %vm959, %v937, 0.0
        %v968 = vadd.f32 %v966, %v967
        %v969 = vsel %vm959, %v942, 0.0
        %v970 = vadd.f32 %v968, %v969
        %v971 = vsel %vm959, %v947, 0.0
        %v972 = vadd.f32 %v970, %v971
        %v973 = vsel %vm959, %v952, 0.0
        %v974 = vadd.f32 %v972, %v973
        %v975 = vrot.slane %v974, 4
        %v976 = vadd.f32 %v974, %v975
        %v977 = vrot.slane %v976, 2
        %v978 = vadd.f32 %v976, %v977
        %v979 = vrot.slane %v978, 1
        %v980 = vadd.f32 %v978, %v979
        %v982 = vsel %vm959, %v980, 0
        %984 = vmatprep.subr.mxu0 0.0
        %985 = vmatpush1.msra.mxu0 0.0
        %986 = vmatprep.subr.mxu0 0.0
        %987 = vmatpush1.msra.mxu0 0.0
        %988 = vmatprep.subr.mxu0 0.0
        %989 = vmatpush1.msra.mxu0 0.0
        %990 = vmatprep.subr.mxu0 0.0
        %991 = vmatpush1.msra.mxu0 0.0
        %992 = vmatprep.subr.mxu0 0.0
        %993 = vmatpush1.msra.mxu0 0.0
        %994 = vmatprep.subr.mxu0 0.0
        %995 = vmatpush1.msra.mxu0 0.0
        %996 = vmatprep.subr.mxu0 0.0
        %997 = vmatpush1.msra.mxu0 0.0
        %998 = vmatprep.subr.mxu0 0.0
        %999 = vmatpush1.msra.mxu0 0.0
        %1000 = vmatprep.subr.mxu0 0.0
        %1001 = vmatpush1.msra.mxu0 0.0
        %1002 = vmatprep.subr.mxu0 0.0
        %1003 = vmatpush1.msra.mxu0 0.0
        %1004 = vmatprep.subr.mxu0 0.0
        %1005 = vmatpush1.msra.mxu0 0.0
        %1006 = vmatprep.subr.mxu0 0.0
        %1007 = vmatpush1.msra.mxu0 0.0
        %1008 = vmatprep.subr.mxu0 0.0
        %1009 = vmatpush1.msra.mxu0 %v958
        %1010 = vmatprep.subr.mxu0 0.0
        %1011 = vmatpush1.msra.mxu0 %v957
        %1012 = vmatprep.subr.mxu0 0.0
        %1013 = vmatpush1.msra.mxu0 %v956
        %1014 = vmatprep.subr.mxu0 0.0
        %1015 = vmatpush1.msra.mxu0 %v955
        %1016 = vmatprep.subr.mxu0 0.0
        %1017 = vmatpush2.msra.mxu0 0.0
        %1018 = vmatprep.subr.mxu0 0.0
        %1019 = vmatpush2.msra.mxu0 0.0
        %1020 = vmatprep.subr.mxu0 0.0
        %1021 = vmatpush2.msra.mxu0 0.0
        %1022 = vmatprep.subr.mxu0 0.0
        %1023 = vmatpush2.msra.mxu0 0.0
        %1024 = vmatprep.subr.mxu0 0.0
        %1025 = vmatpush2.msra.mxu0 0.0
        %1026 = vmatprep.subr.mxu0 0.0
        %1027 = vmatpush2.msra.mxu0 0.0
        %1028 = vmatprep.subr.mxu0 0.0
        %1029 = vmatpush2.msra.mxu0 0.0
        %1030 = vmatprep.subr.mxu0 0.0
        %1031 = vmatpush2.msra.mxu0 0.0
        %1032 = vmatprep.subr.mxu0 0.0
        %1033 = vmatpush2.msra.mxu0 0.0
        %1034 = vmatprep.subr.mxu0 0.0
        %1035 = vmatpush2.msra.mxu0 0.0
        %1036 = vmatprep.subr.mxu0 0.0
        %1037 = vmatpush2.msra.mxu0 0.0
        %1038 = vmatprep.subr.mxu0 0.0
        %1039 = vmatpush2.msra.mxu0 0.0
        %1040 = vmatprep.subr.mxu0 0.0
        %1041 = vmatpush2.msra.mxu0 0.0
        %1042 = vmatprep.subr.mxu0 0.0
        %1043 = vmatpush2.msra.mxu0 0.0
        %1044 = vmatprep.subr.mxu0 0.0
        %1045 = vmatpush2.msra.mxu0 0.0
        %1046 = vmatprep.subr.mxu0 0.0
        %1047 = vmatpush2.msra.mxu0 0.0
        %1048 = vmatprep.mubr.f32.mxu0 0.0
        %1049 = vmatmul.mubr.f32.gmra.mxu0 %v982
        %v1050 = vpop.f32.mrf.mxu0
        %v1051 = vadd.f32 0.0, %v1050
        %v1052 = vpop.f32.mrf.mxu0
        %1053 = vdwg.mxu0
        %v1054 = vrcp.pop 64.0
        %v1055 = vmul.f32 %v1051, %v1054
        %v1057 = vsel %vm959, %v1055, 0
        %v1060 = vsel %vm959, %v955, 0
        %v1063 = vsel %vm959, %v956, 0
        %v1066 = vsel %vm959, %v957, 0
        %v1069 = vsel %vm959, %v958, 0
        %1071 = vmatprep.subr.mxu0 0.0
        %1072 = vmatpush1.xpose.msra.mxu0 0.0
        %1073 = vmatprep.subr.mxu0 0.0
        %1074 = vmatpush1.xpose.msra.mxu0 0.0
        %1075 = vmatprep.subr.mxu0 0.0
        %1076 = vmatpush1.xpose.msra.mxu0 0.0
        %1077 = vmatprep.subr.mxu0 0.0
        %1078 = vmatpush1.xpose.msra.mxu0 0.0
        %1079 = vmatprep.subr.mxu0 0.0
        %1080 = vmatpush1.xpose.msra.mxu0 0.0
        %1081 = vmatprep.subr.mxu0 0.0
        %1082 = vmatpush1.xpose.msra.mxu0 0.0
        %1083 = vmatprep.subr.mxu0 0.0
        %1084 = vmatpush1.xpose.msra.mxu0 0.0
        %1085 = vmatprep.subr.mxu0 0.0
        %1086 = vmatpush1.xpose.msra.mxu0 0.0
        %1087 = vmatprep.subr.mxu0 0.0
        %1088 = vmatpush1.xpose.msra.mxu0 0.0
        %1089 = vmatprep.subr.mxu0 0.0
        %1090 = vmatpush1.xpose.msra.mxu0 0.0
        %1091 = vmatprep.subr.mxu0 0.0
        %1092 = vmatpush1.xpose.msra.mxu0 0.0
        %1093 = vmatprep.subr.mxu0 0.0
        %1094 = vmatpush1.xpose.msra.mxu0 0.0
        %1095 = vmatprep.subr.mxu0 0.0
        %1096 = vmatpush1.xpose.msra.mxu0 %v1069
        %1097 = vmatprep.subr.mxu0 0.0
        %1098 = vmatpush1.xpose.msra.mxu0 %v1066
        %1099 = vmatprep.subr.mxu0 0.0
        %1100 = vmatpush1.xpose.msra.mxu0 %v1063
        %1101 = vmatprep.subr.mxu0 0.0
        %1102 = vmatpush1.xpose.msra.mxu0 %v1060
        %1103 = vmatprep.subr.mxu0 0.0
        %1104 = vmatpush2.xpose.msra.mxu0 0.0
        %1105 = vmatprep.subr.mxu0 0.0
        %1106 = vmatpush2.xpose.msra.mxu0 0.0
        %1107 = vmatprep.subr.mxu0 0.0
        %1108 = vmatpush2.xpose.msra.mxu0 0.0
        %1109 = vmatprep.subr.mxu0 0.0
        %1110 = vmatpush2.xpose.msra.mxu0 0.0
        %1111 = vmatprep.subr.mxu0 0.0
        %1112 = vmatpush2.xpose.msra.mxu0 0.0
        %1113 = vmatprep.subr.mxu0 0.0
        %1114 = vmatpush2.xpose.msra.mxu0 0.0
        %1115 = vmatprep.subr.mxu0 0.0
        %1116 = vmatpush2.xpose.msra.mxu0 0.0
        %1117 = vmatprep.subr.mxu0 0.0
        %1118 = vmatpush2.xpose.msra.mxu0 0.0
        %1119 = vmatprep.subr.mxu0 0.0
        %1120 = vmatpush2.xpose.msra.mxu0 0.0
        %1121 = vmatprep.subr.mxu0 0.0
        %1122 = vmatpush2.xpose.msra.mxu0 0.0
        %1123 = vmatprep.subr.mxu0 0.0
        %1124 = vmatpush2.xpose.msra.mxu0 0.0
        %1125 = vmatprep.subr.mxu0 0.0
        %1126 = vmatpush2.xpose.msra.mxu0 0.0
        %1127 = vmatprep.subr.mxu0 0.0
        %1128 = vmatpush2.xpose.msra.mxu0 0.0
        %1129 = vmatprep.subr.mxu0 0.0
        %1130 = vmatpush2.xpose.msra.mxu0 0.0
        %1131 = vmatprep.subr.mxu0 0.0
        %1132 = vmatpush2.xpose.msra.mxu0 0.0
        %1133 = vmatprep.subr.mxu0 0.0
        %1134 = vmatpush2.xpose.msra.mxu0 0.0
        %1135 = vmatprep.mubr.f32.mxu0 0.0
        %1136 = vmatmul.mubr.f32.gmra.mxu0 %v1057
        %v1137 = vpop.f32.mrf.mxu0
        %v1138 = vadd.f32 0.0, %v1137
        %v1139 = vpop.f32.mrf.mxu0
        %1140 = vdwg.mxu0
        %v1141 = vlaneseq
        %v1142 = vshrl.u32 %v1141, 7
        %v1143 = vsub.s32 0, %v1142
        %v1144 = vrot.slane %v1138, %v1143
        %v1145 = vsub.f32 %v917, %v1144
        %v1146 = vsub.f32 %v922, %v1144
        %v1147 = vsub.f32 %v927, %v1144
        %v1148 = vsub.f32 %v932, %v1144
        %v1149 = vsub.f32 %v937, %v1144
        %v1150 = vsub.f32 %v942, %v1144
        %v1151 = vsub.f32 %v947, %v1144
        %v1152 = vsub.f32 %v952, %v1144
        %v1153 = vmul.f32 %v1145, %v1145
        %v1154 = vmul.f32 %v1146, %v1146
        %v1155 = vmul.f32 %v1147, %v1147
        %v1156 = vmul.f32 %v1148, %v1148
        %v1157 = vmul.f32 %v1149, %v1149
        %v1158 = vmul.f32 %v1150, %v1150
        %v1159 = vmul.f32 %v1151, %v1151
        %v1160 = vmul.f32 %v1152, %v1152
        %v1161 = vsel %vm959, %v1153, 0.0
        %v1162 = vsel %vm959, %v1154, 0.0
        %v1163 = vadd.f32 %v1161, %v1162
        %v1164 = vsel %vm959, %v1155, 0.0
        %v1165 = vadd.f32 %v1163, %v1164
        %v1166 = vsel %vm959, %v1156, 0.0
        %v1167 = vadd.f32 %v1165, %v1166
        %v1168 = vsel %vm959, %v1157, 0.0
        %v1169 = vadd.f32 %v1167, %v1168
        %v1170 = vsel %vm959, %v1158, 0.0
        %v1171 = vadd.f32 %v1169, %v1170
        %v1172 = vsel %vm959, %v1159, 0.0
        %v1173 = vadd.f32 %v1171, %v1172
        %v1174 = vsel %vm959, %v1160, 0.0
        %v1175 = vadd.f32 %v1173, %v1174
        %v1176 = vrot.slane %v1175, 4
        %v1177 = vadd.f32 %v1175, %v1176
        %v1178 = vrot.slane %v1177, 2
        %v1179 = vadd.f32 %v1177, %v1178
        %v1180 = vrot.slane %v1179, 1
        %v1181 = vadd.f32 %v1179, %v1180
        %v1183 = vsel %vm959, %v1181, 0
        %1185 = vmatprep.subr.mxu0 0.0
        %1186 = vmatpush1.msra.mxu0 0.0
        %1187 = vmatprep.subr.mxu0 0.0
        %1188 = vmatpush1.msra.mxu0 0.0
        %1189 = vmatprep.subr.mxu0 0.0
        %1190 = vmatpush1.msra.mxu0 0.0
        %1191 = vmatprep.subr.mxu0 0.0
        %1192 = vmatpush1.msra.mxu0 0.0
        %1193 = vmatprep.subr.mxu0 0.0
        %1194 = vmatpush1.msra.mxu0 0.0
        %1195 = vmatprep.subr.mxu0 0.0
        %1196 = vmatpush1.msra.mxu0 0.0
        %1197 = vmatprep.subr.mxu0 0.0
        %1198 = vmatpush1.msra.mxu0 0.0
        %1199 = vmatprep.subr.mxu0 0.0
        %1200 = vmatpush1.msra.mxu0 0.0
        %1201 = vmatprep.subr.mxu0 0.0
        %1202 = vmatpush1.msra.mxu0 0.0
        %1203 = vmatprep.subr.mxu0 0.0
        %1204 = vmatpush1.msra.mxu0 0.0
        %1205 = vmatprep.subr.mxu0 0.0
        %1206 = vmatpush1.msra.mxu0 0.0
        %1207 = vmatprep.subr.mxu0 0.0
        %1208 = vmatpush1.msra.mxu0 0.0
        %1209 = vmatprep.subr.mxu0 0.0
        %1210 = vmatpush1.msra.mxu0 %v958
        %1211 = vmatprep.subr.mxu0 0.0
        %1212 = vmatpush1.msra.mxu0 %v957
        %1213 = vmatprep.subr.mxu0 0.0
        %1214 = vmatpush1.msra.mxu0 %v956
        %1215 = vmatprep.subr.mxu0 0.0
        %1216 = vmatpush1.msra.mxu0 %v955
        %1217 = vmatprep.subr.mxu0 0.0
        %1218 = vmatpush2.msra.mxu0 0.0
        %1219 = vmatprep.subr.mxu0 0.0
        %1220 = vmatpush2.msra.mxu0 0.0
        %1221 = vmatprep.subr.mxu0 0.0
        %1222 = vmatpush2.msra.mxu0 0.0
        %1223 = vmatprep.subr.mxu0 0.0
        %1224 = vmatpush2.msra.mxu0 0.0
        %1225 = vmatprep.subr.mxu0 0.0
        %1226 = vmatpush2.msra.mxu0 0.0
        %1227 = vmatprep.subr.mxu0 0.0
        %1228 = vmatpush2.msra.mxu0 0.0
        %1229 = vmatprep.subr.mxu0 0.0
        %1230 = vmatpush2.msra.mxu0 0.0
        %1231 = vmatprep.subr.mxu0 0.0
        %1232 = vmatpush2.msra.mxu0 0.0
        %1233 = vmatprep.subr.mxu0 0.0
        %1234 = vmatpush2.msra.mxu0 0.0
        %1235 = vmatprep.subr.mxu0 0.0
        %1236 = vmatpush2.msra.mxu0 0.0
        %1237 = vmatprep.subr.mxu0 0.0
        %1238 = vmatpush2.msra.mxu0 0.0
        %1239 = vmatprep.subr.mxu0 0.0
        %1240 = vmatpush2.msra.mxu0 0.0
        %1241 = vmatprep.subr.mxu0 0.0
        %1242 = vmatpush2.msra.mxu0 0.0
        %1243 = vmatprep.subr.mxu0 0.0
        %1244 = vmatpush2.msra.mxu0 0.0
        %1245 = vmatprep.subr.mxu0 0.0
        %1246 = vmatpush2.msra.mxu0 0.0
        %1247 = vmatprep.subr.mxu0 0.0
        %1248 = vmatpush2.msra.mxu0 0.0
        %1249 = vmatprep.mubr.f32.mxu0 0.0
        %1250 = vmatmul.mubr.f32.gmra.mxu0 %v1183
        %v1251 = vpop.f32.mrf.mxu0
        %v1252 = vadd.f32 0.0, %v1251
        %v1253 = vpop.f32.mrf.mxu0
        %1254 = vdwg.mxu0
        %v1255 = vmul.f32 %v1252, %v1054
        %v1257 = vsel %vm959, %v1255, 0
        %1259 = vmatprep.subr.mxu0 0.0
        %1260 = vmatpush1.xpose.msra.mxu0 0.0
        %1261 = vmatprep.subr.mxu0 0.0
        %1262 = vmatpush1.xpose.msra.mxu0 0.0
        %1263 = vmatprep.subr.mxu0 0.0
        %1264 = vmatpush1.xpose.msra.mxu0 0.0
        %1265 = vmatprep.subr.mxu0 0.0
        %1266 = vmatpush1.xpose.msra.mxu0 0.0
        %1267 = vmatprep.subr.mxu0 0.0
        %1268 = vmatpush1.xpose.msra.mxu0 0.0
        %1269 = vmatprep.subr.mxu0 0.0
        %1270 = vmatpush1.xpose.msra.mxu0 0.0
        %1271 = vmatprep.subr.mxu0 0.0
        %1272 = vmatpush1.xpose.msra.mxu0 0.0
        %1273 = vmatprep.subr.mxu0 0.0
        %1274 = vmatpush1.xpose.msra.mxu0 0.0
        %1275 = vmatprep.subr.mxu0 0.0
        %1276 = vmatpush1.xpose.msra.mxu0 0.0
        %1277 = vmatprep.subr.mxu0 0.0
        %1278 = vmatpush1.xpose.msra.mxu0 0.0
        %1279 = vmatprep.subr.mxu0 0.0
        %1280 = vmatpush1.xpose.msra.mxu0 0.0
        %1281 = vmatprep.subr.mxu0 0.0
        %1282 = vmatpush1.xpose.msra.mxu0 0.0
        %1283 = vmatprep.subr.mxu0 0.0
        %1284 = vmatpush1.xpose.msra.mxu0 %v1069
        %1285 = vmatprep.subr.mxu0 0.0
        %1286 = vmatpush1.xpose.msra.mxu0 %v1066
        %1287 = vmatprep.subr.mxu0 0.0
        %1288 = vmatpush1.xpose.msra.mxu0 %v1063
        %1289 = vmatprep.subr.mxu0 0.0
        %1290 = vmatpush1.xpose.msra.mxu0 %v1060
        %1291 = vmatprep.subr.mxu0 0.0
        %1292 = vmatpush2.xpose.msra.mxu0 0.0
        %1293 = vmatprep.subr.mxu0 0.0
        %1294 = vmatpush2.xpose.msra.mxu0 0.0
        %1295 = vmatprep.subr.mxu0 0.0
        %1296 = vmatpush2.xpose.msra.mxu0 0.0
        %1297 = vmatprep.subr.mxu0 0.0
        %1298 = vmatpush2.xpose.msra.mxu0 0.0
        %1299 = vmatprep.subr.mxu0 0.0
        %1300 = vmatpush2.xpose.msra.mxu0 0.0
        %1301 = vmatprep.subr.mxu0 0.0
        %1302 = vmatpush2.xpose.msra.mxu0 0.0
        %1303 = vmatprep.subr.mxu0 0.0
        %1304 = vmatpush2.xpose.msra.mxu0 0.0
        %1305 = vmatprep.subr.mxu0 0.0
        %1306 = vmatpush2.xpose.msra.mxu0 0.0
        %1307 = vmatprep.subr.mxu0 0.0
        %1308 = vmatpush2.xpose.msra.mxu0 0.0
        %1309 = vmatprep.subr.mxu0 0.0
        %1310 = vmatpush2.xpose.msra.mxu0 0.0
        %1311 = vmatprep.subr.mxu0 0.0
        %1312 = vmatpush2.xpose.msra.mxu0 0.0
        %1313 = vmatprep.subr.mxu0 0.0
        %1314 = vmatpush2.xpose.msra.mxu0 0.0
        %1315 = vmatprep.subr.mxu0 0.0
        %1316 = vmatpush2.xpose.msra.mxu0 0.0
        %1317 = vmatprep.subr.mxu0 0.0
        %1318 = vmatpush2.xpose.msra.mxu0 0.0
        %1319 = vmatprep.subr.mxu0 0.0
        %1320 = vmatpush2.xpose.msra.mxu0 0.0
        %1321 = vmatprep.subr.mxu0 0.0
        %1322 = vmatpush2.xpose.msra.mxu0 0.0
        %1323 = vmatprep.mubr.f32.mxu0 0.0
        %1324 = vmatmul.mubr.f32.gmra.mxu0 %v1257
        %v1325 = vpop.f32.mrf.mxu0
        %v1326 = vadd.f32 1e-05, %v1325
        %v1327 = vpop.f32.mrf.mxu0
        %1328 = vdwg.mxu0
        %v1329 = vrsqrt.pop %v1326
        %v1330 = vlaneseq
        %v1331 = vshrl.u32 %v1330, 7
        %v1332 = vsub.s32 0, %v1331
        %v1333 = vrot.slane %v1329, %v1332
        %v1334 = vmul.f32 %v1145, %v1333
        %v1335 = vmul.f32 %v1146, %v1333
        %v1336 = vmul.f32 %v1147, %v1333
        %v1337 = vmul.f32 %v1148, %v1333
        %v1338 = vmul.f32 %v1149, %v1333
        %v1339 = vmul.f32 %v1150, %v1333
        %v1340 = vmul.f32 %v1151, %v1333
        %v1341 = vmul.f32 %v1152, %v1333
        %v1342 = vld [vmem:[%s3 + $0x1] sm:$0x1]
        %v1343 = vlaneseq
        %v1344 = vshrl.u32 %v1343, 7
        %v1345 = vsub.s32 0, %v1344
        %v1346 = vrot.slane %v1342, %v1345
        %v1347 = vmul.f32 %v1334, %v1346
        %v1348 = vmul.f32 %v1335, %v1346
        %v1349 = vmul.f32 %v1336, %v1346
        %v1350 = vmul.f32 %v1337, %v1346
        %v1351 = vmul.f32 %v1338, %v1346
        %v1352 = vmul.f32 %v1339, %v1346
        %v1353 = vmul.f32 %v1340, %v1346
        %v1354 = vmul.f32 %v1341, %v1346
        %v1355 = vld [vmem:[%s3 + $0x2] sm:$0x1]
        %v1356 = vlaneseq
        %v1357 = vshrl.u32 %v1356, 7
        %v1358 = vsub.s32 0, %v1357
        %v1359 = vrot.slane %v1355, %v1358
        %v1360 = vadd.f32 %v1347, %v1359
        %v1361 = vadd.f32 %v1348, %v1359
        %v1362 = vadd.f32 %v1349, %v1359
        %v1363 = vadd.f32 %v1350, %v1359
        %v1364 = vadd.f32 %v1351, %v1359
        %v1365 = vadd.f32 %v1352, %v1359
        %v1366 = vadd.f32 %v1353, %v1359
        %v1367 = vadd.f32 %v1354, %v1359
        %v1368 = vmul.f32 %v1360, 0.5
        %v1369 = vmul.f32 %v1361, 0.5
        %v1370 = vmul.f32 %v1362, 0.5
        %v1371 = vmul.f32 %v1363, 0.5
        %v1372 = vmul.f32 %v1364, 0.5
        %v1373 = vmul.f32 %v1365, 0.5
        %v1374 = vmul.f32 %v1366, 0.5
        %v1375 = vmul.f32 %v1367, 0.5
        %v1376 = vmul.f32 %v1360, 0.70710677
        %v1377 = vmul.f32 %v1361, 0.70710677
        %v1378 = vmul.f32 %v1362, 0.70710677
        %v1379 = vmul.f32 %v1363, 0.70710677
        %v1380 = vmul.f32 %v1364, 0.70710677
        %v1381 = vmul.f32 %v1365, 0.70710677
        %v1382 = vmul.f32 %v1366, 0.70710677
        %v1383 = vmul.f32 %v1367, 0.70710677
        %v1384 = verf.f32.pop %v1376
        %v1385 = verf.f32.pop %v1377
        %v1386 = verf.f32.pop %v1378
        %v1387 = verf.f32.pop %v1379
        %v1388 = verf.f32.pop %v1380
        %v1389 = verf.f32.pop %v1381
        %v1390 = verf.f32.pop %v1382
        %v1391 = verf.f32.pop %v1383
        %v1392 = vadd.f32 %v1384, 1.0
        %v1393 = vadd.f32 %v1385, 1.0
        %v1394 = vadd.f32 %v1386, 1.0
        %v1395 = vadd.f32 %v1387, 1.0
        %v1396 = vadd.f32 %v1388, 1.0
        %v1397 = vadd.f32 %v1389, 1.0
        %v1398 = vadd.f32 %v1390, 1.0
        %v1399 = vadd.f32 %v1391, 1.0
        %v1400 = vmul.f32 %v1368, %v1392
        %v1401 = vmul.f32 %v1369, %v1393
        %v1402 = vmul.f32 %v1370, %v1394
        %v1403 = vmul.f32 %v1371, %v1395
        %v1404 = vmul.f32 %v1372, %v1396
        %v1405 = vmul.f32 %v1373, %v1397
        %v1406 = vmul.f32 %v1374, %v1398
        %v1407 = vmul.f32 %v1375, %v1399
        %s1408 = scalar_lea.vmem [#allocation4], 16
        %1409 = vst.msk [vmem:[%s1408 + $0x1] sm:$0xff] %vm959, %v1400
        %1410 = vst.msk [vmem:[%s1408 + $0x11] sm:$0xff] %vm959, %v1401
        %1411 = vst.msk [vmem:[%s1408 + $0x21] sm:$0xff] %vm959, %v1402
        %1412 = vst.msk [vmem:[%s1408 + $0x31] sm:$0xff] %vm959, %v1403
        %1413 = vst.msk [vmem:[%s1408 + $0x41] sm:$0xff] %vm959, %v1404
        %1414 = vst.msk [vmem:[%s1408 + $0x51] sm:$0xff] %vm959, %v1405
        %1415 = vst.msk [vmem:[%s1408 + $0x61] sm:$0xff] %vm959, %v1406
        %1416 = vst.msk [vmem:[%s1408 + $0x71] sm:$0xff] %vm959, %v1407
        %vm1417 = vcmask 254977
        %1418 = vst.msk [vmem:[%s1408 - $0x1] sm:$0x2] %vm1417, %v1400
        %1419 = vst.msk [vmem:[%s1408 + $0xf] sm:$0x2] %vm1417, %v1401
        %1420 = vst.msk [vmem:[%s1408 + $0x1f] sm:$0x2] %vm1417, %v1402
        %1421 = vst.msk [vmem:[%s1408 + $0x2f] sm:$0x2] %vm1417, %v1403
        %1422 = vst.msk [vmem:[%s1408 + $0x3f] sm:$0x2] %vm1417, %v1404
        %1423 = vst.msk [vmem:[%s1408 + $0x4f] sm:$0x2] %vm1417, %v1405
        %1424 = vst.msk [vmem:[%s1408 + $0x5f] sm:$0x2] %vm1417, %v1406
        %1425 = vst.msk [vmem:[%s1408 + $0x6f] sm:$0x2] %vm1417, %v1407
        %vm1426 = vcmask 260102
        %1427 = vst.msk [vmem:[%s1408 + $0x3] sm:$0x40] %vm1426, %v1400
        %1428 = vst.msk [vmem:[%s1408 + $0x13] sm:$0x40] %vm1426, %v1401
        %1429 = vst.msk [vmem:[%s1408 + $0x23] sm:$0x40] %vm1426, %v1402
        %1430 = vst.msk [vmem:[%s1408 + $0x33] sm:$0x40] %vm1426, %v1403
        %1431 = vst.msk [vmem:[%s1408 + $0x43] sm:$0x40] %vm1426, %v1404
        %1432 = vst.msk [vmem:[%s1408 + $0x53] sm:$0x40] %vm1426, %v1405
        %1433 = vst.msk [vmem:[%s1408 + $0x63] sm:$0x40] %vm1426, %v1406
        %1434 = vst.msk [vmem:[%s1408 + $0x73] sm:$0x40] %vm1426, %v1407
        %s1435 = scalar_lea.vmem [#allocation4], 32
        %v1436 = vld [vmem:[%s1435] sm:$0xff]
        %v1437 = vld [vmem:[%s1435 + $0x8] sm:$0x3]
        %1438 = vst.msk [vmem:[#allocation4] sm:$0xff] %vm959, %v1436
        %vm1439 = vcmask 254976
        %1440 = vst.msk [vmem:[#allocation4 + $0x8] sm:$0x3] %vm1439, %v1437
        %s1441 = scalar_lea.vmem [#allocation4], 112
        %v1442 = vld [vmem:[%s1441] sm:$0xff]
        %v1443 = vld [vmem:[%s1441 + $0x8] sm:$0x3]
        %s1444 = scalar_lea.vmem [#allocation4], 144
        %1445 = vst.msk [vmem:[%s1444] sm:$0xff] %vm959, %v1442
        %1446 = vst.msk [vmem:[%s1444 + $0x8] sm:$0x3] %vm1439, %v1443
        %v1447 = vld [vmem:[#allocation4] sm:$0xff]
        %v1448 = vld [vmem:[#allocation4 + $0x8] sm:$0x3]
        %v1449 = vld [vmem:[#allocation4 + $0x10] sm:$0xff]
        %v1450 = vld [vmem:[#allocation4 + $0x18] sm:$0x3]
        %v1451 = vld [vmem:[#allocation4 + $0x20] sm:$0xff]
        %v1452 = vld [vmem:[#allocation4 + $0x28] sm:$0x3]
        %v1453 = vld [vmem:[#allocation4 + $0x30] sm:$0xff]
        %v1454 = vld [vmem:[#allocation4 + $0x38] sm:$0x3]
        %v1455 = vld [vmem:[#allocation4 + $0x40] sm:$0xff]
        %v1456 = vld [vmem:[#allocation4 + $0x48] sm:$0x3]
        %v1457 = vld [vmem:[#allocation4 + $0x50] sm:$0xff]
        %v1458 = vld [vmem:[#allocation4 + $0x58] sm:$0x3]
        %v1459 = vld [vmem:[#allocation4 + $0x60] sm:$0xff]
        %v1460 = vld [vmem:[#allocation4 + $0x68] sm:$0x3]
        %v1461 = vld [vmem:[#allocation4 + $0x70] sm:$0xff]
        %v1462 = vld [vmem:[#allocation4 + $0x78] sm:$0x3]
        %v1463 = vld [vmem:[#allocation4 + $0x80] sm:$0xff]
        %v1464 = vld [vmem:[#allocation4 + $0x88] sm:$0x3]
        %v1465 = vld [vmem:[#allocation4 + $0x90] sm:$0xff]
        %v1466 = vld [vmem:[#allocation4 + $0x98] sm:$0x3]
        %1467 = vst.msk [vmem:[#allocation5] sm:$0xff] %vm959, %v1447
        %1468 = vst.msk [vmem:[#allocation5 + $0x18] sm:$0xff] %vm959, %v1449
        %1469 = vst.msk [vmem:[#allocation5 + $0x30] sm:$0xff] %vm959, %v1451
        %1470 = vst.msk [vmem:[#allocation5 + $0x48] sm:$0xff] %vm959, %v1453
        %1471 = vst.msk [vmem:[#allocation5 + $0x60] sm:$0xff] %vm959, %v1455
        %1472 = vst.msk [vmem:[#allocation5 + $0x78] sm:$0xff] %vm959, %v1457
        %1473 = vst.msk [vmem:[#allocation5 + $0x90] sm:$0xff] %vm959, %v1459
        %1474 = vst.msk [vmem:[#allocation5 + $0xa8] sm:$0xff] %vm959, %v1461
        %v1491 = vrot.slane %v1447, 1
        %v1492 = vrot.slane %v1448, 1
        %v1493 = vsel %vm473, %v1491, %v1492
        %v1494 = vrot.slane %v1449, 1
        %v1495 = vrot.slane %v1450, 1
        %v1496 = vsel %vm473, %v1494, %v1495
        %v1497 = vrot.slane %v1451, 1
        %v1498 = vrot.slane %v1452, 1
        %v1499 = vsel %vm473, %v1497, %v1498
        %v1500 = vrot.slane %v1453, 1
        %v1501 = vrot.slane %v1454, 1
        %v1502 = vsel %vm473, %v1500, %v1501
        %v1503 = vrot.slane %v1455, 1
        %v1504 = vrot.slane %v1456, 1
        %v1505 = vsel %vm473, %v1503, %v1504
        %v1506 = vrot.slane %v1457, 1
        %v1507 = vrot.slane %v1458, 1
        %v1508 = vsel %vm473, %v1506, %v1507
        %v1509 = vrot.slane %v1459, 1
        %v1510 = vrot.slane %v1460, 1
        %v1511 = vsel %vm473, %v1509, %v1510
        %v1512 = vrot.slane %v1461, 1
        %v1513 = vrot.slane %v1462, 1
        %v1514 = vsel %vm473, %v1512, %v1513
        %1515 = vrot.lane.b32.xlu0 %v1493, 32
        %v1516 = vpop.permute.xlu0 %1515
        %1517 = vrot.lane.b32.xlu0 %v1496, 32
        %v1518 = vpop.permute.xlu0 %1517
        %1519 = vrot.lane.b32.xlu0 %v1499, 32
        %v1520 = vpop.permute.xlu0 %1519
        %1521 = vrot.lane.b32.xlu0 %v1502, 32
        %v1522 = vpop.permute.xlu0 %1521
        %1523 = vrot.lane.b32.xlu0 %v1505, 32
        %v1524 = vpop.permute.xlu0 %1523
        %1525 = vrot.lane.b32.xlu0 %v1508, 32
        %v1526 = vpop.permute.xlu0 %1525
        %1527 = vrot.lane.b32.xlu0 %v1511, 32
        %v1528 = vpop.permute.xlu0 %1527
        %1529 = vrot.lane.b32.xlu0 %v1514, 32
        %v1530 = vpop.permute.xlu0 %1529
        %vm1539 = vcmask 523520
        %1540 = vst.msk [vmem:[#allocation5] sm:$0xff] %vm1539, %v1516
        %1541 = vst.msk [vmem:[#allocation5 + $0x18] sm:$0xff] %vm1539, %v1518
        %1542 = vst.msk [vmem:[#allocation5 + $0x30] sm:$0xff] %vm1539, %v1520
        %1543 = vst.msk [vmem:[#allocation5 + $0x48] sm:$0xff] %vm1539, %v1522
        %1544 = vst.msk [vmem:[#allocation5 + $0x60] sm:$0xff] %vm1539, %v1524
        %1545 = vst.msk [vmem:[#allocation5 + $0x78] sm:$0xff] %vm1539, %v1526
        %1546 = vst.msk [vmem:[#allocation5 + $0x90] sm:$0xff] %vm1539, %v1528
        %1547 = vst.msk [vmem:[#allocation5 + $0xa8] sm:$0xff] %vm1539, %v1530
        %v1548 = vrot.slane %v1447, 2
        %v1549 = vrot.slane %v1448, 2
        %v1550 = vsel %vm531, %v1548, %v1549
        %v1551 = vrot.slane %v1449, 2
        %v1552 = vrot.slane %v1450, 2
        %v1553 = vsel %vm531, %v1551, %v1552
        %v1554 = vrot.slane %v1451, 2
        %v1555 = vrot.slane %v1452, 2
        %v1556 = vsel %vm531, %v1554, %v1555
        %v1557 = vrot.slane %v1453, 2
        %v1558 = vrot.slane %v1454, 2
        %v1559 = vsel %vm531, %v1557, %v1558
        %v1560 = vrot.slane %v1455, 2
        %v1561 = vrot.slane %v1456, 2
        %v1562 = vsel %vm531, %v1560, %v1561
        %v1563 = vrot.slane %v1457, 2
        %v1564 = vrot.slane %v1458, 2
        %v1565 = vsel %vm531, %v1563, %v1564
        %v1566 = vrot.slane %v1459, 2
        %v1567 = vrot.slane %v1460, 2
        %v1568 = vsel %vm531, %v1566, %v1567
        %v1569 = vrot.slane %v1461, 2
        %v1570 = vrot.slane %v1462, 2
        %v1571 = vsel %vm531, %v1569, %v1570
        %1572 = vrot.lane.b32.xlu0 %v1550, 64
        %v1573 = vpop.permute.xlu0 %1572
        %1574 = vrot.lane.b32.xlu0 %v1553, 64
        %v1575 = vpop.permute.xlu0 %1574
        %1576 = vrot.lane.b32.xlu0 %v1556, 64
        %v1577 = vpop.permute.xlu0 %1576
        %1578 = vrot.lane.b32.xlu0 %v1559, 64
        %v1579 = vpop.permute.xlu0 %1578
        %1580 = vrot.lane.b32.xlu0 %v1562, 64
        %v1581 = vpop.permute.xlu0 %1580
        %1582 = vrot.lane.b32.xlu0 %v1565, 64
        %v1583 = vpop.permute.xlu0 %1582
        %1584 = vrot.lane.b32.xlu0 %v1568, 64
        %v1585 = vpop.permute.xlu0 %1584
        %1586 = vrot.lane.b32.xlu0 %v1571, 64
        %v1587 = vpop.permute.xlu0 %1586
        %vm1596 = vcmask 785920
        %1597 = vst.msk [vmem:[#allocation5] sm:$0xff] %vm1596, %v1573
        %1598 = vst.msk [vmem:[#allocation5 + $0x18] sm:$0xff] %vm1596, %v1575
        %1599 = vst.msk [vmem:[#allocation5 + $0x30] sm:$0xff] %vm1596, %v1577
        %1600 = vst.msk [vmem:[#allocation5 + $0x48] sm:$0xff] %vm1596, %v1579
        %1601 = vst.msk [vmem:[#allocation5 + $0x60] sm:$0xff] %vm1596, %v1581
        %1602 = vst.msk [vmem:[#allocation5 + $0x78] sm:$0xff] %vm1596, %v1583
        %1603 = vst.msk [vmem:[#allocation5 + $0x90] sm:$0xff] %vm1596, %v1585
        %1604 = vst.msk [vmem:[#allocation5 + $0xa8] sm:$0xff] %vm1596, %v1587
        %1606 = vrot.lane.b32.xlu0 %v1449, 96
        %v1607 = vpop.permute.xlu0 %1606
        %1608 = vrot.lane.b32.xlu0 %v1451, 96
        %v1609 = vpop.permute.xlu0 %1608
        %1610 = vrot.lane.b32.xlu0 %v1453, 96
        %v1611 = vpop.permute.xlu0 %1610
        %1612 = vrot.lane.b32.xlu0 %v1455, 96
        %v1613 = vpop.permute.xlu0 %1612
        %1614 = vrot.lane.b32.xlu0 %v1457, 96
        %v1615 = vpop.permute.xlu0 %1614
        %1616 = vrot.lane.b32.xlu0 %v1459, 96
        %v1617 = vpop.permute.xlu0 %1616
        %1618 = vrot.lane.b32.xlu0 %v1461, 96
        %v1619 = vpop.permute.xlu0 %1618
        %1620 = vrot.lane.b32.xlu0 %v1463, 96
        %v1621 = vpop.permute.xlu0 %1620
        %vm1630 = vcmask 1048320
        %1631 = vst.msk [vmem:[#allocation5] sm:$0xff] %vm1630, %v1607
        %1632 = vst.msk [vmem:[#allocation5 + $0x18] sm:$0xff] %vm1630, %v1609
        %1633 = vst.msk [vmem:[#allocation5 + $0x30] sm:$0xff] %vm1630, %v1611
        %1634 = vst.msk [vmem:[#allocation5 + $0x48] sm:$0xff] %vm1630, %v1613
        %1635 = vst.msk [vmem:[#allocation5 + $0x60] sm:$0xff] %vm1630, %v1615
        %1636 = vst.msk [vmem:[#allocation5 + $0x78] sm:$0xff] %vm1630, %v1617
        %1637 = vst.msk [vmem:[#allocation5 + $0x90] sm:$0xff] %vm1630, %v1619
        %1638 = vst.msk [vmem:[#allocation5 + $0xa8] sm:$0xff] %vm1630, %v1621
        %v1640 = vrot.slane %v1463, 1
        %v1641 = vrot.slane %v1464, 1
        %v1642 = vsel %vm473, %v1640, %v1641
        %1651 = vst.msk [vmem:[#allocation5 + $0x8] sm:$0xff] %vm959, %v1496
        %1652 = vst.msk [vmem:[#allocation5 + $0x20] sm:$0xff] %vm959, %v1499
        %1653 = vst.msk [vmem:[#allocation5 + $0x38] sm:$0xff] %vm959, %v1502
        %1654 = vst.msk [vmem:[#allocation5 + $0x50] sm:$0xff] %vm959, %v1505
        %1655 = vst.msk [vmem:[#allocation5 + $0x68] sm:$0xff] %vm959, %v1508
        %1656 = vst.msk [vmem:[#allocation5 + $0x80] sm:$0xff] %vm959, %v1511
        %1657 = vst.msk [vmem:[#allocation5 + $0x98] sm:$0xff] %vm959, %v1514
        %1658 = vst.msk [vmem:[#allocation5 + $0xb0] sm:$0xff] %vm959, %v1642
        %v1659 = vrot.slane %v1463, 2
        %v1660 = vrot.slane %v1464, 2
        %v1661 = vsel %vm531, %v1659, %v1660
        %1662 = vrot.lane.b32.xlu0 %v1553, 32
        %v1663 = vpop.permute.xlu0 %1662
        %1664 = vrot.lane.b32.xlu0 %v1556, 32
        %v1665 = vpop.permute.xlu0 %1664
        %1666 = vrot.lane.b32.xlu0 %v1559, 32
        %v1667 = vpop.permute.xlu0 %1666
        %1668 = vrot.lane.b32.xlu0 %v1562, 32
        %v1669 = vpop.permute.xlu0 %1668
        %1670 = vrot.lane.b32.xlu0 %v1565, 32
        %v1671 = vpop.permute.xlu0 %1670
        %1672 = vrot.lane.b32.xlu0 %v1568, 32
        %v1673 = vpop.permute.xlu0 %1672
        %1674 = vrot.lane.b32.xlu0 %v1571, 32
        %v1675 = vpop.permute.xlu0 %1674
        %1676 = vrot.lane.b32.xlu0 %v1661, 32
        %v1677 = vpop.permute.xlu0 %1676
        %1686 = vst.msk [vmem:[#allocation5 + $0x8] sm:$0xff] %vm1539, %v1663
        %1687 = vst.msk [vmem:[#allocation5 + $0x20] sm:$0xff] %vm1539, %v1665
        %1688 = vst.msk [vmem:[#allocation5 + $0x38] sm:$0xff] %vm1539, %v1667
        %1689 = vst.msk [vmem:[#allocation5 + $0x50] sm:$0xff] %vm1539, %v1669
        %1690 = vst.msk [vmem:[#allocation5 + $0x68] sm:$0xff] %vm1539, %v1671
        %1691 = vst.msk [vmem:[#allocation5 + $0x80] sm:$0xff] %vm1539, %v1673
        %1692 = vst.msk [vmem:[#allocation5 + $0x98] sm:$0xff] %vm1539, %v1675
        %1693 = vst.msk [vmem:[#allocation5 + $0xb0] sm:$0xff] %vm1539, %v1677
        %1695 = vrot.lane.b32.xlu0 %v1451, 64
        %v1696 = vpop.permute.xlu0 %1695
        %1697 = vrot.lane.b32.xlu0 %v1453, 64
        %v1698 = vpop.permute.xlu0 %1697
        %1699 = vrot.lane.b32.xlu0 %v1455, 64
        %v1700 = vpop.permute.xlu0 %1699
        %1701 = vrot.lane.b32.xlu0 %v1457, 64
        %v1702 = vpop.permute.xlu0 %1701
        %1703 = vrot.lane.b32.xlu0 %v1459, 64
        %v1704 = vpop.permute.xlu0 %1703
        %1705 = vrot.lane.b32.xlu0 %v1461, 64
        %v1706 = vpop.permute.xlu0 %1705
        %1707 = vrot.lane.b32.xlu0 %v1463, 64
        %v1708 = vpop.permute.xlu0 %1707
        %1709 = vrot.lane.b32.xlu0 %v1465, 64
        %v1710 = vpop.permute.xlu0 %1709
        %1719 = vst.msk [vmem:[#allocation5 + $0x8] sm:$0xff] %vm1596, %v1696
        %1720 = vst.msk [vmem:[#allocation5 + $0x20] sm:$0xff] %vm1596, %v1698
        %1721 = vst.msk [vmem:[#allocation5 + $0x38] sm:$0xff] %vm1596, %v1700
        %1722 = vst.msk [vmem:[#allocation5 + $0x50] sm:$0xff] %vm1596, %v1702
        %1723 = vst.msk [vmem:[#allocation5 + $0x68] sm:$0xff] %vm1596, %v1704
        %1724 = vst.msk [vmem:[#allocation5 + $0x80] sm:$0xff] %vm1596, %v1706
        %1725 = vst.msk [vmem:[#allocation5 + $0x98] sm:$0xff] %vm1596, %v1708
        %1726 = vst.msk [vmem:[#allocation5 + $0xb0] sm:$0xff] %vm1596, %v1710
        %v1728 = vrot.slane %v1465, 1
        %v1729 = vrot.slane %v1466, 1
        %v1730 = vsel %vm473, %v1728, %v1729
        %1731 = vrot.lane.b32.xlu0 %v1499, 96
        %v1732 = vpop.permute.xlu0 %1731
        %1733 = vrot.lane.b32.xlu0 %v1502, 96
        %v1734 = vpop.permute.xlu0 %1733
        %1735 = vrot.lane.b32.xlu0 %v1505, 96
        %v1736 = vpop.permute.xlu0 %1735
        %1737 = vrot.lane.b32.xlu0 %v1508, 96
        %v1738 = vpop.permute.xlu0 %1737
        %1739 = vrot.lane.b32.xlu0 %v1511, 96
        %v1740 = vpop.permute.xlu0 %1739
        %1741 = vrot.lane.b32.xlu0 %v1514, 96
        %v1742 = vpop.permute.xlu0 %1741
        %1743 = vrot.lane.b32.xlu0 %v1642, 96
        %v1744 = vpop.permute.xlu0 %1743
        %1745 = vrot.lane.b32.xlu0 %v1730, 96
        %v1746 = vpop.permute.xlu0 %1745
        %1755 = vst.msk [vmem:[#allocation5 + $0x8] sm:$0xff] %vm1630, %v1732
        %1756 = vst.msk [vmem:[#allocation5 + $0x20] sm:$0xff] %vm1630, %v1734
        %1757 = vst.msk [vmem:[#allocation5 + $0x38] sm:$0xff] %vm1630, %v1736
        %1758 = vst.msk [vmem:[#allocation5 + $0x50] sm:$0xff] %vm1630, %v1738
        %1759 = vst.msk [vmem:[#allocation5 + $0x68] sm:$0xff] %vm1630, %v1740
        %1760 = vst.msk [vmem:[#allocation5 + $0x80] sm:$0xff] %vm1630, %v1742
        %1761 = vst.msk [vmem:[#allocation5 + $0x98] sm:$0xff] %vm1630, %v1744
        %1762 = vst.msk [vmem:[#allocation5 + $0xb0] sm:$0xff] %vm1630, %v1746
        %v1763 = vrot.slane %v1465, 2
        %v1764 = vrot.slane %v1466, 2
        %v1765 = vsel %vm531, %v1763, %v1764
        %1774 = vst.msk [vmem:[#allocation5 + $0x10] sm:$0xff] %vm959, %v1556
        %1775 = vst.msk [vmem:[#allocation5 + $0x28] sm:$0xff] %vm959, %v1559
        %1776 = vst.msk [vmem:[#allocation5 + $0x40] sm:$0xff] %vm959, %v1562
        %1777 = vst.msk [vmem:[#allocation5 + $0x58] sm:$0xff] %vm959, %v1565
        %1778 = vst.msk [vmem:[#allocation5 + $0x70] sm:$0xff] %vm959, %v1568
        %1779 = vst.msk [vmem:[#allocation5 + $0x88] sm:$0xff] %vm959, %v1571
        %1780 = vst.msk [vmem:[#allocation5 + $0xa0] sm:$0xff] %vm959, %v1661
        %1781 = vst.msk [vmem:[#allocation5 + $0xb8] sm:$0xff] %vm959, %v1765
        %v1782 = vld [vmem:[%s2] sm:$0xff]
        %v1783 = vld [vmem:[%s2 + $0x8] sm:$0xff]
        %v1784 = vld [vmem:[%s2 + $0x10] sm:$0xff]
        %v1785 = vld [vmem:[%s2 + $0x18] sm:$0xff]
        %v1786 = vld [vmem:[%s2 + $0x20] sm:$0xff]
        %v1787 = vld [vmem:[%s2 + $0x28] sm:$0xff]
        %v1788 = vld [vmem:[%s2 + $0x30] sm:$0xff]
        %v1789 = vld [vmem:[%s2 + $0x38] sm:$0xff]
        %v1790 = vld [vmem:[%s2 + $0x40] sm:$0xff]
        %v1791 = vld [vmem:[%s2 + $0x48] sm:$0xff]
        %v1792 = vld [vmem:[%s2 + $0x50] sm:$0xff]
        %v1793 = vld [vmem:[%s2 + $0x58] sm:$0xff]
        %v1794 = vld [vmem:[#allocation5] sm:$0xff]
        %v1795 = vld [vmem:[#allocation5 + $0x8] sm:$0xff]
        %v1796 = vld [vmem:[#allocation5 + $0x10] sm:$0xff]
        %v1797 = vld [vmem:[#allocation5 + $0x18] sm:$0xff]
        %v1798 = vld [vmem:[#allocation5 + $0x20] sm:$0xff]
        %v1799 = vld [vmem:[#allocation5 + $0x28] sm:$0xff]
        %v1800 = vld [vmem:[#allocation5 + $0x30] sm:$0xff]
        %v1801 = vld [vmem:[#allocation5 + $0x38] sm:$0xff]
        %v1802 = vld [vmem:[#allocation5 + $0x40] sm:$0xff]
        %v1803 = vld [vmem:[#allocation5 + $0x48] sm:$0xff]
        %v1804 = vld [vmem:[#allocation5 + $0x50] sm:$0xff]
        %v1805 = vld [vmem:[#allocation5 + $0x58] sm:$0xff]
        %v1806 = vld [vmem:[#allocation5 + $0x60] sm:$0xff]
        %v1807 = vld [vmem:[#allocation5 + $0x68] sm:$0xff]
        %v1808 = vld [vmem:[#allocation5 + $0x70] sm:$0xff]
        %v1809 = vld [vmem:[#allocation5 + $0x78] sm:$0xff]
        %v1810 = vld [vmem:[#allocation5 + $0x80] sm:$0xff]
        %v1811 = vld [vmem:[#allocation5 + $0x88] sm:$0xff]
        %v1812 = vld [vmem:[#allocation5 + $0x90] sm:$0xff]
        %v1813 = vld [vmem:[#allocation5 + $0x98] sm:$0xff]
        %v1814 = vld [vmem:[#allocation5 + $0xa0] sm:$0xff]
        %v1815 = vld [vmem:[#allocation5 + $0xa8] sm:$0xff]
        %v1816 = vld [vmem:[#allocation5 + $0xb0] sm:$0xff]
        %v1817 = vld [vmem:[#allocation5 + $0xb8] sm:$0xff]
        %v1818 = vld [vmem:[%s4] sm:$0xff]
        %v1819 = vld [vmem:[%s4 + $0x8] sm:$0xff]
        %v1820 = vld [vmem:[%s4 + $0x10] sm:$0xff]
        %v1821 = vld [vmem:[%s4 + $0x18] sm:$0xff]
        %1823 = vset.pattern.permute.xlu0 0
        %1824 = vperm.xlu0 %1823, %v1818
        %v1825 = vpop.permute.xlu0 %1824
        %1828 = vset.pattern.permute.xlu0 0
        %1829 = vperm.xlu0 %1828, %v1819
        %v1830 = vpop.permute.xlu0 %1829
        %1833 = vset.pattern.permute.xlu0 0
        %1834 = vperm.xlu0 %1833, %v1820
        %v1835 = vpop.permute.xlu0 %1834
        %1838 = vset.pattern.permute.xlu0 0
        %1839 = vperm.xlu0 %1838, %v1821
        %v1840 = vpop.permute.xlu0 %1839
        %v1843 = vsel %vm959, %v1784, 0
        %v1846 = vsel %vm959, %v1787, 0
        %v1849 = vsel %vm959, %v1790, 0
        %v1852 = vsel %vm959, %v1793, 0
        %v1855 = vsel %vm959, %v1796, 0
        %v1858 = vsel %vm959, %v1799, 0
        %v1861 = vsel %vm959, %v1802, 0
        %v1864 = vsel %vm959, %v1805, 0
        %v1867 = vsel %vm959, %v1808, 0
        %v1870 = vsel %vm959, %v1811, 0
        %v1873 = vsel %vm959, %v1814, 0
        %v1876 = vsel %vm959, %v1817, 0
        %1878 = vmatprep.subr.mxu0 0.0
        %1879 = vmatpush1.xpose.msra.mxu0 0.0
        %1880 = vmatprep.subr.mxu0 0.0
        %1881 = vmatpush1.xpose.msra.mxu0 0.0
        %1882 = vmatprep.subr.mxu0 0.0
        %1883 = vmatpush1.xpose.msra.mxu0 0.0
        %1884 = vmatprep.subr.mxu0 0.0
        %1885 = vmatpush1.xpose.msra.mxu0 0.0
        %1886 = vmatprep.subr.mxu0 0.0
        %1887 = vmatpush1.xpose.msra.mxu0 0.0
        %1888 = vmatprep.subr.mxu0 0.0
        %1889 = vmatpush1.xpose.msra.mxu0 0.0
        %1890 = vmatprep.subr.mxu0 0.0
        %1891 = vmatpush1.xpose.msra.mxu0 0.0
        %1892 = vmatprep.subr.mxu0 0.0
        %1893 = vmatpush1.xpose.msra.mxu0 0.0
        %1894 = vmatprep.subr.mxu0 %v1816
        %1895 = vmatpush1.xpose.msra.mxu0 %v1815
        %1896 = vmatprep.subr.mxu0 %v1813
        %1897 = vmatpush1.xpose.msra.mxu0 %v1812
        %1898 = vmatprep.subr.mxu0 %v1810
        %1899 = vmatpush1.xpose.msra.mxu0 %v1809
        %1900 = vmatprep.subr.mxu0 %v1807
        %1901 = vmatpush1.xpose.msra.mxu0 %v1806
        %1902 = vmatprep.subr.mxu0 %v1804
        %1903 = vmatpush1.xpose.msra.mxu0 %v1803
        %1904 = vmatprep.subr.mxu0 %v1801
        %1905 = vmatpush1.xpose.msra.mxu0 %v1800
        %1906 = vmatprep.subr.mxu0 %v1798
        %1907 = vmatpush1.xpose.msra.mxu0 %v1797
        %1908 = vmatprep.subr.mxu0 %v1795
        %1909 = vmatpush1.xpose.msra.mxu0 %v1794
        %1910 = vmatprep.subr.mxu0 0.0
        %1911 = vmatpush2.xpose.msra.mxu0 0.0
        %1912 = vmatprep.subr.mxu0 0.0
        %1913 = vmatpush2.xpose.msra.mxu0 0.0
        %1914 = vmatprep.subr.mxu0 0.0
        %1915 = vmatpush2.xpose.msra.mxu0 0.0
        %1916 = vmatprep.subr.mxu0 0.0
        %1917 = vmatpush2.xpose.msra.mxu0 0.0
        %1918 = vmatprep.subr.mxu0 0.0
        %1919 = vmatpush2.xpose.msra.mxu0 0.0
        %1920 = vmatprep.subr.mxu0 0.0
        %1921 = vmatpush2.xpose.msra.mxu0 0.0
        %1922 = vmatprep.subr.mxu0 0.0
        %1923 = vmatpush2.xpose.msra.mxu0 0.0
        %1924 = vmatprep.subr.mxu0 0.0
        %1925 = vmatpush2.xpose.msra.mxu0 0.0
        %1926 = vmatprep.subr.mxu0 0.0
        %1927 = vmatpush2.xpose.msra.mxu0 0.0
        %1928 = vmatprep.subr.mxu0 0.0
        %1929 = vmatpush2.xpose.msra.mxu0 0.0
        %1930 = vmatprep.subr.mxu0 0.0
        %1931 = vmatpush2.xpose.msra.mxu0 0.0
        %1932 = vmatprep.subr.mxu0 0.0
        %1933 = vmatpush2.xpose.msra.mxu0 0.0
        %1934 = vmatprep.subr.mxu0 0.0
        %1935 = vmatpush2.xpose.msra.mxu0 0.0
        %1936 = vmatprep.subr.mxu0 0.0
        %1937 = vmatpush2.xpose.msra.mxu0 0.0
        %1938 = vmatprep.subr.mxu0 0.0
        %1939 = vmatpush2.xpose.msra.mxu0 0.0
        %1940 = vmatprep.subr.mxu0 0.0
        %1941 = vmatpush2.xpose.msra.mxu0 0.0
        %1942 = vmatprep.mubr.f32.mxu0 %v1783
        %1943 = vmatmul.mubr.f32.gmra.mxu0 %v1782
        %v1944 = vpop.f32.mrf.mxu0
        %v1945 = vadd.f32 %v1825, %v1944
        %v1946 = vpop.f32.mrf.mxu0
        %1947 = vmatprep.mubr.f32.mxu0 %v1786
        %1948 = vmatmul.mubr.f32.gmra.mxu0 %v1785
        %v1949 = vpop.f32.mrf.mxu0
        %v1950 = vadd.f32 %v1830, %v1949
        %v1951 = vpop.f32.mrf.mxu0
        %1952 = vmatprep.mubr.f32.mxu0 %v1789
        %1953 = vmatmul.mubr.f32.gmra.mxu0 %v1788
        %v1954 = vpop.f32.mrf.mxu0
        %v1955 = vadd.f32 %v1835, %v1954
        %v1956 = vpop.f32.mrf.mxu0
        %1957 = vmatprep.mubr.f32.mxu0 %v1792
        %1958 = vmatmul.mubr.f32.gmra.mxu0 %v1791
        %v1959 = vpop.f32.mrf.mxu0
        %v1960 = vadd.f32 %v1840, %v1959
        %v1961 = vpop.f32.mrf.mxu0
        %1962 = vdwg.mxu0
        %1963 = vmatprep.subr.mxu0 0.0
        %1964 = vmatpush1.xpose.msra.mxu0 0.0
        %1965 = vmatprep.subr.mxu0 0.0
        %1966 = vmatpush1.xpose.msra.mxu0 0.0
        %1967 = vmatprep.subr.mxu0 0.0
        %1968 = vmatpush1.xpose.msra.mxu0 0.0
        %1969 = vmatprep.subr.mxu0 0.0
        %1970 = vmatpush1.xpose.msra.mxu0 0.0
        %1971 = vmatprep.subr.mxu0 0.0
        %1972 = vmatpush1.xpose.msra.mxu0 0.0
        %1973 = vmatprep.subr.mxu0 0.0
        %1974 = vmatpush1.xpose.msra.mxu0 0.0
        %1975 = vmatprep.subr.mxu0 0.0
        %1976 = vmatpush1.xpose.msra.mxu0 0.0
        %1977 = vmatprep.subr.mxu0 0.0
        %1978 = vmatpush1.xpose.msra.mxu0 0.0
        %1979 = vmatprep.subr.mxu0 0.0
        %1980 = vmatpush1.xpose.msra.mxu0 %v1876
        %1981 = vmatprep.subr.mxu0 0.0
        %1982 = vmatpush1.xpose.msra.mxu0 %v1873
        %1983 = vmatprep.subr.mxu0 0.0
        %1984 = vmatpush1.xpose.msra.mxu0 %v1870
        %1985 = vmatprep.subr.mxu0 0.0
        %1986 = vmatpush1.xpose.msra.mxu0 %v1867
        %1987 = vmatprep.subr.mxu0 0.0
        %1988 = vmatpush1.xpose.msra.mxu0 %v1864
        %1989 = vmatprep.subr.mxu0 0.0
        %1990 = vmatpush1.xpose.msra.mxu0 %v1861
        %1991 = vmatprep.subr.mxu0 0.0
        %1992 = vmatpush1.xpose.msra.mxu0 %v1858
        %1993 = vmatprep.subr.mxu0 0.0
        %1994 = vmatpush1.xpose.msra.mxu0 %v1855
        %1995 = vmatprep.subr.mxu0 0.0
        %1996 = vmatpush2.xpose.msra.mxu0 0.0
        %1997 = vmatprep.subr.mxu0 0.0
        %1998 = vmatpush2.xpose.msra.mxu0 0.0
        %1999 = vmatprep.subr.mxu0 0.0
        %2000 = vmatpush2.xpose.msra.mxu0 0.0
        %2001 = vmatprep.subr.mxu0 0.0
        %2002 = vmatpush2.xpose.msra.mxu0 0.0
        %2003 = vmatprep.subr.mxu0 0.0
        %2004 = vmatpush2.xpose.msra.mxu0 0.0
        %2005 = vmatprep.subr.mxu0 0.0
        %2006 = vmatpush2.xpose.msra.mxu0 0.0
        %2007 = vmatprep.subr.mxu0 0.0
        %2008 = vmatpush2.xpose.msra.mxu0 0.0
        %2009 = vmatprep.subr.mxu0 0.0
        %2010 = vmatpush2.xpose.msra.mxu0 0.0
        %2011 = vmatprep.subr.mxu0 0.0
        %2012 = vmatpush2.xpose.msra.mxu0 0.0
        %2013 = vmatprep.subr.mxu0 0.0
        %2014 = vmatpush2.xpose.msra.mxu0 0.0
        %2015 = vmatprep.subr.mxu0 0.0
        %2016 = vmatpush2.xpose.msra.mxu0 0.0
        %2017 = vmatprep.subr.mxu0 0.0
        %2018 = vmatpush2.xpose.msra.mxu0 0.0
        %2019 = vmatprep.subr.mxu0 0.0
        %2020 = vmatpush2.xpose.msra.mxu0 0.0
        %2021 = vmatprep.subr.mxu0 0.0
        %2022 = vmatpush2.xpose.msra.mxu0 0.0
        %2023 = vmatprep.subr.mxu0 0.0
        %2024 = vmatpush2.xpose.msra.mxu0 0.0
        %2025 = vmatprep.subr.mxu0 0.0
        %2026 = vmatpush2.xpose.msra.mxu0 0.0
        %2027 = vmatprep.mubr.f32.mxu0 0.0
        %2028 = vmatmul.mubr.f32.gmra.mxu0 %v1843
        %v2029 = vpop.f32.mrf.mxu0
        %v2030 = vadd.f32 %v1945, %v2029
        %v2031 = vpop.f32.mrf.mxu0
        %2032 = vmatprep.mubr.f32.mxu0 0.0
        %2033 = vmatmul.mubr.f32.gmra.mxu0 %v1846
        %v2034 = vpop.f32.mrf.mxu0
        %v2035 = vadd.f32 %v1950, %v2034
        %v2036 = vpop.f32.mrf.mxu0
        %2037 = vmatprep.mubr.f32.mxu0 0.0
        %2038 = vmatmul.mubr.f32.gmra.mxu0 %v1849
        %v2039 = vpop.f32.mrf.mxu0
        %v2040 = vadd.f32 %v1955, %v2039
        %v2041 = vpop.f32.mrf.mxu0
        %2042 = vmatprep.mubr.f32.mxu0 0.0
        %2043 = vmatmul.mubr.f32.gmra.mxu0 %v1852
        %v2044 = vpop.f32.mrf.mxu0
        %v2045 = vadd.f32 %v1960, %v2044
        %v2046 = vpop.f32.mrf.mxu0
        %2047 = vdwg.mxu0
        %v2052 = vcombine.high %v2030, %v2030
        %v2054 = vunpack.c.l.s4 1966171168
        %v2055 = vunpack.c.0.s8 %v2054
        %v2056 = vlaneseq
        %v2057 = vshrl.u32 %v2056, 7
        %v2058 = vsub.s32 %v2055, %v2057
        %v2059 = vrot.slane %v2030, %v2058
        %v2061 = vunpack.c.l.s4 1966171168
        %v2062 = vunpack.c.0.s8 %v2061
        %v2063 = vlaneseq
        %v2064 = vshrl.u32 %v2063, 7
        %v2065 = vsub.s32 %v2062, %v2064
        %v2066 = vrot.slane %v2052, %v2065
        %v2067 = vcombine.high %v2059, %v2059
        %v2068 = vcombine.high %v2066, %v2066
        %v2070 = vunpack.c.l.s4 1966171168
        %v2071 = vunpack.c.0.s8 %v2070
        %v2072 = vlaneseq
        %v2073 = vshrl.u32 %v2072, 7
        %v2074 = vsub.s32 %v2071, %v2073
        %v2075 = vrot.slane %v2059, %v2074
        %v2077 = vunpack.c.l.s4 1966171168
        %v2078 = vunpack.c.0.s8 %v2077
        %v2079 = vlaneseq
        %v2080 = vshrl.u32 %v2079, 7
        %v2081 = vsub.s32 %v2078, %v2080
        %v2082 = vrot.slane %v2066, %v2081
        %v2084 = vunpack.c.l.s4 1966171168
        %v2085 = vunpack.c.0.s8 %v2084
        %v2086 = vlaneseq
        %v2087 = vshrl.u32 %v2086, 7
        %v2088 = vsub.s32 %v2085, %v2087
        %v2089 = vrot.slane %v2067, %v2088
        %v2091 = vunpack.c.l.s4 1966171168
        %v2092 = vunpack.c.0.s8 %v2091
        %v2093 = vlaneseq
        %v2094 = vshrl.u32 %v2093, 7
        %v2095 = vsub.s32 %v2092, %v2094
        %v2096 = vrot.slane %v2068, %v2095
        %v2097 = vcombine.high %v2075, %v2075
        %v2098 = vcombine.high %v2082, %v2082
        %v2099 = vcombine.high %v2089, %v2089
        %v2100 = vcombine.high %v2096, %v2096
        %v2101 = vcombine.high %v2035, %v2035
        %v2103 = vunpack.c.l.s4 1966171168
        %v2104 = vunpack.c.0.s8 %v2103
        %v2105 = vlaneseq
        %v2106 = vshrl.u32 %v2105, 7
        %v2107 = vsub.s32 %v2104, %v2106
        %v2108 = vrot.slane %v2035, %v2107
        %v2110 = vunpack.c.l.s4 1966171168
        %v2111 = vunpack.c.0.s8 %v2110
        %v2112 = vlaneseq
        %v2113 = vshrl.u32 %v2112, 7
        %v2114 = vsub.s32 %v2111, %v2113
        %v2115 = vrot.slane %v2101, %v2114
        %v2116 = vcombine.high %v2108, %v2108
        %v2117 = vcombine.high %v2115, %v2115
        %v2119 = vunpack.c.l.s4 1966171168
        %v2120 = vunpack.c.0.s8 %v2119
        %v2121 = vlaneseq
        %v2122 = vshrl.u32 %v2121, 7
        %v2123 = vsub.s32 %v2120, %v2122
        %v2124 = vrot.slane %v2108, %v2123
        %v2126 = vunpack.c.l.s4 1966171168
        %v2127 = vunpack.c.0.s8 %v2126
        %v2128 = vlaneseq
        %v2129 = vshrl.u32 %v2128, 7
        %v2130 = vsub.s32 %v2127, %v2129
        %v2131 = vrot.slane %v2115, %v2130
        %v2133 = vunpack.c.l.s4 1966171168
        %v2134 = vunpack.c.0.s8 %v2133
        %v2135 = vlaneseq
        %v2136 = vshrl.u32 %v2135, 7
        %v2137 = vsub.s32 %v2134, %v2136
        %v2138 = vrot.slane %v2116, %v2137
        %v2140 = vunpack.c.l.s4 1966171168
        %v2141 = vunpack.c.0.s8 %v2140
        %v2142 = vlaneseq
        %v2143 = vshrl.u32 %v2142, 7
        %v2144 = vsub.s32 %v2141, %v2143
        %v2145 = vrot.slane %v2117, %v2144
        %v2146 = vcombine.high %v2124, %v2124
        %v2147 = vcombine.high %v2131, %v2131
        %v2148 = vcombine.high %v2138, %v2138
        %v2149 = vcombine.high %v2145, %v2145
        %v2150 = vcombine.high %v2040, %v2040
        %v2152 = vunpack.c.l.s4 1966171168
        %v2153 = vunpack.c.0.s8 %v2152
        %v2154 = vlaneseq
        %v2155 = vshrl.u32 %v2154, 7
        %v2156 = vsub.s32 %v2153, %v2155
        %v2157 = vrot.slane %v2040, %v2156
        %v2159 = vunpack.c.l.s4 1966171168
        %v2160 = vunpack.c.0.s8 %v2159
        %v2161 = vlaneseq
        %v2162 = vshrl.u32 %v2161, 7
        %v2163 = vsub.s32 %v2160, %v2162
        %v2164 = vrot.slane %v2150, %v2163
        %v2165 = vcombine.high %v2157, %v2157
        %v2166 = vcombine.high %v2164, %v2164
        %v2168 = vunpack.c.l.s4 1966171168
        %v2169 = vunpack.c.0.s8 %v2168
        %v2170 = vlaneseq
        %v2171 = vshrl.u32 %v2170, 7
        %v2172 = vsub.s32 %v2169, %v2171
        %v2173 = vrot.slane %v2157, %v2172
        %v2175 = vunpack.c.l.s4 1966171168
        %v2176 = vunpack.c.0.s8 %v2175
        %v2177 = vlaneseq
        %v2178 = vshrl.u32 %v2177, 7
        %v2179 = vsub.s32 %v2176, %v2178
        %v2180 = vrot.slane %v2164, %v2179
        %v2182 = vunpack.c.l.s4 1966171168
        %v2183 = vunpack.c.0.s8 %v2182
        %v2184 = vlaneseq
        %v2185 = vshrl.u32 %v2184, 7
        %v2186 = vsub.s32 %v2183, %v2185
        %v2187 = vrot.slane %v2165, %v2186
        %v2189 = vunpack.c.l.s4 1966171168
        %v2190 = vunpack.c.0.s8 %v2189
        %v2191 = vlaneseq
        %v2192 = vshrl.u32 %v2191, 7
        %v2193 = vsub.s32 %v2190, %v2192
        %v2194 = vrot.slane %v2166, %v2193
        %v2195 = vcombine.high %v2173, %v2173
        %v2196 = vcombine.high %v2180, %v2180
        %v2197 = vcombine.high %v2187, %v2187
        %v2198 = vcombine.high %v2194, %v2194
        %v2199 = vcombine.high %v2045, %v2045
        %v2201 = vunpack.c.l.s4 1966171168
        %v2202 = vunpack.c.0.s8 %v2201
        %v2203 = vlaneseq
        %v2204 = vshrl.u32 %v2203, 7
        %v2205 = vsub.s32 %v2202, %v2204
        %v2206 = vrot.slane %v2045, %v2205
        %v2208 = vunpack.c.l.s4 1966171168
        %v2209 = vunpack.c.0.s8 %v2208
        %v2210 = vlaneseq
        %v2211 = vshrl.u32 %v2210, 7
        %v2212 = vsub.s32 %v2209, %v2211
        %v2213 = vrot.slane %v2199, %v2212
        %v2214 = vcombine.high %v2206, %v2206
        %v2215 = vcombine.high %v2213, %v2213
        %v2217 = vunpack.c.l.s4 1966171168
        %v2218 = vunpack.c.0.s8 %v2217
        %v2219 = vlaneseq
        %v2220 = vshrl.u32 %v2219, 7
        %v2221 = vsub.s32 %v2218, %v2220
        %v2222 = vrot.slane %v2206, %v2221
        %v2224 = vunpack.c.l.s4 1966171168
        %v2225 = vunpack.c.0.s8 %v2224
        %v2226 = vlaneseq
        %v2227 = vshrl.u32 %v2226, 7
        %v2228 = vsub.s32 %v2225, %v2227
        %v2229 = vrot.slane %v2213, %v2228
        %v2231 = vunpack.c.l.s4 1966171168
        %v2232 = vunpack.c.0.s8 %v2231
        %v2233 = vlaneseq
        %v2234 = vshrl.u32 %v2233, 7
        %v2235 = vsub.s32 %v2232, %v2234
        %v2236 = vrot.slane %v2214, %v2235
        %v2238 = vunpack.c.l.s4 1966171168
        %v2239 = vunpack.c.0.s8 %v2238
        %v2240 = vlaneseq
        %v2241 = vshrl.u32 %v2240, 7
        %v2242 = vsub.s32 %v2239, %v2241
        %v2243 = vrot.slane %v2215, %v2242
        %v2244 = vcombine.high %v2222, %v2222
        %v2245 = vcombine.high %v2229, %v2229
        %v2246 = vcombine.high %v2236, %v2236
        %v2247 = vcombine.high %v2243, %v2243
        %vm2280 = vcmask 516096
        %v2281 = vsel %vm2280, %v2075, 0.0
        %2282 = vadd.xlane.f32.xlu0 %v2281
        %v2283 = vpop.xlane.xlu0 %2282
        %v2284 = vsel %vm2280, %v2089, 0.0
        %2285 = vadd.xlane.f32.xlu0 %v2284
        %v2286 = vpop.xlane.xlu0 %2285
        %v2287 = vsel %vm2280, %v2097, 0.0
        %2288 = vadd.xlane.f32.xlu0 %v2287
        %v2289 = vpop.xlane.xlu0 %2288
        %v2290 = vsel %vm2280, %v2099, 0.0
        %2291 = vadd.xlane.f32.xlu0 %v2290
        %v2292 = vpop.xlane.xlu0 %2291
        %v2293 = vsel %vm2280, %v2082, 0.0
        %2294 = vadd.xlane.f32.xlu0 %v2293
        %v2295 = vpop.xlane.xlu0 %2294
        %v2296 = vsel %vm2280, %v2096, 0.0
        %2297 = vadd.xlane.f32.xlu0 %v2296
        %v2298 = vpop.xlane.xlu0 %2297
        %v2299 = vsel %vm2280, %v2098, 0.0
        %2300 = vadd.xlane.f32.xlu0 %v2299
        %v2301 = vpop.xlane.xlu0 %2300
        %v2302 = vsel %vm2280, %v2100, 0.0
        %2303 = vadd.xlane.f32.xlu0 %v2302
        %v2304 = vpop.xlane.xlu0 %2303
        %v2305 = vsel %vm2280, %v2124, 0.0
        %2306 = vadd.xlane.f32.xlu0 %v2305
        %v2307 = vpop.xlane.xlu0 %2306
        %v2308 = vsel %vm2280, %v2138, 0.0
        %2309 = vadd.xlane.f32.xlu0 %v2308
        %v2310 = vpop.xlane.xlu0 %2309
        %v2311 = vsel %vm2280, %v2146, 0.0
        %2312 = vadd.xlane.f32.xlu0 %v2311
        %v2313 = vpop.xlane.xlu0 %2312
        %v2314 = vsel %vm2280, %v2148, 0.0
        %2315 = vadd.xlane.f32.xlu0 %v2314
        %v2316 = vpop.xlane.xlu0 %2315
        %v2317 = vsel %vm2280, %v2131, 0.0
        %2318 = vadd.xlane.f32.xlu0 %v2317
        %v2319 = vpop.xlane.xlu0 %2318
        %v2320 = vsel %vm2280, %v2145, 0.0
        %2321 = vadd.xlane.f32.xlu0 %v2320
        %v2322 = vpop.xlane.xlu0 %2321
        %v2323 = vsel %vm2280, %v2147, 0.0
        %2324 = vadd.xlane.f32.xlu0 %v2323
        %v2325 = vpop.xlane.xlu0 %2324
        %v2326 = vsel %vm2280, %v2149, 0.0
        %2327 = vadd.xlane.f32.xlu0 %v2326
        %v2328 = vpop.xlane.xlu0 %2327
        %v2329 = vsel %vm2280, %v2173, 0.0
        %2330 = vadd.xlane.f32.xlu0 %v2329
        %v2331 = vpop.xlane.xlu0 %2330
        %v2332 = vsel %vm2280, %v2187, 0.0
        %2333 = vadd.xlane.f32.xlu0 %v2332
        %v2334 = vpop.xlane.xlu0 %2333
        %v2335 = vsel %vm2280, %v2195, 0.0
        %2336 = vadd.xlane.f32.xlu0 %v2335
        %v2337 = vpop.xlane.xlu0 %2336
        %v2338 = vsel %vm2280, %v2197, 0.0
        %2339 = vadd.xlane.f32.xlu0 %v2338
        %v2340 = vpop.xlane.xlu0 %2339
        %v2341 = vsel %vm2280, %v2180, 0.0
        %2342 = vadd.xlane.f32.xlu0 %v2341
        %v2343 = vpop.xlane.xlu0 %2342
        %v2344 = vsel %vm2280, %v2194, 0.0
        %2345 = vadd.xlane.f32.xlu0 %v2344
        %v2346 = vpop.xlane.xlu0 %2345
        %v2347 = vsel %vm2280, %v2196, 0.0
        %2348 = vadd.xlane.f32.xlu0 %v2347
        %v2349 = vpop.xlane.xlu0 %2348
        %v2350 = vsel %vm2280, %v2198, 0.0
        %2351 = vadd.xlane.f32.xlu0 %v2350
        %v2352 = vpop.xlane.xlu0 %2351
        %v2353 = vsel %vm2280, %v2222, 0.0
        %2354 = vadd.xlane.f32.xlu0 %v2353
        %v2355 = vpop.xlane.xlu0 %2354
        %v2356 = vsel %vm2280, %v2236, 0.0
        %2357 = vadd.xlane.f32.xlu0 %v2356
        %v2358 = vpop.xlane.xlu0 %2357
        %v2359 = vsel %vm2280, %v2244, 0.0
        %2360 = vadd.xlane.f32.xlu0 %v2359
        %v2361 = vpop.xlane.xlu0 %2360
        %v2362 = vsel %vm2280, %v2246, 0.0
        %2363 = vadd.xlane.f32.xlu0 %v2362
        %v2364 = vpop.xlane.xlu0 %2363
        %v2365 = vsel %vm2280, %v2229, 0.0
        %2366 = vadd.xlane.f32.xlu0 %v2365
        %v2367 = vpop.xlane.xlu0 %2366
        %v2368 = vsel %vm2280, %v2243, 0.0
        %2369 = vadd.xlane.f32.xlu0 %v2368
        %v2370 = vpop.xlane.xlu0 %2369
        %v2371 = vsel %vm2280, %v2245, 0.0
        %2372 = vadd.xlane.f32.xlu0 %v2371
        %v2373 = vpop.xlane.xlu0 %2372
        %v2374 = vsel %vm2280, %v2247, 0.0
        %2375 = vadd.xlane.f32.xlu0 %v2374
        %v2376 = vpop.xlane.xlu0 %2375
        %v2377 = vadd.f32 %v2283, 0.0
        %v2378 = vadd.f32 %v2286, 0.0
        %v2379 = vadd.f32 %v2289, 0.0
        %v2380 = vadd.f32 %v2292, 0.0
        %v2381 = vadd.f32 %v2295, 0.0
        %v2382 = vadd.f32 %v2298, 0.0
        %v2383 = vadd.f32 %v2301, 0.0
        %v2384 = vadd.f32 %v2304, 0.0
        %v2385 = vadd.f32 %v2307, 0.0
        %v2386 = vadd.f32 %v2310, 0.0
        %v2387 = vadd.f32 %v2313, 0.0
        %v2388 = vadd.f32 %v2316, 0.0
        %v2389 = vadd.f32 %v2319, 0.0
        %v2390 = vadd.f32 %v2322, 0.0
        %v2391 = vadd.f32 %v2325, 0.0
        %v2392 = vadd.f32 %v2328, 0.0
        %v2393 = vadd.f32 %v2331, 0.0
        %v2394 = vadd.f32 %v2334, 0.0
        %v2395 = vadd.f32 %v2337, 0.0
        %v2396 = vadd.f32 %v2340, 0.0
        %v2397 = vadd.f32 %v2343, 0.0
        %v2398 = vadd.f32 %v2346, 0.0
        %v2399 = vadd.f32 %v2349, 0.0
        %v2400 = vadd.f32 %v2352, 0.0
        %v2401 = vadd.f32 %v2355, 0.0
        %v2402 = vadd.f32 %v2358, 0.0
        %v2403 = vadd.f32 %v2361, 0.0
        %v2404 = vadd.f32 %v2364, 0.0
        %v2405 = vadd.f32 %v2367, 0.0
        %v2406 = vadd.f32 %v2370, 0.0
        %v2407 = vadd.f32 %v2373, 0.0
        %v2408 = vadd.f32 %v2376, 0.0
        %v2409 = vmul.f32 %v2377, %v1054
        %v2410 = vmul.f32 %v2378, %v1054
        %v2411 = vmul.f32 %v2379, %v1054
        %v2412 = vmul.f32 %v2380, %v1054
        %v2413 = vmul.f32 %v2381, %v1054
        %v2414 = vmul.f32 %v2382, %v1054
        %v2415 = vmul.f32 %v2383, %v1054
        %v2416 = vmul.f32 %v2384, %v1054
        %v2417 = vmul.f32 %v2385, %v1054
        %v2418 = vmul.f32 %v2386, %v1054
        %v2419 = vmul.f32 %v2387, %v1054
        %v2420 = vmul.f32 %v2388, %v1054
        %v2421 = vmul.f32 %v2389, %v1054
        %v2422 = vmul.f32 %v2390, %v1054
        %v2423 = vmul.f32 %v2391, %v1054
        %v2424 = vmul.f32 %v2392, %v1054
        %v2425 = vmul.f32 %v2393, %v1054
        %v2426 = vmul.f32 %v2394, %v1054
        %v2427 = vmul.f32 %v2395, %v1054
        %v2428 = vmul.f32 %v2396, %v1054
        %v2429 = vmul.f32 %v2397, %v1054
        %v2430 = vmul.f32 %v2398, %v1054
        %v2431 = vmul.f32 %v2399, %v1054
        %v2432 = vmul.f32 %v2400, %v1054
        %v2433 = vmul.f32 %v2401, %v1054
        %v2434 = vmul.f32 %v2402, %v1054
        %v2435 = vmul.f32 %v2403, %v1054
        %v2436 = vmul.f32 %v2404, %v1054
        %v2437 = vmul.f32 %v2405, %v1054
        %v2438 = vmul.f32 %v2406, %v1054
        %v2439 = vmul.f32 %v2407, %v1054
        %v2440 = vmul.f32 %v2408, %v1054
        %v2441 = vsub.f32 %v2075, %v2409
        %v2442 = vsub.f32 %v2089, %v2410
        %v2443 = vsub.f32 %v2097, %v2411
        %v2444 = vsub.f32 %v2099, %v2412
        %v2445 = vsub.f32 %v2082, %v2413
        %v2446 = vsub.f32 %v2096, %v2414
        %v2447 = vsub.f32 %v2098, %v2415
        %v2448 = vsub.f32 %v2100, %v2416
        %v2449 = vsub.f32 %v2124, %v2417
        %v2450 = vsub.f32 %v2138, %v2418
        %v2451 = vsub.f32 %v2146, %v2419
        %v2452 = vsub.f32 %v2148, %v2420
        %v2453 = vsub.f32 %v2131, %v2421
        %v2454 = vsub.f32 %v2145, %v2422
        %v2455 = vsub.f32 %v2147, %v2423
        %v2456 = vsub.f32 %v2149, %v2424
        %v2457 = vsub.f32 %v2173, %v2425
        %v2458 = vsub.f32 %v2187, %v2426
        %v2459 = vsub.f32 %v2195, %v2427
        %v2460 = vsub.f32 %v2197, %v2428
        %v2461 = vsub.f32 %v2180, %v2429
        %v2462 = vsub.f32 %v2194, %v2430
        %v2463 = vsub.f32 %v2196, %v2431
        %v2464 = vsub.f32 %v2198, %v2432
        %v2465 = vsub.f32 %v2222, %v2433
        %v2466 = vsub.f32 %v2236, %v2434
        %v2467 = vsub.f32 %v2244, %v2435
        %v2468 = vsub.f32 %v2246, %v2436
        %v2469 = vsub.f32 %v2229, %v2437
        %v2470 = vsub.f32 %v2243, %v2438
        %v2471 = vsub.f32 %v2245, %v2439
        %v2472 = vsub.f32 %v2247, %v2440
        %v2473 = vmul.f32 %v2441, %v2441
        %v2474 = vmul.f32 %v2442, %v2442
        %v2475 = vmul.f32 %v2443, %v2443
        %v2476 = vmul.f32 %v2444, %v2444
        %v2477 = vmul.f32 %v2445, %v2445
        %v2478 = vmul.f32 %v2446, %v2446
        %v2479 = vmul.f32 %v2447, %v2447
        %v2480 = vmul.f32 %v2448, %v2448
        %v2481 = vmul.f32 %v2449, %v2449
        %v2482 = vmul.f32 %v2450, %v2450
        %v2483 = vmul.f32 %v2451, %v2451
        %v2484 = vmul.f32 %v2452, %v2452
        %v2485 = vmul.f32 %v2453, %v2453
        %v2486 = vmul.f32 %v2454, %v2454
        %v2487 = vmul.f32 %v2455, %v2455
        %v2488 = vmul.f32 %v2456, %v2456
        %v2489 = vmul.f32 %v2457, %v2457
        %v2490 = vmul.f32 %v2458, %v2458
        %v2491 = vmul.f32 %v2459, %v2459
        %v2492 = vmul.f32 %v2460, %v2460
        %v2493 = vmul.f32 %v2461, %v2461
        %v2494 = vmul.f32 %v2462, %v2462
        %v2495 = vmul.f32 %v2463, %v2463
        %v2496 = vmul.f32 %v2464, %v2464
        %v2497 = vmul.f32 %v2465, %v2465
        %v2498 = vmul.f32 %v2466, %v2466
        %v2499 = vmul.f32 %v2467, %v2467
        %v2500 = vmul.f32 %v2468, %v2468
        %v2501 = vmul.f32 %v2469, %v2469
        %v2502 = vmul.f32 %v2470, %v2470
        %v2503 = vmul.f32 %v2471, %v2471
        %v2504 = vmul.f32 %v2472, %v2472
        %v2505 = vsel %vm2280, %v2473, 0.0
        %2506 = vadd.xlane.f32.xlu0 %v2505
        %v2507 = vpop.xlane.xlu0 %2506
        %v2508 = vsel %vm2280, %v2474, 0.0
        %2509 = vadd.xlane.f32.xlu0 %v2508
        %v2510 = vpop.xlane.xlu0 %2509
        %v2511 = vsel %vm2280, %v2475, 0.0
        %2512 = vadd.xlane.f32.xlu0 %v2511
        %v2513 = vpop.xlane.xlu0 %2512
        %v2514 = vsel %vm2280, %v2476, 0.0
        %2515 = vadd.xlane.f32.xlu0 %v2514
        %v2516 = vpop.xlane.xlu0 %2515
        %v2517 = vsel %vm2280, %v2477, 0.0
        %2518 = vadd.xlane.f32.xlu0 %v2517
        %v2519 = vpop.xlane.xlu0 %2518
        %v2520 = vsel %vm2280, %v2478, 0.0
        %2521 = vadd.xlane.f32.xlu0 %v2520
        %v2522 = vpop.xlane.xlu0 %2521
        %v2523 = vsel %vm2280, %v2479, 0.0
        %2524 = vadd.xlane.f32.xlu0 %v2523
        %v2525 = vpop.xlane.xlu0 %2524
        %v2526 = vsel %vm2280, %v2480, 0.0
        %2527 = vadd.xlane.f32.xlu0 %v2526
        %v2528 = vpop.xlane.xlu0 %2527
        %v2529 = vsel %vm2280, %v2481, 0.0
        %2530 = vadd.xlane.f32.xlu0 %v2529
        %v2531 = vpop.xlane.xlu0 %2530
        %v2532 = vsel %vm2280, %v2482, 0.0
        %2533 = vadd.xlane.f32.xlu0 %v2532
        %v2534 = vpop.xlane.xlu0 %2533
        %v2535 = vsel %vm2280, %v2483, 0.0
        %2536 = vadd.xlane.f32.xlu0 %v2535
        %v2537 = vpop.xlane.xlu0 %2536
        %v2538 = vsel %vm2280, %v2484, 0.0
        %2539 = vadd.xlane.f32.xlu0 %v2538
        %v2540 = vpop.xlane.xlu0 %2539
        %v2541 = vsel %vm2280, %v2485, 0.0
        %2542 = vadd.xlane.f32.xlu0 %v2541
        %v2543 = vpop.xlane.xlu0 %2542
        %v2544 = vsel %vm2280, %v2486, 0.0
        %2545 = vadd.xlane.f32.xlu0 %v2544
        %v2546 = vpop.xlane.xlu0 %2545
        %v2547 = vsel %vm2280, %v2487, 0.0
        %2548 = vadd.xlane.f32.xlu0 %v2547
        %v2549 = vpop.xlane.xlu0 %2548
        %v2550 = vsel %vm2280, %v2488, 0.0
        %2551 = vadd.xlane.f32.xlu0 %v2550
        %v2552 = vpop.xlane.xlu0 %2551
        %v2553 = vsel %vm2280, %v2489, 0.0
        %2554 = vadd.xlane.f32.xlu0 %v2553
        %v2555 = vpop.xlane.xlu0 %2554
        %v2556 = vsel %vm2280, %v2490, 0.0
        %2557 = vadd.xlane.f32.xlu0 %v2556
        %v2558 = vpop.xlane.xlu0 %2557
        %v2559 = vsel %vm2280, %v2491, 0.0
        %2560 = vadd.xlane.f32.xlu0 %v2559
        %v2561 = vpop.xlane.xlu0 %2560
        %v2562 = vsel %vm2280, %v2492, 0.0
        %2563 = vadd.xlane.f32.xlu0 %v2562
        %v2564 = vpop.xlane.xlu0 %2563
        %v2565 = vsel %vm2280, %v2493, 0.0
        %2566 = vadd.xlane.f32.xlu0 %v2565
        %v2567 = vpop.xlane.xlu0 %2566
        %v2568 = vsel %vm2280, %v2494, 0.0
        %2569 = vadd.xlane.f32.xlu0 %v2568
        %v2570 = vpop.xlane.xlu0 %2569
        %v2571 = vsel %vm2280, %v2495, 0.0
        %2572 = vadd.xlane.f32.xlu0 %v2571
        %v2573 = vpop.xlane.xlu0 %2572
        %v2574 = vsel %vm2280, %v2496, 0.0
        %2575 = vadd.xlane.f32.xlu0 %v2574
        %v2576 = vpop.xlane.xlu0 %2575
        %v2577 = vsel %vm2280, %v2497, 0.0
        %2578 = vadd.xlane.f32.xlu0 %v2577
        %v2579 = vpop.xlane.xlu0 %2578
        %v2580 = vsel %vm2280, %v2498, 0.0
        %2581 = vadd.xlane.f32.xlu0 %v2580
        %v2582 = vpop.xlane.xlu0 %2581
        %v2583 = vsel %vm2280, %v2499, 0.0
        %2584 = vadd.xlane.f32.xlu0 %v2583
        %v2585 = vpop.xlane.xlu0 %2584
        %v2586 = vsel %vm2280, %v2500, 0.0
        %2587 = vadd.xlane.f32.xlu0 %v2586
        %v2588 = vpop.xlane.xlu0 %2587
        %v2589 = vsel %vm2280, %v2501, 0.0
        %2590 = vadd.xlane.f32.xlu0 %v2589
        %v2591 = vpop.xlane.xlu0 %2590
        %v2592 = vsel %vm2280, %v2502, 0.0
        %2593 = vadd.xlane.f32.xlu0 %v2592
        %v2594 = vpop.xlane.xlu0 %2593
        %v2595 = vsel %vm2280, %v2503, 0.0
        %2596 = vadd.xlane.f32.xlu0 %v2595
        %v2597 = vpop.xlane.xlu0 %2596
        %v2598 = vsel %vm2280, %v2504, 0.0
        %2599 = vadd.xlane.f32.xlu0 %v2598
        %v2600 = vpop.xlane.xlu0 %2599
        %v2601 = vadd.f32 %v2507, 0.0
        %v2602 = vadd.f32 %v2510, 0.0
        %v2603 = vadd.f32 %v2513, 0.0
        %v2604 = vadd.f32 %v2516, 0.0
        %v2605 = vadd.f32 %v2519, 0.0
        %v2606 = vadd.f32 %v2522, 0.0
        %v2607 = vadd.f32 %v2525, 0.0
        %v2608 = vadd.f32 %v2528, 0.0
        %v2609 = vadd.f32 %v2531, 0.0
        %v2610 = vadd.f32 %v2534, 0.0
        %v2611 = vadd.f32 %v2537, 0.0
        %v2612 = vadd.f32 %v2540, 0.0
        %v2613 = vadd.f32 %v2543, 0.0
        %v2614 = vadd.f32 %v2546, 0.0
        %v2615 = vadd.f32 %v2549, 0.0
        %v2616 = vadd.f32 %v2552, 0.0
        %v2617 = vadd.f32 %v2555, 0.0
        %v2618 = vadd.f32 %v2558, 0.0
        %v2619 = vadd.f32 %v2561, 0.0
        %v2620 = vadd.f32 %v2564, 0.0
        %v2621 = vadd.f32 %v2567, 0.0
        %v2622 = vadd.f32 %v2570, 0.0
        %v2623 = vadd.f32 %v2573, 0.0
        %v2624 = vadd.f32 %v2576, 0.0
        %v2625 = vadd.f32 %v2579, 0.0
        %v2626 = vadd.f32 %v2582, 0.0
        %v2627 = vadd.f32 %v2585, 0.0
        %v2628 = vadd.f32 %v2588, 0.0
        %v2629 = vadd.f32 %v2591, 0.0
        %v2630 = vadd.f32 %v2594, 0.0
        %v2631 = vadd.f32 %v2597, 0.0
        %v2632 = vadd.f32 %v2600, 0.0
        %v2633 = vmul.f32 %v2601, %v1054
        %v2634 = vmul.f32 %v2602, %v1054
        %v2635 = vmul.f32 %v2603, %v1054
        %v2636 = vmul.f32 %v2604, %v1054
        %v2637 = vmul.f32 %v2605, %v1054
        %v2638 = vmul.f32 %v2606, %v1054
        %v2639 = vmul.f32 %v2607, %v1054
        %v2640 = vmul.f32 %v2608, %v1054
        %v2641 = vmul.f32 %v2609, %v1054
        %v2642 = vmul.f32 %v2610, %v1054
        %v2643 = vmul.f32 %v2611, %v1054
        %v2644 = vmul.f32 %v2612, %v1054
        %v2645 = vmul.f32 %v2613, %v1054
        %v2646 = vmul.f32 %v2614, %v1054
        %v2647 = vmul.f32 %v2615, %v1054
        %v2648 = vmul.f32 %v2616, %v1054
        %v2649 = vmul.f32 %v2617, %v1054
        %v2650 = vmul.f32 %v2618, %v1054
        %v2651 = vmul.f32 %v2619, %v1054
        %v2652 = vmul.f32 %v2620, %v1054
        %v2653 = vmul.f32 %v2621, %v1054
        %v2654 = vmul.f32 %v2622, %v1054
        %v2655 = vmul.f32 %v2623, %v1054
        %v2656 = vmul.f32 %v2624, %v1054
        %v2657 = vmul.f32 %v2625, %v1054
        %v2658 = vmul.f32 %v2626, %v1054
        %v2659 = vmul.f32 %v2627, %v1054
        %v2660 = vmul.f32 %v2628, %v1054
        %v2661 = vmul.f32 %v2629, %v1054
        %v2662 = vmul.f32 %v2630, %v1054
        %v2663 = vmul.f32 %v2631, %v1054
        %v2664 = vmul.f32 %v2632, %v1054
        %v2665 = vadd.f32 %v2633, 1e-05
        %v2666 = vadd.f32 %v2634, 1e-05
        %v2667 = vadd.f32 %v2635, 1e-05
        %v2668 = vadd.f32 %v2636, 1e-05
        %v2669 = vadd.f32 %v2637, 1e-05
        %v2670 = vadd.f32 %v2638, 1e-05
        %v2671 = vadd.f32 %v2639, 1e-05
        %v2672 = vadd.f32 %v2640, 1e-05
        %v2673 = vadd.f32 %v2641, 1e-05
        %v2674 = vadd.f32 %v2642, 1e-05
        %v2675 = vadd.f32 %v2643, 1e-05
        %v2676 = vadd.f32 %v2644, 1e-05
        %v2677 = vadd.f32 %v2645, 1e-05
        %v2678 = vadd.f32 %v2646, 1e-05
        %v2679 = vadd.f32 %v2647, 1e-05
        %v2680 = vadd.f32 %v2648, 1e-05
        %v2681 = vadd.f32 %v2649, 1e-05
        %v2682 = vadd.f32 %v2650, 1e-05
        %v2683 = vadd.f32 %v2651, 1e-05
        %v2684 = vadd.f32 %v2652, 1e-05
        %v2685 = vadd.f32 %v2653, 1e-05
        %v2686 = vadd.f32 %v2654, 1e-05
        %v2687 = vadd.f32 %v2655, 1e-05
        %v2688 = vadd.f32 %v2656, 1e-05
        %v2689 = vadd.f32 %v2657, 1e-05
        %v2690 = vadd.f32 %v2658, 1e-05
        %v2691 = vadd.f32 %v2659, 1e-05
        %v2692 = vadd.f32 %v2660, 1e-05
        %v2693 = vadd.f32 %v2661, 1e-05
        %v2694 = vadd.f32 %v2662, 1e-05
        %v2695 = vadd.f32 %v2663, 1e-05
        %v2696 = vadd.f32 %v2664, 1e-05
        %v2697 = vrsqrt.pop %v2665
        %v2698 = vrsqrt.pop %v2666
        %v2699 = vrsqrt.pop %v2667
        %v2700 = vrsqrt.pop %v2668
        %v2701 = vrsqrt.pop %v2669
        %v2702 = vrsqrt.pop %v2670
        %v2703 = vrsqrt.pop %v2671
        %v2704 = vrsqrt.pop %v2672
        %v2705 = vrsqrt.pop %v2673
        %v2706 = vrsqrt.pop %v2674
        %v2707 = vrsqrt.pop %v2675
        %v2708 = vrsqrt.pop %v2676
        %v2709 = vrsqrt.pop %v2677
        %v2710 = vrsqrt.pop %v2678
        %v2711 = vrsqrt.pop %v2679
        %v2712 = vrsqrt.pop %v2680
        %v2713 = vrsqrt.pop %v2681
        %v2714 = vrsqrt.pop %v2682
        %v2715 = vrsqrt.pop %v2683
        %v2716 = vrsqrt.pop %v2684
        %v2717 = vrsqrt.pop %v2685
        %v2718 = vrsqrt.pop %v2686
        %v2719 = vrsqrt.pop %v2687
        %v2720 = vrsqrt.pop %v2688
        %v2721 = vrsqrt.pop %v2689
        %v2722 = vrsqrt.pop %v2690
        %v2723 = vrsqrt.pop %v2691
        %v2724 = vrsqrt.pop %v2692
        %v2725 = vrsqrt.pop %v2693
        %v2726 = vrsqrt.pop %v2694
        %v2727 = vrsqrt.pop %v2695
        %v2728 = vrsqrt.pop %v2696
        %v2729 = vmul.f32 %v2441, %v2697
        %v2730 = vmul.f32 %v2442, %v2698
        %v2731 = vmul.f32 %v2443, %v2699
        %v2732 = vmul.f32 %v2444, %v2700
        %v2733 = vmul.f32 %v2445, %v2701
        %v2734 = vmul.f32 %v2446, %v2702
        %v2735 = vmul.f32 %v2447, %v2703
        %v2736 = vmul.f32 %v2448, %v2704
        %v2737 = vmul.f32 %v2449, %v2705
        %v2738 = vmul.f32 %v2450, %v2706
        %v2739 = vmul.f32 %v2451, %v2707
        %v2740 = vmul.f32 %v2452, %v2708
        %v2741 = vmul.f32 %v2453, %v2709
        %v2742 = vmul.f32 %v2454, %v2710
        %v2743 = vmul.f32 %v2455, %v2711
        %v2744 = vmul.f32 %v2456, %v2712
        %v2745 = vmul.f32 %v2457, %v2713
        %v2746 = vmul.f32 %v2458, %v2714
        %v2747 = vmul.f32 %v2459, %v2715
        %v2748 = vmul.f32 %v2460, %v2716
        %v2749 = vmul.f32 %v2461, %v2717
        %v2750 = vmul.f32 %v2462, %v2718
        %v2751 = vmul.f32 %v2463, %v2719
        %v2752 = vmul.f32 %v2464, %v2720
        %v2753 = vmul.f32 %v2465, %v2721
        %v2754 = vmul.f32 %v2466, %v2722
        %v2755 = vmul.f32 %v2467, %v2723
        %v2756 = vmul.f32 %v2468, %v2724
        %v2757 = vmul.f32 %v2469, %v2725
        %v2758 = vmul.f32 %v2470, %v2726
        %v2759 = vmul.f32 %v2471, %v2727
        %v2760 = vmul.f32 %v2472, %v2728
        %v2761 = vld [vmem:[%s4] sm:$0xff]
        %v2762 = vld [vmem:[%s4 + $0x8] sm:$0xff]
        %v2763 = vld [vmem:[%s4 + $0x10] sm:$0xff]
        %v2764 = vld [vmem:[%s4 + $0x18] sm:$0xff]
        %2766 = vset.pattern.permute.xlu0 1
        %2767 = vperm.xlu0 %2766, %v2761
        %v2768 = vpop.permute.xlu0 %2767
        %2770 = vset.pattern.permute.xlu0 1
        %2771 = vperm.xlu0 %2770, %v2762
        %v2772 = vpop.permute.xlu0 %2771
        %2774 = vset.pattern.permute.xlu0 1
        %2775 = vperm.xlu0 %2774, %v2763
        %v2776 = vpop.permute.xlu0 %2775
        %2778 = vset.pattern.permute.xlu0 1
        %2779 = vperm.xlu0 %2778, %v2764
        %v2780 = vpop.permute.xlu0 %2779
        %v2781 = vlaneseq
        %v2782 = vshrl.u32 %v2781, 7
        %v2783 = vsub.s32 0, %v2782
        %v2784 = vrot.slane %v2768, %v2783
        %v2785 = vlaneseq
        %v2786 = vshrl.u32 %v2785, 7
        %v2787 = vsub.s32 1, %v2786
        %v2788 = vrot.slane %v2768, %v2787
        %v2789 = vlaneseq
        %v2790 = vshrl.u32 %v2789, 7
        %v2791 = vsub.s32 2, %v2790
        %v2792 = vrot.slane %v2768, %v2791
        %v2793 = vlaneseq
        %v2794 = vshrl.u32 %v2793, 7
        %v2795 = vsub.s32 3, %v2794
        %v2796 = vrot.slane %v2768, %v2795
        %v2797 = vlaneseq
        %v2798 = vshrl.u32 %v2797, 7
        %v2799 = vsub.s32 4, %v2798
        %v2800 = vrot.slane %v2768, %v2799
        %v2801 = vlaneseq
        %v2802 = vshrl.u32 %v2801, 7
        %v2803 = vsub.s32 5, %v2802
        %v2804 = vrot.slane %v2768, %v2803
        %v2805 = vlaneseq
        %v2806 = vshrl.u32 %v2805, 7
        %v2807 = vsub.s32 6, %v2806
        %v2808 = vrot.slane %v2768, %v2807
        %v2809 = vlaneseq
        %v2810 = vshrl.u32 %v2809, 7
        %v2811 = vsub.s32 7, %v2810
        %v2812 = vrot.slane %v2768, %v2811
        %v2813 = vlaneseq
        %v2814 = vshrl.u32 %v2813, 7
        %v2815 = vsub.s32 0, %v2814
        %v2816 = vrot.slane %v2772, %v2815
        %v2817 = vlaneseq
        %v2818 = vshrl.u32 %v2817, 7
        %v2819 = vsub.s32 1, %v2818
        %v2820 = vrot.slane %v2772, %v2819
        %v2821 = vlaneseq
        %v2822 = vshrl.u32 %v2821, 7
        %v2823 = vsub.s32 2, %v2822
        %v2824 = vrot.slane %v2772, %v2823
        %v2825 = vlaneseq
        %v2826 = vshrl.u32 %v2825, 7
        %v2827 = vsub.s32 3, %v2826
        %v2828 = vrot.slane %v2772, %v2827
        %v2829 = vlaneseq
        %v2830 = vshrl.u32 %v2829, 7
        %v2831 = vsub.s32 4, %v2830
        %v2832 = vrot.slane %v2772, %v2831
        %v2833 = vlaneseq
        %v2834 = vshrl.u32 %v2833, 7
        %v2835 = vsub.s32 5, %v2834
        %v2836 = vrot.slane %v2772, %v2835
        %v2837 = vlaneseq
        %v2838 = vshrl.u32 %v2837, 7
        %v2839 = vsub.s32 6, %v2838
        %v2840 = vrot.slane %v2772, %v2839
        %v2841 = vlaneseq
        %v2842 = vshrl.u32 %v2841, 7
        %v2843 = vsub.s32 7, %v2842
        %v2844 = vrot.slane %v2772, %v2843
        %v2845 = vlaneseq
        %v2846 = vshrl.u32 %v2845, 7
        %v2847 = vsub.s32 0, %v2846
        %v2848 = vrot.slane %v2776, %v2847
        %v2849 = vlaneseq
        %v2850 = vshrl.u32 %v2849, 7
        %v2851 = vsub.s32 1, %v2850
        %v2852 = vrot.slane %v2776, %v2851
        %v2853 = vlaneseq
        %v2854 = vshrl.u32 %v2853, 7
        %v2855 = vsub.s32 2, %v2854
        %v2856 = vrot.slane %v2776, %v2855
        %v2857 = vlaneseq
        %v2858 = vshrl.u32 %v2857, 7
        %v2859 = vsub.s32 3, %v2858
        %v2860 = vrot.slane %v2776, %v2859
        %v2861 = vlaneseq
        %v2862 = vshrl.u32 %v2861, 7
        %v2863 = vsub.s32 4, %v2862
        %v2864 = vrot.slane %v2776, %v2863
        %v2865 = vlaneseq
        %v2866 = vshrl.u32 %v2865, 7
        %v2867 = vsub.s32 5, %v2866
        %v2868 = vrot.slane %v2776, %v2867
        %v2869 = vlaneseq
        %v2870 = vshrl.u32 %v2869, 7
        %v2871 = vsub.s32 6, %v2870
        %v2872 = vrot.slane %v2776, %v2871
        %v2873 = vlaneseq
        %v2874 = vshrl.u32 %v2873, 7
        %v2875 = vsub.s32 7, %v2874
        %v2876 = vrot.slane %v2776, %v2875
        %v2877 = vlaneseq
        %v2878 = vshrl.u32 %v2877, 7
        %v2879 = vsub.s32 0, %v2878
        %v2880 = vrot.slane %v2780, %v2879
        %v2881 = vlaneseq
        %v2882 = vshrl.u32 %v2881, 7
        %v2883 = vsub.s32 1, %v2882
        %v2884 = vrot.slane %v2780, %v2883
        %v2885 = vlaneseq
        %v2886 = vshrl.u32 %v2885, 7
        %v2887 = vsub.s32 2, %v2886
        %v2888 = vrot.slane %v2780, %v2887
        %v2889 = vlaneseq
        %v2890 = vshrl.u32 %v2889, 7
        %v2891 = vsub.s32 3, %v2890
        %v2892 = vrot.slane %v2780, %v2891
        %v2893 = vlaneseq
        %v2894 = vshrl.u32 %v2893, 7
        %v2895 = vsub.s32 4, %v2894
        %v2896 = vrot.slane %v2780, %v2895
        %v2897 = vlaneseq
        %v2898 = vshrl.u32 %v2897, 7
        %v2899 = vsub.s32 5, %v2898
        %v2900 = vrot.slane %v2780, %v2899
        %v2901 = vlaneseq
        %v2902 = vshrl.u32 %v2901, 7
        %v2903 = vsub.s32 6, %v2902
        %v2904 = vrot.slane %v2780, %v2903
        %v2905 = vlaneseq
        %v2906 = vshrl.u32 %v2905, 7
        %v2907 = vsub.s32 7, %v2906
        %v2908 = vrot.slane %v2780, %v2907
        %v2941 = vmul.f32 %v2729, %v2784
        %v2942 = vmul.f32 %v2730, %v2788
        %v2943 = vmul.f32 %v2731, %v2792
        %v2944 = vmul.f32 %v2732, %v2796
        %v2945 = vmul.f32 %v2733, %v2800
        %v2946 = vmul.f32 %v2734, %v2804
        %v2947 = vmul.f32 %v2735, %v2808
        %v2948 = vmul.f32 %v2736, %v2812
        %v2949 = vmul.f32 %v2737, %v2816
        %v2950 = vmul.f32 %v2738, %v2820
        %v2951 = vmul.f32 %v2739, %v2824
        %v2952 = vmul.f32 %v2740, %v2828
        %v2953 = vmul.f32 %v2741, %v2832
        %v2954 = vmul.f32 %v2742, %v2836
        %v2955 = vmul.f32 %v2743, %v2840
        %v2956 = vmul.f32 %v2744, %v2844
        %v2957 = vmul.f32 %v2745, %v2848
        %v2958 = vmul.f32 %v2746, %v2852
        %v2959 = vmul.f32 %v2747, %v2856
        %v2960 = vmul.f32 %v2748, %v2860
        %v2961 = vmul.f32 %v2749, %v2864
        %v2962 = vmul.f32 %v2750, %v2868
        %v2963 = vmul.f32 %v2751, %v2872
        %v2964 = vmul.f32 %v2752, %v2876
        %v2965 = vmul.f32 %v2753, %v2880
        %v2966 = vmul.f32 %v2754, %v2884
        %v2967 = vmul.f32 %v2755, %v2888
        %v2968 = vmul.f32 %v2756, %v2892
        %v2969 = vmul.f32 %v2757, %v2896
        %v2970 = vmul.f32 %v2758, %v2900
        %v2971 = vmul.f32 %v2759, %v2904
        %v2972 = vmul.f32 %v2760, %v2908
        %2973 = vset.pattern.permute.xlu0 2
        %2974 = vperm.xlu0 %2973, %v2761
        %v2975 = vpop.permute.xlu0 %2974
        %2976 = vset.pattern.permute.xlu0 2
        %2977 = vperm.xlu0 %2976, %v2762
        %v2978 = vpop.permute.xlu0 %2977
        %2979 = vset.pattern.permute.xlu0 2
        %2980 = vperm.xlu0 %2979, %v2763
        %v2981 = vpop.permute.xlu0 %2980
        %2982 = vset.pattern.permute.xlu0 2
        %2983 = vperm.xlu0 %2982, %v2764
        %v2984 = vpop.permute.xlu0 %2983
        %v2985 = vlaneseq
        %v2986 = vshrl.u32 %v2985, 7
        %v2987 = vsub.s32 0, %v2986
        %v2988 = vrot.slane %v2975, %v2987
        %v2989 = vlaneseq
        %v2990 = vshrl.u32 %v2989, 7
        %v2991 = vsub.s32 1, %v2990
        %v2992 = vrot.slane %v2975, %v2991
        %v2993 = vlaneseq
        %v2994 = vshrl.u32 %v2993, 7
        %v2995 = vsub.s32 2, %v2994
        %v2996 = vrot.slane %v2975, %v2995
        %v2997 = vlaneseq
        %v2998 = vshrl.u32 %v2997, 7
        %v2999 = vsub.s32 3, %v2998
        %v3000 = vrot.slane %v2975, %v2999
        %v3001 = vlaneseq
        %v3002 = vshrl.u32 %v3001, 7
        %v3003 = vsub.s32 4, %v3002
        %v3004 = vrot.slane %v2975, %v3003
        %v3005 = vlaneseq
        %v3006 = vshrl.u32 %v3005, 7
        %v3007 = vsub.s32 5, %v3006
        %v3008 = vrot.slane %v2975, %v3007
        %v3009 = vlaneseq
        %v3010 = vshrl.u32 %v3009, 7
        %v3011 = vsub.s32 6, %v3010
        %v3012 = vrot.slane %v2975, %v3011
        %v3013 = vlaneseq
        %v3014 = vshrl.u32 %v3013, 7
        %v3015 = vsub.s32 7, %v3014
        %v3016 = vrot.slane %v2975, %v3015
        %v3017 = vlaneseq
        %v3018 = vshrl.u32 %v3017, 7
        %v3019 = vsub.s32 0, %v3018
        %v3020 = vrot.slane %v2978, %v3019
        %v3021 = vlaneseq
        %v3022 = vshrl.u32 %v3021, 7
        %v3023 = vsub.s32 1, %v3022
        %v3024 = vrot.slane %v2978, %v3023
        %v3025 = vlaneseq
        %v3026 = vshrl.u32 %v3025, 7
        %v3027 = vsub.s32 2, %v3026
        %v3028 = vrot.slane %v2978, %v3027
        %v3029 = vlaneseq
        %v3030 = vshrl.u32 %v3029, 7
        %v3031 = vsub.s32 3, %v3030
        %v3032 = vrot.slane %v2978, %v3031
        %v3033 = vlaneseq
        %v3034 = vshrl.u32 %v3033, 7
        %v3035 = vsub.s32 4, %v3034
        %v3036 = vrot.slane %v2978, %v3035
        %v3037 = vlaneseq
        %v3038 = vshrl.u32 %v3037, 7
        %v3039 = vsub.s32 5, %v3038
        %v3040 = vrot.slane %v2978, %v3039
        %v3041 = vlaneseq
        %v3042 = vshrl.u32 %v3041, 7
        %v3043 = vsub.s32 6, %v3042
        %v3044 = vrot.slane %v2978, %v3043
        %v3045 = vlaneseq
        %v3046 = vshrl.u32 %v3045, 7
        %v3047 = vsub.s32 7, %v3046
        %v3048 = vrot.slane %v2978, %v3047
        %v3049 = vlaneseq
        %v3050 = vshrl.u32 %v3049, 7
        %v3051 = vsub.s32 0, %v3050
        %v3052 = vrot.slane %v2981, %v3051
        %v3053 = vlaneseq
        %v3054 = vshrl.u32 %v3053, 7
        %v3055 = vsub.s32 1, %v3054
        %v3056 = vrot.slane %v2981, %v3055
        %v3057 = vlaneseq
        %v3058 = vshrl.u32 %v3057, 7
        %v3059 = vsub.s32 2, %v3058
        %v3060 = vrot.slane %v2981, %v3059
        %v3061 = vlaneseq
        %v3062 = vshrl.u32 %v3061, 7
        %v3063 = vsub.s32 3, %v3062
        %v3064 = vrot.slane %v2981, %v3063
        %v3065 = vlaneseq
        %v3066 = vshrl.u32 %v3065, 7
        %v3067 = vsub.s32 4, %v3066
        %v3068 = vrot.slane %v2981, %v3067
        %v3069 = vlaneseq
        %v3070 = vshrl.u32 %v3069, 7
        %v3071 = vsub.s32 5, %v3070
        %v3072 = vrot.slane %v2981, %v3071
        %v3073 = vlaneseq
        %v3074 = vshrl.u32 %v3073, 7
        %v3075 = vsub.s32 6, %v3074
        %v3076 = vrot.slane %v2981, %v3075
        %v3077 = vlaneseq
        %v3078 = vshrl.u32 %v3077, 7
        %v3079 = vsub.s32 7, %v3078
        %v3080 = vrot.slane %v2981, %v3079
        %v3081 = vlaneseq
        %v3082 = vshrl.u32 %v3081, 7
        %v3083 = vsub.s32 0, %v3082
        %v3084 = vrot.slane %v2984, %v3083
        %v3085 = vlaneseq
        %v3086 = vshrl.u32 %v3085, 7
        %v3087 = vsub.s32 1, %v3086
        %v3088 = vrot.slane %v2984, %v3087
        %v3089 = vlaneseq
        %v3090 = vshrl.u32 %v3089, 7
        %v3091 = vsub.s32 2, %v3090
        %v3092 = vrot.slane %v2984, %v3091
        %v3093 = vlaneseq
        %v3094 = vshrl.u32 %v3093, 7
        %v3095 = vsub.s32 3, %v3094
        %v3096 = vrot.slane %v2984, %v3095
        %v3097 = vlaneseq
        %v3098 = vshrl.u32 %v3097, 7
        %v3099 = vsub.s32 4, %v3098
        %v3100 = vrot.slane %v2984, %v3099
        %v3101 = vlaneseq
        %v3102 = vshrl.u32 %v3101, 7
        %v3103 = vsub.s32 5, %v3102
        %v3104 = vrot.slane %v2984, %v3103
        %v3105 = vlaneseq
        %v3106 = vshrl.u32 %v3105, 7
        %v3107 = vsub.s32 6, %v3106
        %v3108 = vrot.slane %v2984, %v3107
        %v3109 = vlaneseq
        %v3110 = vshrl.u32 %v3109, 7
        %v3111 = vsub.s32 7, %v3110
        %v3112 = vrot.slane %v2984, %v3111
        %v3145 = vadd.f32 %v2941, %v2988
        %v3146 = vadd.f32 %v2942, %v2992
        %v3147 = vadd.f32 %v2943, %v2996
        %v3148 = vadd.f32 %v2944, %v3000
        %v3149 = vadd.f32 %v2945, %v3004
        %v3150 = vadd.f32 %v2946, %v3008
        %v3151 = vadd.f32 %v2947, %v3012
        %v3152 = vadd.f32 %v2948, %v3016
        %v3153 = vadd.f32 %v2949, %v3020
        %v3154 = vadd.f32 %v2950, %v3024
        %v3155 = vadd.f32 %v2951, %v3028
        %v3156 = vadd.f32 %v2952, %v3032
        %v3157 = vadd.f32 %v2953, %v3036
        %v3158 = vadd.f32 %v2954, %v3040
        %v3159 = vadd.f32 %v2955, %v3044
        %v3160 = vadd.f32 %v2956, %v3048
        %v3161 = vadd.f32 %v2957, %v3052
        %v3162 = vadd.f32 %v2958, %v3056
        %v3163 = vadd.f32 %v2959, %v3060
        %v3164 = vadd.f32 %v2960, %v3064
        %v3165 = vadd.f32 %v2961, %v3068
        %v3166 = vadd.f32 %v2962, %v3072
        %v3167 = vadd.f32 %v2963, %v3076
        %v3168 = vadd.f32 %v2964, %v3080
        %v3169 = vadd.f32 %v2965, %v3084
        %v3170 = vadd.f32 %v2966, %v3088
        %v3171 = vadd.f32 %v2967, %v3092
        %v3172 = vadd.f32 %v2968, %v3096
        %v3173 = vadd.f32 %v2969, %v3100
        %v3174 = vadd.f32 %v2970, %v3104
        %v3175 = vadd.f32 %v2971, %v3108
        %v3176 = vadd.f32 %v2972, %v3112
        %v3177 = vmul.f32 %v3145, 0.5
        %v3178 = vmul.f32 %v3146, 0.5
        %v3179 = vmul.f32 %v3147, 0.5
        %v3180 = vmul.f32 %v3148, 0.5
        %v3181 = vmul.f32 %v3149, 0.5
        %v3182 = vmul.f32 %v3150, 0.5
        %v3183 = vmul.f32 %v3151, 0.5
        %v3184 = vmul.f32 %v3152, 0.5
        %v3185 = vmul.f32 %v3153, 0.5
        %v3186 = vmul.f32 %v3154, 0.5
        %v3187 = vmul.f32 %v3155, 0.5
        %v3188 = vmul.f32 %v3156, 0.5
        %v3189 = vmul.f32 %v3157, 0.5
        %v3190 = vmul.f32 %v3158, 0.5
        %v3191 = vmul.f32 %v3159, 0.5
        %v3192 = vmul.f32 %v3160, 0.5
        %v3193 = vmul.f32 %v3161, 0.5
        %v3194 = vmul.f32 %v3162, 0.5
        %v3195 = vmul.f32 %v3163, 0.5
        %v3196 = vmul.f32 %v3164, 0.5
        %v3197 = vmul.f32 %v3165, 0.5
        %v3198 = vmul.f32 %v3166, 0.5
        %v3199 = vmul.f32 %v3167, 0.5
        %v3200 = vmul.f32 %v3168, 0.5
        %v3201 = vmul.f32 %v3169, 0.5
        %v3202 = vmul.f32 %v3170, 0.5
        %v3203 = vmul.f32 %v3171, 0.5
        %v3204 = vmul.f32 %v3172, 0.5
        %v3205 = vmul.f32 %v3173, 0.5
        %v3206 = vmul.f32 %v3174, 0.5
        %v3207 = vmul.f32 %v3175, 0.5
        %v3208 = vmul.f32 %v3176, 0.5
        %v3209 = vmul.f32 %v3145, 0.70710677
        %v3210 = vmul.f32 %v3146, 0.70710677
        %v3211 = vmul.f32 %v3147, 0.70710677
        %v3212 = vmul.f32 %v3148, 0.70710677
        %v3213 = vmul.f32 %v3149, 0.70710677
        %v3214 = vmul.f32 %v3150, 0.70710677
        %v3215 = vmul.f32 %v3151, 0.70710677
        %v3216 = vmul.f32 %v3152, 0.70710677
        %v3217 = vmul.f32 %v3153, 0.70710677
        %v3218 = vmul.f32 %v3154, 0.70710677
        %v3219 = vmul.f32 %v3155, 0.70710677
        %v3220 = vmul.f32 %v3156, 0.70710677
        %v3221 = vmul.f32 %v3157, 0.70710677
        %v3222 = vmul.f32 %v3158, 0.70710677
        %v3223 = vmul.f32 %v3159, 0.70710677
        %v3224 = vmul.f32 %v3160, 0.70710677
        %v3225 = vmul.f32 %v3161, 0.70710677
        %v3226 = vmul.f32 %v3162, 0.70710677
        %v3227 = vmul.f32 %v3163, 0.70710677
        %v3228 = vmul.f32 %v3164, 0.70710677
        %v3229 = vmul.f32 %v3165, 0.70710677
        %v3230 = vmul.f32 %v3166, 0.70710677
        %v3231 = vmul.f32 %v3167, 0.70710677
        %v3232 = vmul.f32 %v3168, 0.70710677
        %v3233 = vmul.f32 %v3169, 0.70710677
        %v3234 = vmul.f32 %v3170, 0.70710677
        %v3235 = vmul.f32 %v3171, 0.70710677
        %v3236 = vmul.f32 %v3172, 0.70710677
        %v3237 = vmul.f32 %v3173, 0.70710677
        %v3238 = vmul.f32 %v3174, 0.70710677
        %v3239 = vmul.f32 %v3175, 0.70710677
        %v3240 = vmul.f32 %v3176, 0.70710677
        %v3241 = verf.f32.pop %v3209
        %v3242 = verf.f32.pop %v3210
        %v3243 = verf.f32.pop %v3211
        %v3244 = verf.f32.pop %v3212
        %v3245 = verf.f32.pop %v3213
        %v3246 = verf.f32.pop %v3214
        %v3247 = verf.f32.pop %v3215
        %v3248 = verf.f32.pop %v3216
        %v3249 = verf.f32.pop %v3217
        %v3250 = verf.f32.pop %v3218
        %v3251 = verf.f32.pop %v3219
        %v3252 = verf.f32.pop %v3220
        %v3253 = verf.f32.pop %v3221
        %v3254 = verf.f32.pop %v3222
        %v3255 = verf.f32.pop %v3223
        %v3256 = verf.f32.pop %v3224
        %v3257 = verf.f32.pop %v3225
        %v3258 = verf.f32.pop %v3226
        %v3259 = verf.f32.pop %v3227
        %v3260 = verf.f32.pop %v3228
        %v3261 = verf.f32.pop %v3229
        %v3262 = verf.f32.pop %v3230
        %v3263 = verf.f32.pop %v3231
        %v3264 = verf.f32.pop %v3232
        %v3265 = verf.f32.pop %v3233
        %v3266 = verf.f32.pop %v3234
        %v3267 = verf.f32.pop %v3235
        %v3268 = verf.f32.pop %v3236
        %v3269 = verf.f32.pop %v3237
        %v3270 = verf.f32.pop %v3238
        %v3271 = verf.f32.pop %v3239
        %v3272 = verf.f32.pop %v3240
        %v3273 = vadd.f32 %v3241, 1.0
        %v3274 = vadd.f32 %v3242, 1.0
        %v3275 = vadd.f32 %v3243, 1.0
        %v3276 = vadd.f32 %v3244, 1.0
        %v3277 = vadd.f32 %v3245, 1.0
        %v3278 = vadd.f32 %v3246, 1.0
        %v3279 = vadd.f32 %v3247, 1.0
        %v3280 = vadd.f32 %v3248, 1.0
        %v3281 = vadd.f32 %v3249, 1.0
        %v3282 = vadd.f32 %v3250, 1.0
        %v3283 = vadd.f32 %v3251, 1.0
        %v3284 = vadd.f32 %v3252, 1.0
        %v3285 = vadd.f32 %v3253, 1.0
        %v3286 = vadd.f32 %v3254, 1.0
        %v3287 = vadd.f32 %v3255, 1.0
        %v3288 = vadd.f32 %v3256, 1.0
        %v3289 = vadd.f32 %v3257, 1.0
        %v3290 = vadd.f32 %v3258, 1.0
        %v3291 = vadd.f32 %v3259, 1.0
        %v3292 = vadd.f32 %v3260, 1.0
        %v3293 = vadd.f32 %v3261, 1.0
        %v3294 = vadd.f32 %v3262, 1.0
        %v3295 = vadd.f32 %v3263, 1.0
        %v3296 = vadd.f32 %v3264, 1.0
        %v3297 = vadd.f32 %v3265, 1.0
        %v3298 = vadd.f32 %v3266, 1.0
        %v3299 = vadd.f32 %v3267, 1.0
        %v3300 = vadd.f32 %v3268, 1.0
        %v3301 = vadd.f32 %v3269, 1.0
        %v3302 = vadd.f32 %v3270, 1.0
        %v3303 = vadd.f32 %v3271, 1.0
        %v3304 = vadd.f32 %v3272, 1.0
        %v3305 = vmul.f32 %v3177, %v3273
        %v3306 = vmul.f32 %v3178, %v3274
        %v3307 = vmul.f32 %v3179, %v3275
        %v3308 = vmul.f32 %v3180, %v3276
        %v3309 = vmul.f32 %v3181, %v3277
        %v3310 = vmul.f32 %v3182, %v3278
        %v3311 = vmul.f32 %v3183, %v3279
        %v3312 = vmul.f32 %v3184, %v3280
        %v3313 = vmul.f32 %v3185, %v3281
        %v3314 = vmul.f32 %v3186, %v3282
        %v3315 = vmul.f32 %v3187, %v3283
        %v3316 = vmul.f32 %v3188, %v3284
        %v3317 = vmul.f32 %v3189, %v3285
        %v3318 = vmul.f32 %v3190, %v3286
        %v3319 = vmul.f32 %v3191, %v3287
        %v3320 = vmul.f32 %v3192, %v3288
        %v3321 = vmul.f32 %v3193, %v3289
        %v3322 = vmul.f32 %v3194, %v3290
        %v3323 = vmul.f32 %v3195, %v3291
        %v3324 = vmul.f32 %v3196, %v3292
        %v3325 = vmul.f32 %v3197, %v3293
        %v3326 = vmul.f32 %v3198, %v3294
        %v3327 = vmul.f32 %v3199, %v3295
        %v3328 = vmul.f32 %v3200, %v3296
        %v3329 = vmul.f32 %v3201, %v3297
        %v3330 = vmul.f32 %v3202, %v3298
        %v3331 = vmul.f32 %v3203, %v3299
        %v3332 = vmul.f32 %v3204, %v3300
        %v3333 = vmul.f32 %v3205, %v3301
        %v3334 = vmul.f32 %v3206, %v3302
        %v3335 = vmul.f32 %v3207, %v3303
        %v3336 = vmul.f32 %v3208, %v3304
        %v3369 = vcombine.low %v3305, %v3306
        %v3370 = vcombine.low %v3307, %v3308
        %v3371 = vcombine.low %v3309, %v3310
        %v3372 = vcombine.low %v3311, %v3312
        %v3374 = vunpack.c.l.s4 1966171168
        %v3375 = vunpack.c.0.s8 %v3374
        %v3376 = vlaneseq
        %v3377 = vshrl.u32 %v3376, 7
        %v3378 = vsub.s32 %v3375, %v3377
        %v3379 = vrot.slane %v3369, %v3378
        %v3381 = vunpack.c.l.s4 1966171168
        %v3382 = vunpack.c.0.s8 %v3381
        %v3383 = vlaneseq
        %v3384 = vshrl.u32 %v3383, 7
        %v3385 = vsub.s32 %v3382, %v3384
        %v3386 = vrot.slane %v3370, %v3385
        %v3388 = vunpack.c.l.s4 1966171168
        %v3389 = vunpack.c.0.s8 %v3388
        %v3390 = vlaneseq
        %v3391 = vshrl.u32 %v3390, 7
        %v3392 = vsub.s32 %v3389, %v3391
        %v3393 = vrot.slane %v3371, %v3392
        %v3395 = vunpack.c.l.s4 1966171168
        %v3396 = vunpack.c.0.s8 %v3395
        %v3397 = vlaneseq
        %v3398 = vshrl.u32 %v3397, 7
        %v3399 = vsub.s32 %v3396, %v3398
        %v3400 = vrot.slane %v3372, %v3399
        %v3401 = vcombine.low %v3379, %v3386
        %v3402 = vcombine.low %v3393, %v3400
        %v3404 = vunpack.c.l.s4 1966171168
        %v3405 = vunpack.c.0.s8 %v3404
        %v3406 = vlaneseq
        %v3407 = vshrl.u32 %v3406, 7
        %v3408 = vsub.s32 %v3405, %v3407
        %v3409 = vrot.slane %v3401, %v3408
        %v3411 = vunpack.c.l.s4 1966171168
        %v3412 = vunpack.c.0.s8 %v3411
        %v3413 = vlaneseq
        %v3414 = vshrl.u32 %v3413, 7
        %v3415 = vsub.s32 %v3412, %v3414
        %v3416 = vrot.slane %v3402, %v3415
        %v3417 = vcombine.low %v3409, %v3416
        %v3418 = vcombine.low %v3313, %v3314
        %v3419 = vcombine.low %v3315, %v3316
        %v3420 = vcombine.low %v3317, %v3318
        %v3421 = vcombine.low %v3319, %v3320
        %v3423 = vunpack.c.l.s4 1966171168
        %v3424 = vunpack.c.0.s8 %v3423
        %v3425 = vlaneseq
        %v3426 = vshrl.u32 %v3425, 7
        %v3427 = vsub.s32 %v3424, %v3426
        %v3428 = vrot.slane %v3418, %v3427
        %v3430 = vunpack.c.l.s4 1966171168
        %v3431 = vunpack.c.0.s8 %v3430
        %v3432 = vlaneseq
        %v3433 = vshrl.u32 %v3432, 7
        %v3434 = vsub.s32 %v3431, %v3433
        %v3435 = vrot.slane %v3419, %v3434
        %v3437 = vunpack.c.l.s4 1966171168
        %v3438 = vunpack.c.0.s8 %v3437
        %v3439 = vlaneseq
        %v3440 = vshrl.u32 %v3439, 7
        %v3441 = vsub.s32 %v3438, %v3440
        %v3442 = vrot.slane %v3420, %v3441
        %v3444 = vunpack.c.l.s4 1966171168
        %v3445 = vunpack.c.0.s8 %v3444
        %v3446 = vlaneseq
        %v3447 = vshrl.u32 %v3446, 7
        %v3448 = vsub.s32 %v3445, %v3447
        %v3449 = vrot.slane %v3421, %v3448
        %v3450 = vcombine.low %v3428, %v3435
        %v3451 = vcombine.low %v3442, %v3449
        %v3453 = vunpack.c.l.s4 1966171168
        %v3454 = vunpack.c.0.s8 %v3453
        %v3455 = vlaneseq
        %v3456 = vshrl.u32 %v3455, 7
        %v3457 = vsub.s32 %v3454, %v3456
        %v3458 = vrot.slane %v3450, %v3457
        %v3460 = vunpack.c.l.s4 1966171168
        %v3461 = vunpack.c.0.s8 %v3460
        %v3462 = vlaneseq
        %v3463 = vshrl.u32 %v3462, 7
        %v3464 = vsub.s32 %v3461, %v3463
        %v3465 = vrot.slane %v3451, %v3464
        %v3466 = vcombine.low %v3458, %v3465
        %v3467 = vcombine.low %v3321, %v3322
        %v3468 = vcombine.low %v3323, %v3324
        %v3469 = vcombine.low %v3325, %v3326
        %v3470 = vcombine.low %v3327, %v3328
        %v3472 = vunpack.c.l.s4 1966171168
        %v3473 = vunpack.c.0.s8 %v3472
        %v3474 = vlaneseq
        %v3475 = vshrl.u32 %v3474, 7
        %v3476 = vsub.s32 %v3473, %v3475
        %v3477 = vrot.slane %v3467, %v3476
        %v3479 = vunpack.c.l.s4 1966171168
        %v3480 = vunpack.c.0.s8 %v3479
        %v3481 = vlaneseq
        %v3482 = vshrl.u32 %v3481, 7
        %v3483 = vsub.s32 %v3480, %v3482
        %v3484 = vrot.slane %v3468, %v3483
        %v3486 = vunpack.c.l.s4 1966171168
        %v3487 = vunpack.c.0.s8 %v3486
        %v3488 = vlaneseq
        %v3489 = vshrl.u32 %v3488, 7
        %v3490 = vsub.s32 %v3487, %v3489
        %v3491 = vrot.slane %v3469, %v3490
        %v3493 = vunpack.c.l.s4 1966171168
        %v3494 = vunpack.c.0.s8 %v3493
        %v3495 = vlaneseq
        %v3496 = vshrl.u32 %v3495, 7
        %v3497 = vsub.s32 %v3494, %v3496
        %v3498 = vrot.slane %v3470, %v3497
        %v3499 = vcombine.low %v3477, %v3484
        %v3500 = vcombine.low %v3491, %v3498
        %v3502 = vunpack.c.l.s4 1966171168
        %v3503 = vunpack.c.0.s8 %v3502
        %v3504 = vlaneseq
        %v3505 = vshrl.u32 %v3504, 7
        %v3506 = vsub.s32 %v3503, %v3505
        %v3507 = vrot.slane %v3499, %v3506
        %v3509 = vunpack.c.l.s4 1966171168
        %v3510 = vunpack.c.0.s8 %v3509
        %v3511 = vlaneseq
        %v3512 = vshrl.u32 %v3511, 7
        %v3513 = vsub.s32 %v3510, %v3512
        %v3514 = vrot.slane %v3500, %v3513
        %v3515 = vcombine.low %v3507, %v3514
        %v3516 = vcombine.low %v3329, %v3330
        %v3517 = vcombine.low %v3331, %v3332
        %v3518 = vcombine.low %v3333, %v3334
        %v3519 = vcombine.low %v3335, %v3336
        %v3521 = vunpack.c.l.s4 1966171168
        %v3522 = vunpack.c.0.s8 %v3521
        %v3523 = vlaneseq
        %v3524 = vshrl.u32 %v3523, 7
        %v3525 = vsub.s32 %v3522, %v3524
        %v3526 = vrot.slane %v3516, %v3525
        %v3528 = vunpack.c.l.s4 1966171168
        %v3529 = vunpack.c.0.s8 %v3528
        %v3530 = vlaneseq
        %v3531 = vshrl.u32 %v3530, 7
        %v3532 = vsub.s32 %v3529, %v3531
        %v3533 = vrot.slane %v3517, %v3532
        %v3535 = vunpack.c.l.s4 1966171168
        %v3536 = vunpack.c.0.s8 %v3535
        %v3537 = vlaneseq
        %v3538 = vshrl.u32 %v3537, 7
        %v3539 = vsub.s32 %v3536, %v3538
        %v3540 = vrot.slane %v3518, %v3539
        %v3542 = vunpack.c.l.s4 1966171168
        %v3543 = vunpack.c.0.s8 %v3542
        %v3544 = vlaneseq
        %v3545 = vshrl.u32 %v3544, 7
        %v3546 = vsub.s32 %v3543, %v3545
        %v3547 = vrot.slane %v3519, %v3546
        %v3548 = vcombine.low %v3526, %v3533
        %v3549 = vcombine.low %v3540, %v3547
        %v3551 = vunpack.c.l.s4 1966171168
        %v3552 = vunpack.c.0.s8 %v3551
        %v3553 = vlaneseq
        %v3554 = vshrl.u32 %v3553, 7
        %v3555 = vsub.s32 %v3552, %v3554
        %v3556 = vrot.slane %v3548, %v3555
        %v3558 = vunpack.c.l.s4 1966171168
        %v3559 = vunpack.c.0.s8 %v3558
        %v3560 = vlaneseq
        %v3561 = vshrl.u32 %v3560, 7
        %v3562 = vsub.s32 %v3559, %v3561
        %v3563 = vrot.slane %v3549, %v3562
        %v3564 = vcombine.low %v3556, %v3563
        %vm3569 = vcmask 523264
        %3570 = vst.msk [vmem:[%s284] sm:$0xff] %vm3569, %v3417
        %3571 = vst.msk [vmem:[%s284 + $0x8] sm:$0xff] %vm3569, %v3466
        %3572 = vst.msk [vmem:[%s284 + $0x10] sm:$0xff] %vm3569, %v3515
        %3573 = vst.msk [vmem:[%s284 + $0x18] sm:$0xff] %vm3569, %v3564
        %s3574 = sand.u32 %s163, 1
        %s3575 = scalar_lea.sflag [#allocation8], %s3574
        %s3576 = sand.u32 %s163, 1
        %s3577 = smul.addr %s3576, 32
        %s3578 = scalar_lea.vmem [#allocation11], %s3577
        // Predicated region
        $region53: #{tpu_custom_call.1} parent=43 // pred_check
          %p3579 = pneg %p173
        $region54: #{tpu_custom_call.1} parent=43 // pred_check_branch
          %3581 = sbr.rel (%p3579) target = $region56
        $region55: #{tpu_custom_call.1} parent=43 // pred_region
          %s3583 = ssub.s32 512, 512
          %3584 = vsyncadd %s3575, %s3583
          %s3585 = smul.addr %s24, 4
          %s3586 = smul.addr %s3585, 128
          %s3587 = scalar_lea.hbm %s6, %s3586
          %s3588 = sshll.u32 %s3578, 4
          %s3589 = int_to_ptr.vmem [resolvable:$true] %s3588
          %3594 = dma.vmem_to_hbm [thread:$0]  %s3589, 512, %s3587, %s3575, 128, 128, 8
        $region56: #{tpu_custom_call.1} parent=43 // pred_fallthru
          _
      $region44: #{tpu_custom_call.1} parent=5 // pred_fallthru
        _
      %p3595 = scmp.le.s32.totalorder 2, %s19
      // Predicated region
      $region57: #{tpu_custom_call.1} parent=5 // pred_check
        %p3596 = pneg %p3595
      $region58: #{tpu_custom_call.1} parent=5 // pred_check_branch
        %3598 = sbr.rel (%p3596) target = $region60
      $region59: #{tpu_custom_call.1} parent=5 // pred_region
        %s3599 = ssub.s32 %s19, 2
        // Predicated region
        $region61: #{tpu_custom_call.1} parent=59 // pred_check
          %p3600 = pneg %p179
        $region62: #{tpu_custom_call.1} parent=59 // pred_check_branch
          %3602 = sbr.rel (%p3600) target = $region64
        $region63: #{tpu_custom_call.1} parent=59 // pred_region
          %s3603 = sand.u32 %s164, 1
          %s3604 = scalar_lea.sflag [#allocation8], %s3603
          %s3605 = sand.u32 %s164, 1
          %s3606 = smul.addr %s3605, 32
          %s3607 = scalar_lea.vmem [#allocation11], %s3606
          %3608 = dma.done %s3604, 512
        $region64: #{tpu_custom_call.1} parent=59 // pred_fallthru
          _
      $region60: #{tpu_custom_call.1} parent=5 // pred_fallthru
        _
    $region6: #{tpu_custom_call.1} parent=1 // loop_footer
      %s23 = sadd.s32 1, %s19
    $region7: #{tpu_custom_call.1} parent=1 // loop_footer_branch
      %18 = sbr.rel target = $region3
    $region8: #{tpu_custom_call.1} parent=1 // loop_exit
      _
    %3609 = vsyncpa [#allocation7], 1
    %s3610 = scalar_lea.sflag [#allocation7], 1
    %3611 = vsyncpa %s3610, 1
    %3612 = vsyncpa [#allocation10], 1
    %3613 = vsyncpa [#allocation8], 1
    %s3614 = scalar_lea.sflag [#allocation8], 1
    %3615 = vsyncpa %s3614, 1

</llo_original>
